<compile_context>
chip_gen: v5e
topology: v5e:2x2
jax: 0.10.0
libtpu: 0.0.40
codegen_flags: <defaults>
</compile_context>

<pallas_src>
import functools

import jax
import jax.numpy as jnp
from jax.experimental import pallas as pl
from jax.experimental.pallas import tpu as pltpu

BN_EPS = 1e-5
TM_MAX = 1024


def _round_up(x, m):
    return (x + m - 1) // m * m


def _cdiv(a, b):
    return (a + b - 1) // b


def _compiler_params():
    return pltpu.CompilerParams(dimension_semantics=("parallel",))


def _plan_shift(m, wp):
    """Tile plan for the shifted-window conv: halo >= wp+1 rows (largest tap offset),
    halo and tm multiples of 16 (bf16 sublane packing), tm a multiple of halo
    (block-aligned halo index maps), and >= 2 grid tiles whenever possible."""
    halo = _round_up(wp + 1, 16)
    cap = max(halo, (TM_MAX // halo) * halo)
    tm = min(cap, max(halo, _round_up(_cdiv(m, 2), halo)))
    nt = _cdiv(m, tm)
    return tm, halo, nt


def _plan_rows(m):
    tm = min(TM_MAX, max(16, _round_up(_cdiv(m, 2), 16)))
    return tm, _cdiv(m, tm)


def _halo_specs(tm, halo, nb, ncols):
    """prev-halo / current / next-halo BlockSpecs over a (nb*halo, ncols) array.
    First/last tile halos are clamped; they only ever feed non-interior (masked) rows."""
    q = tm // halo
    prev = pl.BlockSpec((halo, ncols), lambda i: (jnp.maximum(i * q - 1, 0), 0))
    cur = pl.BlockSpec((tm, ncols), lambda i: (i, 0))
    nxt = pl.BlockSpec((halo, ncols),
                       lambda i: (jnp.minimum((i + 1) * q, nb - 1), 0))
    return prev, cur, nxt


def _interior_mask(n, hp, wp, mp):
    """(mp, 1) f32: 1.0 on rows of the flattened (n, hp, wp) padded grid that are
    interior (real conv outputs), 0.0 on the spatial border / tail rows."""
    r = jnp.arange(mp, dtype=jnp.int32)
    q = r % (hp * wp)
    i = q // wp
    j = q % wp
    valid = (r < n * hp * wp) & (i >= 1) & (i < hp - 1) & (j >= 1) & (j < wp - 1)
    return valid.astype(jnp.float32)[:, None]


# ---------------------------------------------------------------------------
# Pallas kernels
# ---------------------------------------------------------------------------
def _conv1_shift_kernel(xm_ref, xc_ref, xp_ref, msk_ref, w_ref, y_ref, st_ref,
                        *, shifts, halo):
    """Stride-1 3x3 conv on the flattened zero-padded NHWC grid, one row tile.
    Window = [prev halo | tm | next halo] (bf16), upcast to f32 once, 9 shifted
    f32 MXU dots.  Emits y (bf16) and masked (sum, sumsq) BN partials (f32)."""
    tm = xc_ref.shape[0]
    c = y_ref.shape[-1]
    win = jnp.concatenate([xm_ref[...], xc_ref[...], xp_ref[...]],
                          axis=0).astype(jnp.float32)          # single upcast
    acc = jnp.zeros((tm, c), jnp.float32)
    for k, d in enumerate(shifts):                             # 9 static taps
        acc = acc + jnp.dot(win[halo + d:halo + d + tm, :], w_ref[k],
                            preferred_element_type=jnp.float32)
    y_ref[...] = acc.astype(y_ref.dtype)                       # bf16 store
    masked = acc * msk_ref[...]
    s = jnp.sum(masked, axis=0, keepdims=True)
    ss = jnp.sum(masked * acc, axis=0, keepdims=True)
    st_ref[...] = jnp.concatenate(
        [s, ss, jnp.zeros((6, c), jnp.float32)], axis=0)[None]


def _fused_conv2_kernel(ym_ref, yc_ref, yp_ref, mm_ref, mc_ref, mn_ref,
                        w_ref, aff_ref, y_ref, st_ref, *, shifts, halo, delta):
    """conv2 with conv1's BN-post fused into the load path:
    a1 = where(interior, relu(y1*scale1+shift1)*delta, 0) applied to the whole halo
    window (the zeroing doubles as conv2's zero spatial border), then 9 shifted
    f32 MXU dots, bf16 output + masked BN2 partials."""
    tm = yc_ref.shape[0]
    c = y_ref.shape[-1]
    win = jnp.concatenate([ym_ref[...], yc_ref[...], yp_ref[...]],
                          axis=0).astype(jnp.float32)          # single upcast
    msk = jnp.concatenate([mm_ref[...], mc_ref[...], mn_ref[...]], axis=0)
    aff = aff_ref[...]                                         # (8, C): rows 0/1 used
    a = jnp.maximum(win * aff[0:1, :] + aff[1:2, :], 0.0) * delta
    a = jnp.where(msk > 0.0, a, 0.0)                           # border / tail -> 0
    acc = jnp.zeros((tm, c), jnp.float32)
    for k, d in enumerate(shifts):
        acc = acc + jnp.dot(a[halo + d:halo + d + tm, :], w_ref[k],
                            preferred_element_type=jnp.float32)
    y_ref[...] = acc.astype(y_ref.dtype)
    om = msk[halo:halo + tm, :]
    masked = acc * om
    s = jnp.sum(masked, axis=0, keepdims=True)
    ss = jnp.sum(masked * acc, axis=0, keepdims=True)
    st_ref[...] = jnp.concatenate(
        [s, ss, jnp.zeros((6, c), jnp.float32)], axis=0)[None]


def _conv_gemm_kernel(p_ref, w_ref, y_ref, st_ref):
    """im2col GEMM tile (strided first conv only).  Tail rows are zero patches, so
    they contribute nothing to the stats - no mask needed."""
    c = y_ref.shape[-1]
    acc = jnp.dot(p_ref[...].astype(jnp.float32), w_ref[...],
                  preferred_element_type=jnp.float32)
    y_ref[...] = acc.astype(y_ref.dtype)
    s = jnp.sum(acc, axis=0, keepdims=True)
    ss = jnp.sum(acc * acc, axis=0, keepdims=True)
    st_ref[...] = jnp.concatenate(
        [s, ss, jnp.zeros((6, c), jnp.float32)], axis=0)[None]


def _post_kernel(y_ref, aff_ref, res_ref, o_ref, *, delta):
    """out = relu(bn2(y2)*delta + residual).  Border/tail rows are finite garbage and
    get sliced away in JAX afterwards, so no mask is needed here."""
    aff = aff_ref[...]
    z = y_ref[...].astype(jnp.float32) * aff[0:1, :] + aff[1:2, :]
    o_ref[...] = jnp.maximum(z * delta + res_ref[...], 0.0).astype(o_ref.dtype)


# ---------------------------------------------------------------------------
# Wrappers around pallas_call
# ---------------------------------------------------------------------------
def _conv1_shift(x_ext, w9, mask, wp, tm, halo, nt):
    mp = nt * tm
    cin = x_ext.shape[-1]
    c = w9.shape[-1]
    nb = mp // halo
    shifts = tuple((kh - 1) * wp + (kw - 1) for kh in range(3) for kw in range(3))
    xprev, xcur, xnext = _halo_specs(tm, halo, nb, cin)
    kernel = functools.partial(_conv1_shift_kernel, shifts=shifts, halo=halo)
    y, st = pl.pallas_call(
        kernel,
        out_shape=(jax.ShapeDtypeStruct((mp, c), jnp.bfloat16),
                   jax.ShapeDtypeStruct((nt, 8, c), jnp.float32)),
        grid=(nt,),
        in_specs=[xprev, xcur, xnext,
                  pl.BlockSpec((tm, 1), lambda i: (i, 0)),
                  pl.BlockSpec((9, cin, c), lambda i: (0, 0, 0))],
        out_specs=(pl.BlockSpec((tm, c), lambda i: (i, 0)),
                   pl.BlockSpec((1, 8, c), lambda i: (i, 0, 0))),
        compiler_params=_compiler_params(),
        cost_estimate=pl.CostEstimate(
            flops=2 * mp * 9 * cin * c, transcendentals=0,
            bytes_accessed=mp * cin * 2 + 9 * cin * c * 4 + mp * c * 2 + mp * 4),
    )(x_ext, x_ext, x_ext, mask, w9)
    return y, st


def _conv2_fused(y1, mask, aff1, w9, wp, tm, halo, nt, delta):
    mp = nt * tm
    cin = w9.shape[1]
    c = w9.shape[-1]
    nb = mp // halo
    shifts = tuple((kh - 1) * wp + (kw - 1) for kh in range(3) for kw in range(3))
    yprev, ycur, ynext = _halo_specs(tm, halo, nb, cin)
    mprev, mcur, mnext = _halo_specs(tm, halo, nb, 1)
    kernel = functools.partial(_fused_conv2_kernel, shifts=shifts, halo=halo,
                               delta=float(delta))
    y2, st = pl.pallas_call(
        kernel,
        out_shape=(jax.ShapeDtypeStruct((mp, c), jnp.bfloat16),
                   jax.ShapeDtypeStruct((nt, 8, c), jnp.float32)),
        grid=(nt,),
        in_specs=[yprev, ycur, ynext, mprev, mcur, mnext,
                  pl.BlockSpec((9, cin, c), lambda i: (0, 0, 0)),
                  pl.BlockSpec((8, c), lambda i: (0, 0))],
        out_specs=(pl.BlockSpec((tm, c), lambda i: (i, 0)),
                   pl.BlockSpec((1, 8, c), lambda i: (i, 0, 0))),
        compiler_params=_compiler_params(),
        cost_estimate=pl.CostEstimate(
            flops=2 * mp * 9 * cin * c, transcendentals=0,
            bytes_accessed=mp * cin * 2 + mp * 4 + 9 * cin * c * 4 + mp * c * 2),
    )(y1, y1, y1, mask, mask, mask, w9, aff1)
    return y2, st


def _conv_gemm(patches, w2d, tm, nt):
    mp = nt * tm
    m, k = patches.shape
    c = w2d.shape[-1]
    p = jnp.pad(patches, ((0, mp - m), (0, 0)))
    y, st = pl.pallas_call(
        _conv_gemm_kernel,
        out_shape=(jax.ShapeDtypeStruct((mp, c), jnp.bfloat16),
                   jax.ShapeDtypeStruct((nt, 8, c), jnp.float32)),
        grid=(nt,),
        in_specs=[pl.BlockSpec((tm, k), lambda i: (i, 0)),
                  pl.BlockSpec((k, c), lambda i: (0, 0))],
        out_specs=(pl.BlockSpec((tm, c), lambda i: (i, 0)),
                   pl.BlockSpec((1, 8, c), lambda i: (i, 0, 0))),
        compiler_params=_compiler_params(),
        cost_estimate=pl.CostEstimate(
            flops=2 * mp * k * c, transcendentals=0,
            bytes_accessed=mp * k * 2 + k * c * 4 + mp * c * 2),
    )(p, w2d)
    return y, st


def _bn2_post(y2, aff2, res, tm, nt, delta):
    mp, c = y2.shape
    kernel = functools.partial(_post_kernel, delta=float(delta))
    return pl.pallas_call(
        kernel,
        out_shape=jax.ShapeDtypeStruct((mp, c), jnp.float32),
        grid=(nt,),
        in_specs=[pl.BlockSpec((tm, c), lambda i: (i, 0)),
                  pl.BlockSpec((8, c), lambda i: (0, 0)),
                  pl.BlockSpec((tm, c), lambda i: (i, 0))],
        out_specs=pl.BlockSpec((tm, c), lambda i: (i, 0)),
        compiler_params=_compiler_params(),
    )(y2, aff2, res)


def _bn_affine(stats, count, gamma, beta):
    """Fold training-mode BN batch statistics (biased variance, E[x^2]-E[x]^2) into a
    per-channel scale/shift packed into an (8, C) block that stays VMEM-resident."""
    s = jnp.sum(stats[:, 0, :], axis=0)
    ss = jnp.sum(stats[:, 1, :], axis=0)
    mean = s / count
    var = jnp.maximum(ss / count - mean * mean, 0.0)
    scale = gamma * jax.lax.rsqrt(var + BN_EPS)
    shift = beta - mean * scale
    c = gamma.shape[0]
    return jnp.concatenate(
        [scale[None, :], shift[None, :], jnp.zeros((6, c), jnp.float32)], axis=0)


# ---------------------------------------------------------------------------
# JAX glue: im2col (strided conv only), shortcut, parameters, block forward
# ---------------------------------------------------------------------------
def _im2col(x_pad, stride, ho, wo):
    """3x3 patches of the spatially padded NHWC input (strided conv1 only; ~2.25x
    expansion at stride 2).  Stride-1 convs never materialize patches."""
    n, _, _, cin = x_pad.shape
    cols = []
    for kh in range(3):
        for kw in range(3):
            cols.append(x_pad[:, kh:kh + ho * stride:stride,
                              kw:kw + wo * stride:stride, :])
    return jnp.concatenate(cols, axis=-1).reshape(n * ho * wo, 9 * cin)


def _residual(x, in_planes, planes, stride, hp2, wp2, mp2):
    """PyTorch Shortcut (or identity), embedded on conv2's padded grid and flattened."""
    n = x.shape[0]
    if stride == 1 and in_planes == planes:
        sc = x
    else:
        p = planes // 4
        sc = jnp.pad(x[:, ::2, ::2, :], ((0, 0), (0, 0), (0, 0), (p, p)))
    sc = jnp.pad(sc, ((0, 0), (1, 1), (1, 1), (0, 0)))
    flat = sc.reshape(n * hp2 * wp2, sc.shape[-1])
    return jnp.pad(flat, ((0, mp2 - n * hp2 * wp2), (0, 0)))


def init_params(key, in_planes, planes, stride=1, delta=0.1):
    """Conv weights (true channel width, f32 - resident in VMEM) and BN affines."""
    k1, k2 = jax.random.split(key)

    def conv_w(k, cin):
        std = (2.0 / (9 * cin)) ** 0.5
        return jax.random.normal(k, (3, 3, cin, planes), jnp.float32) * std

    w1 = conv_w(k1, in_planes)
    w2 = conv_w(k2, planes)
    return dict(
        in_planes=in_planes, planes=planes, stride=stride, delta=float(delta),
        w1_shift=w1.reshape(9, in_planes, planes),
        w1_gemm=w1.reshape(9 * in_planes, planes),
        w2_shift=w2.reshape(9, planes, planes),
        gamma1=jnp.ones((planes,), jnp.float32),
        beta1=jnp.zeros((planes,), jnp.float32),
        gamma2=jnp.ones((planes,), jnp.float32),
        beta2=jnp.zeros((planes,), jnp.float32),
    )


def conv_norm_block_forward(params, x_nchw):
    """Forward pass of ConvNormBlock (BatchNorm in training mode, batch statistics)."""
    stride, delta = params["stride"], params["delta"]
    in_planes, planes = params["in_planes"], params["planes"]

    x = jnp.transpose(x_nchw, (0, 2, 3, 1)).astype(jnp.float32)       # NHWC
    n, h, w, _ = x.shape
    ho = (h + 2 - 3) // stride + 1
    wo = (w + 2 - 3) // stride + 1
    count = n * ho * wo                            # BN reduces over (N, H_out, W_out)

    hp2, wp2 = ho + 2, wo + 2                      # conv2's zero-padded grid
    m2 = n * hp2 * wp2
    tm, halo, nt = _plan_shift(m2, wp2)
    mp2 = nt * tm
    mask2 = _interior_mask(n, hp2, wp2, mp2)

    # ---- conv1 (+ BN1 stats) ----
    if stride == 1:
        # conv1 shares conv2's grid: its output lands directly on conv2's padded grid.
        x_ext = jnp.pad(x, ((0, 0), (1, 1), (1, 1), (0, 0))).astype(jnp.bfloat16)
        x_ext = jnp.pad(x_ext.reshape(m2, in_planes), ((0, mp2 - m2), (0, 0)))
        y1, st1 = _conv1_shift(x_ext, params["w1_shift"], mask2, wp2, tm, halo, nt)
    else:
        x_pad = jnp.pad(x, ((0, 0), (1, 1), (1, 1), (0, 0))).astype(jnp.bfloat16)
        patches = _im2col(x_pad, stride, ho, wo)
        tm1, nt1 = _plan_rows(n * ho * wo)
        y1g, st1 = _conv_gemm(patches, params["w1_gemm"], tm1, nt1)
        # Embed the (small) strided conv1 output on conv2's zero-padded grid.
        y1 = jnp.pad(y1g[:n * ho * wo].reshape(n, ho, wo, planes),
                     ((0, 0), (1, 1), (1, 1), (0, 0)))
        y1 = jnp.pad(y1.reshape(m2, planes), ((0, mp2 - m2), (0, 0)))
    aff1 = _bn_affine(st1, count, params["gamma1"], params["beta1"])

    # ---- conv2 with fused BN1-post (relu(bn1)*delta + border zeroing) ----
    y2, st2 = _conv2_fused(y1, mask2, aff1, params["w2_shift"],
                           wp2, tm, halo, nt, delta)
    aff2 = _bn_affine(st2, count, params["gamma2"], params["beta2"])

    # ---- BN2-post + residual + relu ----
    res = _residual(x, in_planes, planes, stride, hp2, wp2, mp2)      # f32 residual
    out = _bn2_post(y2, aff2, res, tm, nt, delta)
    out = out[:m2].reshape(n, hp2, wp2, planes)[:, 1:-1, 1:-1, :]
    return jnp.transpose(out, (0, 3, 1, 2))                           # back to NCHW


# ---------------------------------------------------------------------------
# Pure-JAX reference (validation only; mirrors the kernel's bf16 storage points)
# ---------------------------------------------------------------------------
def _reference_forward(params, x_nchw):
    stride, delta = params["stride"], params["delta"]
    in_planes, planes = params["in_planes"], params["planes"]
    w1 = params["w1_shift"].reshape(3, 3, in_planes, planes)
    w2 = params["w2_shift"].reshape(3, 3, planes, planes)
    g1, b1 = params["gamma1"], params["beta1"]
    g2, b2 = params["gamma2"], params["beta2"]

    def conv(v, wgt, s):
        return jax.lax.conv_general_dilated(
            v, wgt, window_strides=(s, s), padding=((1, 1), (1, 1)),
            dimension_numbers=("NHWC", "HWIO", "NHWC"),
            precision=jax.lax.Precision.HIGHEST)

    def bn_affine(v, g, b):
        mu = jnp.mean(v, axis=(0, 1, 2))
        var = jnp.maximum(jnp.mean(v * v, axis=(0, 1, 2)) - mu * mu, 0.0)
        scale = g * jax.lax.rsqrt(var + BN_EPS)
        return scale, b - mu * scale

    def q(v):                    # mirror bf16 HBM storage of intermediates
        return v.astype(jnp.bfloat16).astype(jnp.float32)

    x = jnp.transpose(x_nchw, (0, 2, 3, 1)).astype(jnp.float32)
    y1 = conv(q(x), w1, stride)
    s1, t1 = bn_affine(y1, g1, b1)
    a1 = jax.nn.relu(q(y1) * s1 + t1) * delta
    y2 = conv(a1, w2, 1)
    s2, t2 = bn_affine(y2, g2, b2)
    z = (q(y2) * s2 + t2) * delta
    if stride == 1 and in_planes == planes:
        sc = x
    else:
        p = planes // 4
        sc = jnp.pad(x[:, ::2, ::2, :], ((0, 0), (0, 0), (0, 0), (p, p)))
    return jnp.transpose(jax.nn.relu(z + sc), (0, 3, 1, 2))


if __name__ == "__main__":
    key = jax.random.PRNGKey(0)
    kx, kp_a, kp_b = jax.random.split(key, 3)
    x = jax.random.normal(kx, (2, 16, 16, 16), jnp.float32)           # NCHW input

    # Config A: downsampling block (stride=2, 16 -> 32 channels, Shortcut path).
    params_a = init_params(kp_a, in_planes=16, planes=32, stride=2, delta=0.1)
    out_a = jax.block_until_ready(
        jax.jit(functools.partial(conv_norm_block_forward, params_a))(x))
    assert out_a.shape == (2, 32, 8, 8) and out_a.dtype == jnp.float32
    ref_a = jax.block_until_ready(_reference_forward(params_a, x))
    err_a = float(jnp.max(jnp.abs(out_a - ref_a)))
    assert err_a < 1e-2, f"config A mismatch vs reference: {err_a}"

    # Config B: identity-shortcut block (stride=1, 16 -> 16 channels).
    params_b = init_params(kp_b, in_planes=16, planes=16, stride=1, delta=0.1)
    out_b = jax.block_until_ready(
        jax.jit(functools.partial(conv_norm_block_forward, params_b))(x))
    assert out_b.shape == (2, 16, 16, 16) and out_b.dtype == jnp.float32
    ref_b = jax.block_until_ready(_reference_forward(params_b, x))
    err_b = float(jnp.max(jnp.abs(out_b - ref_b)))
    assert err_b < 1e-2, f"config B mismatch vs reference: {err_b}"

    print("KERNEL_OK")
</pallas_src>

<mosaic_0001>
module attributes {stable_mosaic.version = 11 : i64} {
  func.func @_conv_gemm_kernel(%arg0: i32, %arg1: memref<64x144xbf16, #tpu.memory_space<vmem>>, %arg2: memref<144x32xf32, #tpu.memory_space<vmem>>, %arg3: memref<64x32xbf16, #tpu.memory_space<vmem>>, %arg4: memref<1x8x32xf32, #tpu.memory_space<vmem>>) attributes {dimension_semantics = [#tpu.dimension_semantics<parallel>], iteration_bounds = array<i64: 2>, scalar_prefetch = 0 : i64, scratch_operands = 0 : i64, tpu.core_type = #tpu.core_type<tc>, window_params = [{transform_indices = @transform_0, window_bounds = array<i64: 64, 144>}, {pipeline_mode = #tpu.pipeline_mode<synchronous>, transform_indices = @transform_1, window_bounds = array<i64: 144, 32>}, {transform_indices = @transform_2, window_bounds = array<i64: 64, 32>}, {transform_indices = @transform_3, window_bounds = array<i64: 1, 8, 32>}]} {
    %c0 = arith.constant 0 : index
    %c0_0 = arith.constant 0 : index
    %0 = vector.load %arg1[%c0, %c0_0] : memref<64x144xbf16, #tpu.memory_space<vmem>>, vector<64x144xbf16>
    %1 = arith.extf %0 : vector<64x144xbf16> to vector<64x144xf32>
    %c0_1 = arith.constant 0 : index
    %c0_2 = arith.constant 0 : index
    %2 = vector.load %arg2[%c0_1, %c0_2] : memref<144x32xf32, #tpu.memory_space<vmem>>, vector<144x32xf32>
    %cst = arith.constant dense<0.000000e+00> : vector<64x32xf32>
    %3 = tpu.matmul %1, %2, %cst {dimension_numbers = #tpu.dot_dimension_numbers<[1], [0], [0], [1], [0, 0, 1, 1], [], []>} : vector<64x144xf32>, vector<144x32xf32>, vector<64x32xf32> -> vector<64x32xf32>
    %4 = arith.truncf %3 : vector<64x32xf32> to vector<64x32xbf16>
    %c0_3 = arith.constant 0 : index
    %c0_4 = arith.constant 0 : index
    %5 = vector.load %arg3[%c0_3, %c0_4] : memref<64x32xbf16, #tpu.memory_space<vmem>>, vector<64x32xbf16>
    tpu.vector_store %arg3[%c0_3, %c0_4], %4 {strides = array<i32>} : memref<64x32xbf16, #tpu.memory_space<vmem>>, vector<64x32xbf16>,
    %cst_5 = arith.constant dense<0.000000e+00> : vector<32xf32>
    %6 = vector.multi_reduction <add>, %3, %cst_5 [0] : vector<64x32xf32> to vector<32xf32>
    %7 = vector.shape_cast %6 : vector<32xf32> to vector<1x32xf32>
    %8 = arith.mulf %3, %3 : vector<64x32xf32>
    %cst_6 = arith.constant dense<0.000000e+00> : vector<32xf32>
    %9 = vector.multi_reduction <add>, %8, %cst_6 [0] : vector<64x32xf32> to vector<32xf32>
    %10 = vector.shape_cast %9 : vector<32xf32> to vector<1x32xf32>
    %cst_7 = arith.constant 0.000000e+00 : f32
    %11 = vector.broadcast %cst_7 : f32 to vector<6x32xf32>
    %12 = tpu.concatenate %7, %10, %11 in 0 : vector<1x32xf32>, vector<1x32xf32>, vector<6x32xf32> -> vector<8x32xf32>
    %13 = vector.shape_cast %12 : vector<8x32xf32> to vector<1x8x32xf32>
    %c0_8 = arith.constant 0 : index
    %c0_9 = arith.constant 0 : index
    %c0_10 = arith.constant 0 : index
    %14 = vector.load %arg4[%c0_8, %c0_9, %c0_10] : memref<1x8x32xf32, #tpu.memory_space<vmem>>, vector<1x8x32xf32>
    tpu.vector_store %arg4[%c0_8, %c0_9, %c0_10], %13 {strides = array<i32>} : memref<1x8x32xf32, #tpu.memory_space<vmem>>, vector<1x8x32xf32>,
    return
  }
  func.func @transform_0(%arg0: i32) -> (i32, i32) {
    %c0_i32 = arith.constant 0 : i32
    %c0_i32_0 = arith.constant 0 : i32
    return %arg0, %c0_i32 : i32, i32
  }
  func.func @transform_1(%arg0: i32) -> (i32, i32) {
    %c0_i32 = arith.constant 0 : i32
    %c0_i32_0 = arith.constant 0 : i32
    %c0_i32_1 = arith.constant 0 : i32
    return %c0_i32, %c0_i32_0 : i32, i32
  }
  func.func @transform_2(%arg0: i32) -> (i32, i32) {
    %c0_i32 = arith.constant 0 : i32
    %c0_i32_0 = arith.constant 0 : i32
    return %arg0, %c0_i32 : i32, i32
  }
  func.func @transform_3(%arg0: i32) -> (i32, i32, i32) {
    %c0_i32 = arith.constant 0 : i32
    %c0_i32_0 = arith.constant 0 : i32
    %c0_i32_1 = arith.constant 0 : i32
    return %arg0, %c0_i32, %c0_i32_0 : i32, i32, i32
  }
}

module attributes {stable_mosaic.version = 11 : i64} {
  func.func @_post_kernel(%arg0: i32, %arg1: memref<112x32xbf16, #tpu.memory_space<vmem>>, %arg2: memref<8x32xf32, #tpu.memory_space<vmem>>, %arg3: memref<112x32xf32, #tpu.memory_space<vmem>>, %arg4: memref<112x32xf32, #tpu.memory_space<vmem>>) attributes {dimension_semantics = [#tpu.dimension_semantics<parallel>], iteration_bounds = array<i64: 2>, scalar_prefetch = 0 : i64, scratch_operands = 0 : i64, tpu.core_type = #tpu.core_type<tc>, window_params = [{transform_indices = @transform_0, window_bounds = array<i64: 112, 32>}, {pipeline_mode = #tpu.pipeline_mode<synchronous>, transform_indices = @transform_1, window_bounds = array<i64: 8, 32>}, {transform_indices = @transform_2, window_bounds = array<i64: 112, 32>}, {transform_indices = @transform_3, window_bounds = array<i64: 112, 32>}]} {
    %c0 = arith.constant 0 : index
    %c0_0 = arith.constant 0 : index
    %0 = vector.load %arg2[%c0, %c0_0] : memref<8x32xf32, #tpu.memory_space<vmem>>, vector<8x32xf32>
    %c0_1 = arith.constant 0 : index
    %c0_2 = arith.constant 0 : index
    %1 = vector.load %arg1[%c0_1, %c0_2] : memref<112x32xbf16, #tpu.memory_space<vmem>>, vector<112x32xbf16>
    %2 = arith.extf %1 : vector<112x32xbf16> to vector<112x32xf32>
    %3 = vector.extract_strided_slice %0 {offsets = [0, 0], sizes = [1, 32], strides = [1, 1]} : vector<8x32xf32> to vector<1x32xf32>
    %4 = vector.broadcast %3 : vector<1x32xf32> to vector<112x32xf32>
    %5 = arith.mulf %2, %4 : vector<112x32xf32>
    %6 = vector.extract_strided_slice %0 {offsets = [1, 0], sizes = [1, 32], strides = [1, 1]} : vector<8x32xf32> to vector<1x32xf32>
    %7 = vector.broadcast %6 : vector<1x32xf32> to vector<112x32xf32>
    %8 = arith.addf %5, %7 : vector<112x32xf32>
    %cst = arith.constant 1.000000e-01 : f32
    %9 = vector.broadcast %cst : f32 to vector<112x32xf32>
    %10 = arith.mulf %8, %9 : vector<112x32xf32>
    %c0_3 = arith.constant 0 : index
    %c0_4 = arith.constant 0 : index
    %11 = vector.load %arg3[%c0_3, %c0_4] : memref<112x32xf32, #tpu.memory_space<vmem>>, vector<112x32xf32>
    %12 = arith.addf %10, %11 : vector<112x32xf32>
    %cst_5 = arith.constant 0.000000e+00 : f32
    %13 = vector.broadcast %cst_5 : f32 to vector<112x32xf32>
    %14 = arith.maximumf %12, %13 : vector<112x32xf32>
    %c0_6 = arith.constant 0 : index
    %c0_7 = arith.constant 0 : index
    %15 = vector.load %arg4[%c0_6, %c0_7] : memref<112x32xf32, #tpu.memory_space<vmem>>, vector<112x32xf32>
    tpu.vector_store %arg4[%c0_6, %c0_7], %14 {strides = array<i32>} : memref<112x32xf32, #tpu.memory_space<vmem>>, vector<112x32xf32>,
    return
  }
  func.func @transform_0(%arg0: i32) -> (i32, i32) {
    %c0_i32 = arith.constant 0 : i32
    %c0_i32_0 = arith.constant 0 : i32
    return %arg0, %c0_i32 : i32, i32
  }
  func.func @transform_1(%arg0: i32) -> (i32, i32) {
    %c0_i32 = arith.constant 0 : i32
    %c0_i32_0 = arith.constant 0 : i32
    %c0_i32_1 = arith.constant 0 : i32
    return %c0_i32, %c0_i32_0 : i32, i32
  }
  func.func @transform_2(%arg0: i32) -> (i32, i32) {
    %c0_i32 = arith.constant 0 : i32
    %c0_i32_0 = arith.constant 0 : i32
    return %arg0, %c0_i32 : i32, i32
  }
  func.func @transform_3(%arg0: i32) -> (i32, i32) {
    %c0_i32 = arith.constant 0 : i32
    %c0_i32_0 = arith.constant 0 : i32
    return %arg0, %c0_i32 : i32, i32
  }
}

module attributes {stable_mosaic.version = 11 : i64} {
  func.func @_fused_conv2_kernel(%arg0: i32, %arg1: memref<16x32xbf16, #tpu.memory_space<vmem>>, %arg2: memref<112x32xbf16, #tpu.memory_space<vmem>>, %arg3: memref<16x32xbf16, #tpu.memory_space<vmem>>, %arg4: memref<16x1xf32, #tpu.memory_space<vmem>>, %arg5: memref<112x1xf32, #tpu.memory_space<vmem>>, %arg6: memref<16x1xf32, #tpu.memory_space<vmem>>, %arg7: memref<9x32x32xf32, #tpu.memory_space<vmem>>, %arg8: memref<8x32xf32, #tpu.memory_space<vmem>>, %arg9: memref<112x32xbf16, #tpu.memory_space<vmem>>, %arg10: memref<1x8x32xf32, #tpu.memory_space<vmem>>) attributes {dimension_semantics = [#tpu.dimension_semantics<parallel>], iteration_bounds = array<i64: 2>, scalar_prefetch = 0 : i64, scratch_operands = 0 : i64, tpu.core_type = #tpu.core_type<tc>, window_params = [{transform_indices = @transform_0, window_bounds = array<i64: 16, 32>}, {transform_indices = @transform_1, window_bounds = array<i64: 112, 32>}, {transform_indices = @transform_2, window_bounds = array<i64: 16, 32>}, {transform_indices = @transform_3, window_bounds = array<i64: 16, 1>}, {transform_indices = @transform_4, window_bounds = array<i64: 112, 1>}, {transform_indices = @transform_5, window_bounds = array<i64: 16, 1>}, {pipeline_mode = #tpu.pipeline_mode<synchronous>, transform_indices = @transform_6, window_bounds = array<i64: 9, 32, 32>}, {pipeline_mode = #tpu.pipeline_mode<synchronous>, transform_indices = @transform_7, window_bounds = array<i64: 8, 32>}, {transform_indices = @transform_8, window_bounds = array<i64: 112, 32>}, {transform_indices = @transform_9, window_bounds = array<i64: 1, 8, 32>}]} {
    %c0 = arith.constant 0 : index
    %c0_0 = arith.constant 0 : index
    %0 = vector.load %arg1[%c0, %c0_0] : memref<16x32xbf16, #tpu.memory_space<vmem>>, vector<16x32xbf16>
    %c0_1 = arith.constant 0 : index
    %c0_2 = arith.constant 0 : index
    %1 = vector.load %arg2[%c0_1, %c0_2] : memref<112x32xbf16, #tpu.memory_space<vmem>>, vector<112x32xbf16>
    %c0_3 = arith.constant 0 : index
    %c0_4 = arith.constant 0 : index
    %2 = vector.load %arg3[%c0_3, %c0_4] : memref<16x32xbf16, #tpu.memory_space<vmem>>, vector<16x32xbf16>
    %3 = tpu.concatenate %0, %1, %2 in 0 : vector<16x32xbf16>, vector<112x32xbf16>, vector<16x32xbf16> -> vector<144x32xbf16>
    %4 = arith.extf %3 : vector<144x32xbf16> to vector<144x32xf32>
    %c0_5 = arith.constant 0 : index
    %c0_6 = arith.constant 0 : index
    %5 = vector.load %arg4[%c0_5, %c0_6] : memref<16x1xf32, #tpu.memory_space<vmem>>, vector<16x1xf32>
    %c0_7 = arith.constant 0 : index
    %c0_8 = arith.constant 0 : index
    %6 = vector.load %arg5[%c0_7, %c0_8] : memref<112x1xf32, #tpu.memory_space<vmem>>, vector<112x1xf32>
    %c0_9 = arith.constant 0 : index
    %c0_10 = arith.constant 0 : index
    %7 = vector.load %arg6[%c0_9, %c0_10] : memref<16x1xf32, #tpu.memory_space<vmem>>, vector<16x1xf32>
    %8 = tpu.concatenate %5, %6, %7 in 0 : vector<16x1xf32>, vector<112x1xf32>, vector<16x1xf32> -> vector<144x1xf32>
    %c0_11 = arith.constant 0 : index
    %c0_12 = arith.constant 0 : index
    %9 = vector.load %arg8[%c0_11, %c0_12] : memref<8x32xf32, #tpu.memory_space<vmem>>, vector<8x32xf32>
    %10 = vector.extract_strided_slice %9 {offsets = [0, 0], sizes = [1, 32], strides = [1, 1]} : vector<8x32xf32> to vector<1x32xf32>
    %11 = vector.broadcast %10 : vector<1x32xf32> to vector<144x32xf32>
    %12 = arith.mulf %4, %11 : vector<144x32xf32>
    %13 = vector.extract_strided_slice %9 {offsets = [1, 0], sizes = [1, 32], strides = [1, 1]} : vector<8x32xf32> to vector<1x32xf32>
    %14 = vector.broadcast %13 : vector<1x32xf32> to vector<144x32xf32>
    %15 = arith.addf %12, %14 : vector<144x32xf32>
    %cst = arith.constant 0.000000e+00 : f32
    %16 = vector.broadcast %cst : f32 to vector<144x32xf32>
    %17 = arith.maximumf %15, %16 : vector<144x32xf32>
    %cst_13 = arith.constant 1.000000e-01 : f32
    %18 = vector.broadcast %cst_13 : f32 to vector<144x32xf32>
    %19 = arith.mulf %17, %18 : vector<144x32xf32>
    %cst_14 = arith.constant 0.000000e+00 : f32
    %20 = vector.broadcast %cst_14 : f32 to vector<144x1xf32>
    %21 = arith.cmpf ogt, %8, %20 : vector<144x1xf32>
    %cst_15 = arith.constant 0.000000e+00 : f32
    %22 = vector.shape_cast %21 : vector<144x1xi1> to vector<144x1xi1>
    %23 = vector.broadcast %22 : vector<144x1xi1> to vector<144x32xi1>
    %24 = vector.broadcast %cst_15 : f32 to vector<144x32xf32>
    %25 = arith.select %23, %19, %24 : vector<144x32xi1>, vector<144x32xf32>
    %cst_16 = arith.constant 0.000000e+00 : f32
    %26 = vector.broadcast %cst_16 : f32 to vector<112x32xf32>
    %27 = vector.extract_strided_slice %25 {offsets = [5, 0], sizes = [112, 32], strides = [1, 1]} : vector<144x32xf32> to vector<112x32xf32>
    %c0_17 = arith.constant 0 : index
    %c0_18 = arith.constant 0 : index
    %c0_19 = arith.constant 0 : index
    %28 = vector.load %arg7[%c0_17, %c0_18, %c0_19] : memref<9x32x32xf32, #tpu.memory_space<vmem>>, vector<1x32x32xf32>
    %29 = vector.shape_cast %28 : vector<1x32x32xf32> to vector<32x32xf32>
    %cst_20 = arith.constant dense<0.000000e+00> : vector<112x32xf32>
    %30 = tpu.matmul %27, %29, %cst_20 {dimension_numbers = #tpu.dot_dimension_numbers<[1], [0], [0], [1], [0, 0, 1, 1], [], []>} : vector<112x32xf32>, vector<32x32xf32>, vector<112x32xf32> -> vector<112x32xf32>
    %31 = arith.addf %26, %30 : vector<112x32xf32>
    %32 = vector.extract_strided_slice %25 {offsets = [6, 0], sizes = [112, 32], strides = [1, 1]} : vector<144x32xf32> to vector<112x32xf32>
    %c1 = arith.constant 1 : index
    %c0_21 = arith.constant 0 : index
    %c0_22 = arith.constant 0 : index
    %33 = vector.load %arg7[%c1, %c0_21, %c0_22] : memref<9x32x32xf32, #tpu.memory_space<vmem>>, vector<1x32x32xf32>
    %34 = vector.shape_cast %33 : vector<1x32x32xf32> to vector<32x32xf32>
    %cst_23 = arith.constant dense<0.000000e+00> : vector<112x32xf32>
    %35 = tpu.matmul %32, %34, %cst_23 {dimension_numbers = #tpu.dot_dimension_numbers<[1], [0], [0], [1], [0, 0, 1, 1], [], []>} : vector<112x32xf32>, vector<32x32xf32>, vector<112x32xf32> -> vector<112x32xf32>
    %36 = arith.addf %31, %35 : vector<112x32xf32>
    %37 = vector.extract_strided_slice %25 {offsets = [7, 0], sizes = [112, 32], strides = [1, 1]} : vector<144x32xf32> to vector<112x32xf32>
    %c2 = arith.constant 2 : index
    %c0_24 = arith.constant 0 : index
    %c0_25 = arith.constant 0 : index
    %38 = vector.load %arg7[%c2, %c0_24, %c0_25] : memref<9x32x32xf32, #tpu.memory_space<vmem>>, vector<1x32x32xf32>
    %39 = vector.shape_cast %38 : vector<1x32x32xf32> to vector<32x32xf32>
    %cst_26 = arith.constant dense<0.000000e+00> : vector<112x32xf32>
    %40 = tpu.matmul %37, %39, %cst_26 {dimension_numbers = #tpu.dot_dimension_numbers<[1], [0], [0], [1], [0, 0, 1, 1], [], []>} : vector<112x32xf32>, vector<32x32xf32>, vector<112x32xf32> -> vector<112x32xf32>
    %41 = arith.addf %36, %40 : vector<112x32xf32>
    %42 = vector.extract_strided_slice %25 {offsets = [15, 0], sizes = [112, 32], strides = [1, 1]} : vector<144x32xf32> to vector<112x32xf32>
    %c3 = arith.constant 3 : index
    %c0_27 = arith.constant 0 : index
    %c0_28 = arith.constant 0 : index
    %43 = vector.load %arg7[%c3, %c0_27, %c0_28] : memref<9x32x32xf32, #tpu.memory_space<vmem>>, vector<1x32x32xf32>
    %44 = vector.shape_cast %43 : vector<1x32x32xf32> to vector<32x32xf32>
    %cst_29 = arith.constant dense<0.000000e+00> : vector<112x32xf32>
    %45 = tpu.matmul %42, %44, %cst_29 {dimension_numbers = #tpu.dot_dimension_numbers<[1], [0], [0], [1], [0, 0, 1, 1], [], []>} : vector<112x32xf32>, vector<32x32xf32>, vector<112x32xf32> -> vector<112x32xf32>
    %46 = arith.addf %41, %45 : vector<112x32xf32>
    %47 = vector.extract_strided_slice %25 {offsets = [16, 0], sizes = [112, 32], strides = [1, 1]} : vector<144x32xf32> to vector<112x32xf32>
    %c4 = arith.constant 4 : index
    %c0_30 = arith.constant 0 : index
    %c0_31 = arith.constant 0 : index
    %48 = vector.load %arg7[%c4, %c0_30, %c0_31] : memref<9x32x32xf32, #tpu.memory_space<vmem>>, vector<1x32x32xf32>
    %49 = vector.shape_cast %48 : vector<1x32x32xf32> to vector<32x32xf32>
    %cst_32 = arith.constant dense<0.000000e+00> : vector<112x32xf32>
    %50 = tpu.matmul %47, %49, %cst_32 {dimension_numbers = #tpu.dot_dimension_numbers<[1], [0], [0], [1], [0, 0, 1, 1], [], []>} : vector<112x32xf32>, vector<32x32xf32>, vector<112x32xf32> -> vector<112x32xf32>
    %51 = arith.addf %46, %50 : vector<112x32xf32>
    %52 = vector.extract_strided_slice %25 {offsets = [17, 0], sizes = [112, 32], strides = [1, 1]} : vector<144x32xf32> to vector<112x32xf32>
    %c5 = arith.constant 5 : index
    %c0_33 = arith.constant 0 : index
    %c0_34 = arith.constant 0 : index
    %53 = vector.load %arg7[%c5, %c0_33, %c0_34] : memref<9x32x32xf32, #tpu.memory_space<vmem>>, vector<1x32x32xf32>
    %54 = vector.shape_cast %53 : vector<1x32x32xf32> to vector<32x32xf32>
    %cst_35 = arith.constant dense<0.000000e+00> : vector<112x32xf32>
    %55 = tpu.matmul %52, %54, %cst_35 {dimension_numbers = #tpu.dot_dimension_numbers<[1], [0], [0], [1], [0, 0, 1, 1], [], []>} : vector<112x32xf32>, vector<32x32xf32>, vector<112x32xf32> -> vector<112x32xf32>
    %56 = arith.addf %51, %55 : vector<112x32xf32>
    %57 = vector.extract_strided_slice %25 {offsets = [25, 0], sizes = [112, 32], strides = [1, 1]} : vector<144x32xf32> to vector<112x32xf32>
    %c6 = arith.constant 6 : index
    %c0_36 = arith.constant 0 : index
    %c0_37 = arith.constant 0 : index
    %58 = vector.load %arg7[%c6, %c0_36, %c0_37] : memref<9x32x32xf32, #tpu.memory_space<vmem>>, vector<1x32x32xf32>
    %59 = vector.shape_cast %58 : vector<1x32x32xf32> to vector<32x32xf32>
    %cst_38 = arith.constant dense<0.000000e+00> : vector<112x32xf32>
    %60 = tpu.matmul %57, %59, %cst_38 {dimension_numbers = #tpu.dot_dimension_numbers<[1], [0], [0], [1], [0, 0, 1, 1], [], []>} : vector<112x32xf32>, vector<32x32xf32>, vector<112x32xf32> -> vector<112x32xf32>
    %61 = arith.addf %56, %60 : vector<112x32xf32>
    %62 = vector.extract_strided_slice %25 {offsets = [26, 0], sizes = [112, 32], strides = [1, 1]} : vector<144x32xf32> to vector<112x32xf32>
    %c7 = arith.constant 7 : index
    %c0_39 = arith.constant 0 : index
    %c0_40 = arith.constant 0 : index
    %63 = vector.load %arg7[%c7, %c0_39, %c0_40] : memref<9x32x32xf32, #tpu.memory_space<vmem>>, vector<1x32x32xf32>
    %64 = vector.shape_cast %63 : vector<1x32x32xf32> to vector<32x32xf32>
    %cst_41 = arith.constant dense<0.000000e+00> : vector<112x32xf32>
    %65 = tpu.matmul %62, %64, %cst_41 {dimension_numbers = #tpu.dot_dimension_numbers<[1], [0], [0], [1], [0, 0, 1, 1], [], []>} : vector<112x32xf32>, vector<32x32xf32>, vector<112x32xf32> -> vector<112x32xf32>
    %66 = arith.addf %61, %65 : vector<112x32xf32>
    %67 = vector.extract_strided_slice %25 {offsets = [27, 0], sizes = [112, 32], strides = [1, 1]} : vector<144x32xf32> to vector<112x32xf32>
    %c8 = arith.constant 8 : index
    %c0_42 = arith.constant 0 : index
    %c0_43 = arith.constant 0 : index
    %68 = vector.load %arg7[%c8, %c0_42, %c0_43] : memref<9x32x32xf32, #tpu.memory_space<vmem>>, vector<1x32x32xf32>
    %69 = vector.shape_cast %68 : vector<1x32x32xf32> to vector<32x32xf32>
    %cst_44 = arith.constant dense<0.000000e+00> : vector<112x32xf32>
    %70 = tpu.matmul %67, %69, %cst_44 {dimension_numbers = #tpu.dot_dimension_numbers<[1], [0], [0], [1], [0, 0, 1, 1], [], []>} : vector<112x32xf32>, vector<32x32xf32>, vector<112x32xf32> -> vector<112x32xf32>
    %71 = arith.addf %66, %70 : vector<112x32xf32>
    %72 = arith.truncf %71 : vector<112x32xf32> to vector<112x32xbf16>
    %c0_45 = arith.constant 0 : index
    %c0_46 = arith.constant 0 : index
    %73 = vector.load %arg9[%c0_45, %c0_46] : memref<112x32xbf16, #tpu.memory_space<vmem>>, vector<112x32xbf16>
    tpu.vector_store %arg9[%c0_45, %c0_46], %72 {strides = array<i32>} : memref<112x32xbf16, #tpu.memory_space<vmem>>, vector<112x32xbf16>,
    %74 = vector.extract_strided_slice %8 {offsets = [16, 0], sizes = [112, 1], strides = [1, 1]} : vector<144x1xf32> to vector<112x1xf32>
    %75 = vector.broadcast %74 : vector<112x1xf32> to vector<112x32xf32>
    %76 = arith.mulf %71, %75 : vector<112x32xf32>
    %cst_47 = arith.constant dense<0.000000e+00> : vector<32xf32>
    %77 = vector.multi_reduction <add>, %76, %cst_47 [0] : vector<112x32xf32> to vector<32xf32>
    %78 = vector.shape_cast %77 : vector<32xf32> to vector<1x32xf32>
    %79 = arith.mulf %76, %71 : vector<112x32xf32>
    %cst_48 = arith.constant dense<0.000000e+00> : vector<32xf32>
    %80 = vector.multi_reduction <add>, %79, %cst_48 [0] : vector<112x32xf32> to vector<32xf32>
    %81 = vector.shape_cast %80 : vector<32xf32> to vector<1x32xf32>
    %cst_49 = arith.constant 0.000000e+00 : f32
    %82 = vector.broadcast %cst_49 : f32 to vector<6x32xf32>
    %83 = tpu.concatenate %78, %81, %82 in 0 : vector<1x32xf32>, vector<1x32xf32>, vector<6x32xf32> -> vector<8x32xf32>
    %84 = vector.shape_cast %83 : vector<8x32xf32> to vector<1x8x32xf32>
    %c0_50 = arith.constant 0 : index
    %c0_51 = arith.constant 0 : index
    %c0_52 = arith.constant 0 : index
    %85 = vector.load %arg10[%c0_50, %c0_51, %c0_52] : memref<1x8x32xf32, #tpu.memory_space<vmem>>, vector<1x8x32xf32>
    tpu.vector_store %arg10[%c0_50, %c0_51, %c0_52], %84 {strides = array<i32>} : memref<1x8x32xf32, #tpu.memory_space<vmem>>, vector<1x8x32xf32>,
    return
  }
  func.func @transform_0(%arg0: i32) -> (i32, i32) {
    %c7_i32 = arith.constant 7 : i32
    %0 = arith.muli %arg0, %c7_i32 : i32
    %c1_i32 = arith.constant 1 : i32
    %1 = arith.subi %0, %c1_i32 : i32
    %c0_i32 = arith.constant 0 : i32
    %2 = arith.maxsi %1, %c0_i32 : i32
    %c0_i32_0 = arith.constant 0 : i32
    %c0_i32_1 = arith.constant 0 : i32
    return %2, %c0_i32_0 : i32, i32
  }
  func.func @transform_1(%arg0: i32) -> (i32, i32) {
    %c0_i32 = arith.constant 0 : i32
    %c0_i32_0 = arith.constant 0 : i32
    return %arg0, %c0_i32 : i32, i32
  }
  func.func @transform_2(%arg0: i32) -> (i32, i32) {
    %c1_i32 = arith.constant 1 : i32
    %0 = arith.addi %arg0, %c1_i32 : i32
    %c7_i32 = arith.constant 7 : i32
    %1 = arith.muli %0, %c7_i32 : i32
    %c13_i32 = arith.constant 13 : i32
    %2 = arith.minsi %1, %c13_i32 : i32
    %c0_i32 = arith.constant 0 : i32
    %c0_i32_0 = arith.constant 0 : i32
    return %2, %c0_i32 : i32, i32
  }
  func.func @transform_3(%arg0: i32) -> (i32, i32) {
    %c7_i32 = arith.constant 7 : i32
    %0 = arith.muli %arg0, %c7_i32 : i32
    %c1_i32 = arith.constant 1 : i32
    %1 = arith.subi %0, %c1_i32 : i32
    %c0_i32 = arith.constant 0 : i32
    %2 = arith.maxsi %1, %c0_i32 : i32
    %c0_i32_0 = arith.constant 0 : i32
    %c0_i32_1 = arith.constant 0 : i32
    return %2, %c0_i32_0 : i32, i32
  }
  func.func @transform_4(%arg0: i32) -> (i32, i32) {
    %c0_i32 = arith.constant 0 : i32
    %c0_i32_0 = arith.constant 0 : i32
    return %arg0, %c0_i32 : i32, i32
  }
  func.func @transform_5(%arg0: i32) -> (i32, i32) {
    %c1_i32 = arith.constant 1 : i32
    %0 = arith.addi %arg0, %c1_i32 : i32
    %c7_i32 = arith.constant 7 : i32
    %1 = arith.muli %0, %c7_i32 : i32
    %c13_i32 = arith.constant 13 : i32
    %2 = arith.minsi %1, %c13_i32 : i32
    %c0_i32 = arith.constant 0 : i32
    %c0_i32_0 = arith.constant 0 : i32
    return %2, %c0_i32 : i32, i32
  }
  func.func @transform_6(%arg0: i32) -> (i32, i32, i32) {
    %c0_i32 = arith.constant 0 : i32
    %c0_i32_0 = arith.constant 0 : i32
    %c0_i32_1 = arith.constant 0 : i32
    %c0_i32_2 = arith.constant 0 : i32
    return %c0_i32, %c0_i32_0, %c0_i32_1 : i32, i32, i32
  }
  func.func @transform_7(%arg0: i32) -> (i32, i32) {
    %c0_i32 = arith.constant 0 : i32
    %c0_i32_0 = arith.constant 0 : i32
    %c0_i32_1 = arith.constant 0 : i32
    return %c0_i32, %c0_i32_0 : i32, i32
  }
  func.func @transform_8(%arg0: i32) -> (i32, i32) {
    %c0_i32 = arith.constant 0 : i32
    %c0_i32_0 = arith.constant 0 : i32
    return %arg0, %c0_i32 : i32, i32
  }
  func.func @transform_9(%arg0: i32) -> (i32, i32, i32) {
    %c0_i32 = arith.constant 0 : i32
    %c0_i32_0 = arith.constant 0 : i32
    %c0_i32_1 = arith.constant 0 : i32
    return %arg0, %c0_i32, %c0_i32_0 : i32, i32, i32
  }
}

</mosaic_0001>

<llo_original>
// kernel: conv_norm_block_forward.3
$region0: #{conv_norm_block_forward.3}
  #allocation0 [shape = 'u32[]', space=smem, size = 0x4, offset = 0x4, fixed_abs, tag = 'smem constant byte address 0x4 - core index']
  #allocation1 [shape = 'u32[72,128]{1,0:T(1,128)}', space=vmem, size = 0x9000, scoped, tag = 'internal scratch']
  %s0 = inlined_call_operand.vmem [shape: bf16[128,144], index: 0, kind: input, shape index: {}]
  %s1 = inlined_call_operand.vmem [shape: f32[144,32], index: 1, kind: input, shape index: {}]
  %s2 = inlined_call_operand.vmem [shape: bf16[128,32], index: 2, kind: output, shape index: {0}]
  %s3 = inlined_call_operand.vmem [shape: f32[2,8,32], index: 3, kind: output, shape index: {1}]
  %4 = xla_tuple %s2, %s3
  %s5 = sld [smem:[#allocation0]]
  $region49: #{conv_norm_block_forward.3} parent=0
    _
  %s7 = ssub.s32 1, %s5
  %s8 = scalar_select 0, %s7, %s5
  loop: start=0, step=1, limit=4
  $region2: #{conv_norm_block_forward.3} parent=0 // loop_pre_header
    _
  $region3: #{conv_norm_block_forward.3} parent=0 // loop_header
    %s10 = sphi 0, %s14
    %p11 = scmp.ge.s32.totalorder %s10, 4
    %s20 = sphi 0, %s22
    %s23 = sphi 0, %s20
    %s24 = sphi 0, %s23
    %s40 = sphi 0, %s24
    %s44 = sphi 0, %s44
    %s46 = sphi 0, %s44
    %s47 = sphi 0, %s46
    %s61 = sphi 0, %s47
    %s67 = sphi 0, %s69
    %s70 = sphi 0, %s67
    %s71 = sphi 0, %s70
    %s87 = sphi 0, %s71
    %s93 = sphi 0, %s95
    %s96 = sphi 0, %s93
    %s97 = sphi 0, %s96
    %s113 = sphi 0, %s97
  $region4: #{conv_norm_block_forward.3} parent=0 // loop_header_branch
    %13 = sbr.rel (%p11) target = $region8
  $region5: #{conv_norm_block_forward.3} parent=0 // loop_body
    %s15 = ssub.s32 %s10, 1
    %s16 = ssub.s32 %s10, 2
    %s17 = sadd.s32 %s10, 1
    %s18 = ssub.s32 %s10, %s17
    %p19 = scmp.eq.s32.totalorder %s18, 0
    %s21 = sadd.s32 %s20, 1
    %s22 = scalar_select %p19, %s20, %s21
    %p25 = pneg %p19
    %p26 = scmp.eq.s32.totalorder %s10, 1
    %p27 = por %p25, %p26
    %p28 = scmp.ne.s32.totalorder %s20, %s23
    %p29 = scmp.eq.s32.totalorder %s10, 0
    %p30 = por %p28, %p29
    %p31 = scmp.ne.s32.totalorder %s20, %s23
    %p32 = scmp.eq.s32.totalorder %s15, 1
    %p33 = por %p31, %p32
    %p34 = scmp.ne.s32.totalorder %s23, %s24
    %p35 = scmp.eq.s32.totalorder %s15, 0
    %p36 = por %p34, %p35
    %p37 = scmp.ne.s32.totalorder %s23, %s24
    %p38 = scmp.eq.s32.totalorder %s16, 1
    %p39 = por %p37, %p38
    %p41 = scmp.ne.s32.totalorder %s24, %s40
    %p42 = scmp.eq.s32.totalorder %s16, 0
    %p43 = por %p41, %p42
    %s45 = sadd.s32 %s44, 1
    %p48 = scmp.eq.s32.totalorder %s10, 1
    %p49 = scmp.ne.s32.totalorder %s44, %s46
    %p50 = scmp.eq.s32.totalorder %s10, 0
    %p51 = por %p49, %p50
    %p52 = scmp.ne.s32.totalorder %s44, %s46
    %p53 = scmp.eq.s32.totalorder %s15, 1
    %p54 = por %p52, %p53
    %p55 = scmp.ne.s32.totalorder %s46, %s47
    %p56 = scmp.eq.s32.totalorder %s15, 0
    %p57 = por %p55, %p56
    %p58 = scmp.ne.s32.totalorder %s46, %s47
    %p59 = scmp.eq.s32.totalorder %s16, 1
    %p60 = por %p58, %p59
    %p62 = scmp.ne.s32.totalorder %s47, %s61
    %p63 = scmp.eq.s32.totalorder %s16, 0
    %p64 = por %p62, %p63
    %s65 = ssub.s32 %s10, %s17
    %p66 = scmp.eq.s32.totalorder %s65, 0
    %s68 = sadd.s32 %s67, 1
    %s69 = scalar_select %p66, %s67, %s68
    %p72 = pneg %p66
    %p73 = scmp.eq.s32.totalorder %s10, 1
    %p74 = por %p72, %p73
    %p75 = scmp.ne.s32.totalorder %s67, %s70
    %p76 = scmp.eq.s32.totalorder %s10, 0
    %p77 = por %p75, %p76
    %p78 = scmp.ne.s32.totalorder %s67, %s70
    %p79 = scmp.eq.s32.totalorder %s15, 1
    %p80 = por %p78, %p79
    %p81 = scmp.ne.s32.totalorder %s70, %s71
    %p82 = scmp.eq.s32.totalorder %s15, 0
    %p83 = por %p81, %p82
    %p84 = scmp.ne.s32.totalorder %s70, %s71
    %p85 = scmp.eq.s32.totalorder %s16, 1
    %p86 = por %p84, %p85
    %p88 = scmp.ne.s32.totalorder %s71, %s87
    %p89 = scmp.eq.s32.totalorder %s16, 0
    %p90 = por %p88, %p89
    %s91 = ssub.s32 %s10, %s17
    %p92 = scmp.eq.s32.totalorder %s91, 0
    %s94 = sadd.s32 %s93, 1
    %s95 = scalar_select %p92, %s93, %s94
    %p98 = pneg %p92
    %p99 = scmp.eq.s32.totalorder %s10, 1
    %p100 = por %p98, %p99
    %p101 = scmp.ne.s32.totalorder %s93, %s96
    %p102 = scmp.eq.s32.totalorder %s10, 0
    %p103 = por %p101, %p102
    %p104 = scmp.ne.s32.totalorder %s93, %s96
    %p105 = scmp.eq.s32.totalorder %s15, 1
    %p106 = por %p104, %p105
    %p107 = scmp.ne.s32.totalorder %s96, %s97
    %p108 = scmp.eq.s32.totalorder %s15, 0
    %p109 = por %p107, %p108
    %p110 = scmp.ne.s32.totalorder %s96, %s97
    %p111 = scmp.eq.s32.totalorder %s16, 1
    %p112 = por %p110, %p111
    %p114 = scmp.ne.s32.totalorder %s97, %s113
    %p115 = scmp.eq.s32.totalorder %s16, 0
    %p116 = por %p114, %p115
    %p117 = scmp.le.s32.totalorder 1, %s10
    %p118 = scmp.lt.s32.totalorder %s10, 3
    %p119 = pnand %p117, %p118
    %p120 = pneg %p119
    // Predicated region
    $region9: #{conv_norm_block_forward.3} parent=5 // pred_check
      _
    $region10: #{conv_norm_block_forward.3} parent=5 // pred_check_branch
      %122 = sbr.rel (%p119) target = $region12
    $region11: #{conv_norm_block_forward.3} parent=5 // pred_region
      %s123 = ssub.s32 %s10, 1
      // Predicated region
      $region13: #{conv_norm_block_forward.3} parent=11 // pred_check
        %p124 = pneg %p57
      $region14: #{conv_norm_block_forward.3} parent=11 // pred_check_branch
        %126 = sbr.rel (%p124) target = $region16
      $region15: #{conv_norm_block_forward.3} parent=11 // pred_region
        _
      $region16: #{conv_norm_block_forward.3} parent=11 // pred_fallthru
        _
    $region12: #{conv_norm_block_forward.3} parent=5 // pred_fallthru
      _
    %p127 = scmp.lt.s32.totalorder %s10, 2
    // Predicated region
    $region17: #{conv_norm_block_forward.3} parent=5 // pred_check
      %p128 = pneg %p127
    $region18: #{conv_norm_block_forward.3} parent=5 // pred_check_branch
      %130 = sbr.rel (%p128) target = $region20
    $region19: #{conv_norm_block_forward.3} parent=5 // pred_region
      // Predicated region
      $region21: #{conv_norm_block_forward.3} parent=19 // pred_check
        %p131 = pneg %p30
      $region22: #{conv_norm_block_forward.3} parent=19 // pred_check_branch
        %133 = sbr.rel (%p131) target = $region24
      $region23: #{conv_norm_block_forward.3} parent=19 // pred_region
        %s134 = smul.u32 8, %s10
        %p135 = scmp.lt.s32.totalorder %s134, 15
        %s136 = scalar_select %p135, %s134, 15
        %s137 = smul.addr %s136, 2
        %s138 = smul.addr %s137, 4
        %s139 = scalar_lea.vmem %s0, %s138
        %s140 = smul.u32 8, %s10
      $region24: #{conv_norm_block_forward.3} parent=19 // pred_fallthru
        _
    $region20: #{conv_norm_block_forward.3} parent=5 // pred_fallthru
      _
    %p141 = scmp.le.s32.totalorder 1, %s10
    %p142 = scmp.lt.s32.totalorder %s10, 3
    %p143 = pnand %p141, %p142
    %p144 = pneg %p143
    // Predicated region
    $region25: #{conv_norm_block_forward.3} parent=5 // pred_check
      _
    $region26: #{conv_norm_block_forward.3} parent=5 // pred_check_branch
      %146 = sbr.rel (%p143) target = $region28
    $region27: #{conv_norm_block_forward.3} parent=5 // pred_region
      %s147 = ssub.s32 %s10, 1
      %s148 = smul.u32 8, %s15
      %p149 = scmp.lt.s32.totalorder %s148, 15
      %s150 = scalar_select %p149, %s148, 15
      %s151 = smul.addr %s150, 2
      %s152 = smul.addr %s151, 4
      %s153 = scalar_lea.vmem %s0, %s152
      %p154 = pneg %p36
      %p155 = pneg %p33
      %p156 = pneg %p57
      %p157 = pneg %p54
      %p158 = pneg %p83
      %p159 = pneg %p80
      %s160 = smul.u32 8, %s15
      %p161 = scmp.lt.s32.totalorder %s160, 15
      %s162 = scalar_select %p161, %s160, 15
      %s163 = smul.addr %s162, 4
      %s164 = scalar_lea.vmem %s2, %s163
      %p165 = pneg %p109
      %p166 = pneg %p106
      %p167 = scmp.lt.s32.totalorder %s15, 1
      %s168 = scalar_select %p167, %s15, 1
      %s169 = smul.addr %s168, 8
      %s170 = scalar_lea.vmem %s3, %s169
      %s171 = smul.u32 8, %s15
      %p172 = scmp.lt.s32.totalorder %s171, 15
      %s173 = scalar_select %p172, %s171, 15
      %s174 = smul.addr %s173, 2
      %s175 = smul.addr %s174, 4
      %s176 = scalar_lea.vmem %s0, %s175
      %s177 = smul.u32 8, %s15
      %s178 = smul.u32 8, %s15
      %p179 = scmp.lt.s32.totalorder %s178, 15
      %s180 = scalar_select %p179, %s178, 15
      %s181 = smul.addr %s180, 4
      %s182 = scalar_lea.vmem %s2, %s181
      %s183 = smul.u32 8, %s15
      %p184 = scmp.lt.s32.totalorder %s15, 1
      %s185 = scalar_select %p184, %s15, 1
      %s186 = smul.addr %s185, 8
      %s187 = scalar_lea.vmem %s3, %s186
      %v188 = vld [vmem:[%s176] sm:$0xff]
      %v189 = vld [vmem:[%s176 + $0x8] sm:$0xff]
      %v190 = vld [vmem:[%s176 + $0x10] sm:$0xff]
      %v191 = vld [vmem:[%s176 + $0x18] sm:$0xff]
      %v192 = vld [vmem:[%s176 + $0x20] sm:$0xff]
      %v193 = vld [vmem:[%s176 + $0x28] sm:$0xff]
      %v194 = vld [vmem:[%s176 + $0x30] sm:$0xff]
      %v195 = vld [vmem:[%s176 + $0x38] sm:$0xff]
      %v196 = vunpack.c.l.bf16 %v188
      %v197 = vunpack.c.h.bf16 %v188
      %v198 = vunpack.c.l.bf16 %v189
      %v199 = vunpack.c.h.bf16 %v189
      %v200 = vunpack.c.l.bf16 %v190
      %v201 = vunpack.c.h.bf16 %v190
      %v202 = vunpack.c.l.bf16 %v191
      %v203 = vunpack.c.h.bf16 %v191
      %v204 = vunpack.c.l.bf16 %v192
      %v205 = vunpack.c.h.bf16 %v192
      %v206 = vunpack.c.l.bf16 %v193
      %v207 = vunpack.c.h.bf16 %v193
      %v208 = vunpack.c.l.bf16 %v194
      %v209 = vunpack.c.h.bf16 %v194
      %v210 = vunpack.c.l.bf16 %v195
      %v211 = vunpack.c.h.bf16 %v195
      %v212 = vld [vmem:[%s1] sm:$0xff]
      %v213 = vld [vmem:[%s1 + $0x8] sm:$0xff]
      %v214 = vld [vmem:[%s1 + $0x10] sm:$0xff]
      %v215 = vld [vmem:[%s1 + $0x18] sm:$0xff]
      %v216 = vld [vmem:[%s1 + $0x20] sm:$0xff]
      %v217 = vld [vmem:[%s1 + $0x28] sm:$0xff]
      %v218 = vld [vmem:[%s1 + $0x30] sm:$0xff]
      %v219 = vld [vmem:[%s1 + $0x38] sm:$0xff]
      %v220 = vld [vmem:[%s1 + $0x40] sm:$0xff]
      %v221 = vld [vmem:[%s1 + $0x48] sm:$0xff]
      %v222 = vld [vmem:[%s1 + $0x50] sm:$0xff]
      %v223 = vld [vmem:[%s1 + $0x58] sm:$0xff]
      %v224 = vld [vmem:[%s1 + $0x60] sm:$0xff]
      %v225 = vld [vmem:[%s1 + $0x68] sm:$0xff]
      %v226 = vld [vmem:[%s1 + $0x70] sm:$0xff]
      %v227 = vld [vmem:[%s1 + $0x78] sm:$0xff]
      %v228 = vld [vmem:[%s1 + $0x80] sm:$0xff]
      %v229 = vld [vmem:[%s1 + $0x88] sm:$0xff]
      %vm230 = vcmask 130048
      %v232 = vsel %vm230, %v197, 0
      %v235 = vsel %vm230, %v199, 0
      %v238 = vsel %vm230, %v201, 0
      %v241 = vsel %vm230, %v203, 0
      %v244 = vsel %vm230, %v205, 0
      %v247 = vsel %vm230, %v207, 0
      %v250 = vsel %vm230, %v209, 0
      %v253 = vsel %vm230, %v211, 0
      %255 = vmatpush.msra.mxu0 %v227
      %256 = vmatpush.msra.mxu0 %v226
      %257 = vmatpush.msra.mxu0 %v225
      %258 = vmatpush.msra.mxu0 %v224
      %259 = vmatpush.msra.mxu0 %v223
      %260 = vmatpush.msra.mxu0 %v222
      %261 = vmatpush.msra.mxu0 %v221
      %262 = vmatpush.msra.mxu0 %v220
      %263 = vmatpush.msra.mxu0 %v219
      %264 = vmatpush.msra.mxu0 %v218
      %265 = vmatpush.msra.mxu0 %v217
      %266 = vmatpush.msra.mxu0 %v216
      %267 = vmatpush.msra.mxu0 %v215
      %268 = vmatpush.msra.mxu0 %v214
      %269 = vmatpush.msra.mxu0 %v213
      %270 = vmatpush.msra.mxu0 %v212
      %271 = vmatmul.f32.gmra.mxu0 %v196
      %v272 = vpop.f32.mrf.mxu0
      %v273 = vadd.f32 0.0, %v272
      %274 = vmatmul.f32.gmra.mxu0 %v198
      %v275 = vpop.f32.mrf.mxu0
      %v276 = vadd.f32 0.0, %v275
      %277 = vmatmul.f32.gmra.mxu0 %v200
      %v278 = vpop.f32.mrf.mxu0
      %v279 = vadd.f32 0.0, %v278
      %280 = vmatmul.f32.gmra.mxu0 %v202
      %v281 = vpop.f32.mrf.mxu0
      %v282 = vadd.f32 0.0, %v281
      %283 = vmatmul.f32.gmra.mxu0 %v204
      %v284 = vpop.f32.mrf.mxu0
      %v285 = vadd.f32 0.0, %v284
      %286 = vmatmul.f32.gmra.mxu0 %v206
      %v287 = vpop.f32.mrf.mxu0
      %v288 = vadd.f32 0.0, %v287
      %289 = vmatmul.f32.gmra.mxu0 %v208
      %v290 = vpop.f32.mrf.mxu0
      %v291 = vadd.f32 0.0, %v290
      %292 = vmatmul.f32.gmra.mxu0 %v210
      %v293 = vpop.f32.mrf.mxu0
      %v294 = vadd.f32 0.0, %v293
      %295 = vdwg.mxu0
      %296 = vmatpush.msra.mxu0 0.0
      %297 = vmatpush.msra.mxu0 0.0
      %298 = vmatpush.msra.mxu0 0.0
      %299 = vmatpush.msra.mxu0 0.0
      %300 = vmatpush.msra.mxu0 0.0
      %301 = vmatpush.msra.mxu0 0.0
      %302 = vmatpush.msra.mxu0 0.0
      %303 = vmatpush.msra.mxu0 0.0
      %304 = vmatpush.msra.mxu0 0.0
      %305 = vmatpush.msra.mxu0 0.0
      %306 = vmatpush.msra.mxu0 0.0
      %307 = vmatpush.msra.mxu0 0.0
      %308 = vmatpush.msra.mxu0 0.0
      %309 = vmatpush.msra.mxu0 0.0
      %310 = vmatpush.msra.mxu0 %v229
      %311 = vmatpush.msra.mxu0 %v228
      %312 = vmatmul.f32.gmra.mxu0 %v232
      %v313 = vpop.f32.mrf.mxu0
      %v314 = vadd.f32 %v273, %v313
      %315 = vmatmul.f32.gmra.mxu0 %v235
      %v316 = vpop.f32.mrf.mxu0
      %v317 = vadd.f32 %v276, %v316
      %318 = vmatmul.f32.gmra.mxu0 %v238
      %v319 = vpop.f32.mrf.mxu0
      %v320 = vadd.f32 %v279, %v319
      %321 = vmatmul.f32.gmra.mxu0 %v241
      %v322 = vpop.f32.mrf.mxu0
      %v323 = vadd.f32 %v282, %v322
      %324 = vmatmul.f32.gmra.mxu0 %v244
      %v325 = vpop.f32.mrf.mxu0
      %v326 = vadd.f32 %v285, %v325
      %327 = vmatmul.f32.gmra.mxu0 %v247
      %v328 = vpop.f32.mrf.mxu0
      %v329 = vadd.f32 %v288, %v328
      %330 = vmatmul.f32.gmra.mxu0 %v250
      %v331 = vpop.f32.mrf.mxu0
      %v332 = vadd.f32 %v291, %v331
      %333 = vmatmul.f32.gmra.mxu0 %v253
      %v334 = vpop.f32.mrf.mxu0
      %v335 = vadd.f32 %v294, %v334
      %336 = vdwg.mxu0
      %v337 = vpack.c.bf16 %v314, %v314
      %v338 = vpack.c.bf16 %v317, %v317
      %v339 = vpack.c.bf16 %v320, %v320
      %v340 = vpack.c.bf16 %v323, %v323
      %v341 = vpack.c.bf16 %v326, %v326
      %v342 = vpack.c.bf16 %v329, %v329
      %v343 = vpack.c.bf16 %v332, %v332
      %v344 = vpack.c.bf16 %v335, %v335
      %vm345 = vcmask 257024
      %346 = vst.msk [vmem:[%s182] sm:$0xf] %vm345, %v337
      %347 = vst.msk [vmem:[%s182 + $0x4] sm:$0xf] %vm345, %v338
      %348 = vst.msk [vmem:[%s182 + $0x8] sm:$0xf] %vm345, %v339
      %349 = vst.msk [vmem:[%s182 + $0xc] sm:$0xf] %vm345, %v340
      %350 = vst.msk [vmem:[%s182 + $0x10] sm:$0xf] %vm345, %v341
      %351 = vst.msk [vmem:[%s182 + $0x14] sm:$0xf] %vm345, %v342
      %352 = vst.msk [vmem:[%s182 + $0x18] sm:$0xf] %vm345, %v343
      %353 = vst.msk [vmem:[%s182 + $0x1c] sm:$0xf] %vm345, %v344
      %vm354 = vcmask 261120
      %v355 = vsel %vm354, %v314, 0.0
      %v356 = vsel %vm354, %v317, 0.0
      %v357 = vadd.f32 %v355, %v356
      %v358 = vsel %vm354, %v320, 0.0
      %v359 = vadd.f32 %v357, %v358
      %v360 = vsel %vm354, %v323, 0.0
      %v361 = vadd.f32 %v359, %v360
      %v362 = vsel %vm354, %v326, 0.0
      %v363 = vadd.f32 %v361, %v362
      %v364 = vsel %vm354, %v329, 0.0
      %v365 = vadd.f32 %v363, %v364
      %v366 = vsel %vm354, %v332, 0.0
      %v367 = vadd.f32 %v365, %v366
      %v368 = vsel %vm354, %v335, 0.0
      %v369 = vadd.f32 %v367, %v368
      %v370 = vrot.slane %v369, 4
      %v371 = vadd.f32 %v369, %v370
      %v372 = vrot.slane %v371, 2
      %v373 = vadd.f32 %v371, %v372
      %v374 = vrot.slane %v373, 1
      %v375 = vadd.f32 %v373, %v374
      %v376 = vmul.f32 %v314, %v314
      %v377 = vmul.f32 %v317, %v317
      %v378 = vmul.f32 %v320, %v320
      %v379 = vmul.f32 %v323, %v323
      %v380 = vmul.f32 %v326, %v326
      %v381 = vmul.f32 %v329, %v329
      %v382 = vmul.f32 %v332, %v332
      %v383 = vmul.f32 %v335, %v335
      %v384 = vsel %vm354, %v376, 0.0
      %v385 = vsel %vm354, %v377, 0.0
      %v386 = vadd.f32 %v384, %v385
      %v387 = vsel %vm354, %v378, 0.0
      %v388 = vadd.f32 %v386, %v387
      %v389 = vsel %vm354, %v379, 0.0
      %v390 = vadd.f32 %v388, %v389
      %v391 = vsel %vm354, %v380, 0.0
      %v392 = vadd.f32 %v390, %v391
      %v393 = vsel %vm354, %v381, 0.0
      %v394 = vadd.f32 %v392, %v393
      %v395 = vsel %vm354, %v382, 0.0
      %v396 = vadd.f32 %v394, %v395
      %v397 = vsel %vm354, %v383, 0.0
      %v398 = vadd.f32 %v396, %v397
      %v399 = vrot.slane %v398, 4
      %v400 = vadd.f32 %v398, %v399
      %v401 = vrot.slane %v400, 2
      %v402 = vadd.f32 %v400, %v401
      %v403 = vrot.slane %v402, 1
      %v404 = vadd.f32 %v402, %v403
      %vm405 = vcmask 1040384
      %v406 = vsel %vm405, %v375, %v404
      %vm407 = vcmask 1041408
      %v408 = vsel %vm407, %v406, 0.0
      %409 = vst.msk [vmem:[%s187] sm:$0xff] %vm354, %v408
      %s410 = smul.u32 8, %s15
      %p411 = scmp.lt.s32.totalorder %s410, 15
      %s412 = scalar_select %p411, %s410, 15
      %s413 = smul.addr %s412, 4
      %s414 = scalar_lea.vmem %s2, %s413
      %p415 = scmp.lt.s32.totalorder %s15, 1
      %s416 = scalar_select %p415, %s15, 1
      %s417 = smul.addr %s416, 8
      %s418 = scalar_lea.vmem %s3, %s417
      // Predicated region
      $region29: #{conv_norm_block_forward.3} parent=27 // pred_check
        %p419 = pneg %p80
      $region30: #{conv_norm_block_forward.3} parent=27 // pred_check_branch
        %421 = sbr.rel (%p419) target = $region32
      $region31: #{conv_norm_block_forward.3} parent=27 // pred_region
        %s422 = smul.u32 8, %s15
      $region32: #{conv_norm_block_forward.3} parent=27 // pred_fallthru
        _
      // Predicated region
      $region33: #{conv_norm_block_forward.3} parent=27 // pred_check
        %p423 = pneg %p106
      $region34: #{conv_norm_block_forward.3} parent=27 // pred_check_branch
        %425 = sbr.rel (%p423) target = $region36
      $region35: #{conv_norm_block_forward.3} parent=27 // pred_region
        _
      $region36: #{conv_norm_block_forward.3} parent=27 // pred_fallthru
        _
    $region28: #{conv_norm_block_forward.3} parent=5 // pred_fallthru
      _
    %p426 = scmp.le.s32.totalorder 2, %s10
    // Predicated region
    $region37: #{conv_norm_block_forward.3} parent=5 // pred_check
      %p427 = pneg %p426
    $region38: #{conv_norm_block_forward.3} parent=5 // pred_check_branch
      %429 = sbr.rel (%p427) target = $region40
    $region39: #{conv_norm_block_forward.3} parent=5 // pred_region
      %s430 = ssub.s32 %s10, 2
      // Predicated region
      $region41: #{conv_norm_block_forward.3} parent=39 // pred_check
        %p431 = pneg %p86
      $region42: #{conv_norm_block_forward.3} parent=39 // pred_check_branch
        %433 = sbr.rel (%p431) target = $region44
      $region43: #{conv_norm_block_forward.3} parent=39 // pred_region
        %s434 = smul.u32 8, %s16
        %p435 = scmp.lt.s32.totalorder %s434, 15
        %s436 = scalar_select %p435, %s434, 15
        %s437 = smul.addr %s436, 4
        %s438 = scalar_lea.vmem %s2, %s437
      $region44: #{conv_norm_block_forward.3} parent=39 // pred_fallthru
        _
      // Predicated region
      $region45: #{conv_norm_block_forward.3} parent=39 // pred_check
        %p439 = pneg %p112
      $region46: #{conv_norm_block_forward.3} parent=39 // pred_check_branch
        %441 = sbr.rel (%p439) target = $region48
      $region47: #{conv_norm_block_forward.3} parent=39 // pred_region
        %p442 = scmp.lt.s32.totalorder %s16, 1
        %s443 = scalar_select %p442, %s16, 1
        %s444 = smul.addr %s443, 8
        %s445 = scalar_lea.vmem %s3, %s444
      $region48: #{conv_norm_block_forward.3} parent=39 // pred_fallthru
        _
    $region40: #{conv_norm_block_forward.3} parent=5 // pred_fallthru
      _
  $region6: #{conv_norm_block_forward.3} parent=0 // loop_footer
    %s14 = sadd.s32 1, %s10
  $region7: #{conv_norm_block_forward.3} parent=0 // loop_footer_branch
    %9 = sbr.rel target = $region3
  $region8: #{conv_norm_block_forward.3} parent=0 // loop_exit
    _

// kernel: conv_norm_block_forward.5
$region0: #{conv_norm_block_forward.5}
  #allocation0 [shape = 'u32[]', space=smem, size = 0x4, offset = 0x4, fixed_abs, tag = 'smem constant byte address 0x4 - core index']
  #allocation1 [shape = 'u32[72,128]{1,0:T(1,128)}', space=vmem, size = 0x9000, scoped, tag = 'internal scratch']
  %s0 = inlined_call_operand.vmem [shape: bf16[224,32], index: 0, kind: input, shape index: {}]
  %s1 = inlined_call_operand.vmem [shape: f32[8,32], index: 1, kind: input, shape index: {}]
  %s2 = inlined_call_operand.vmem [shape: f32[224,32], index: 2, kind: input, shape index: {}]
  %s3 = inlined_call_operand.vmem [shape: f32[224,32], index: 3, kind: output, shape index: {}]
  %s4 = sld [smem:[#allocation0]]
  $region45: #{conv_norm_block_forward.5} parent=0
    _
  %s6 = ssub.s32 1, %s4
  %s7 = scalar_select 0, %s6, %s4
  loop: start=0, step=1, limit=4
  $region2: #{conv_norm_block_forward.5} parent=0 // loop_pre_header
    _
  $region3: #{conv_norm_block_forward.5} parent=0 // loop_header
    %s9 = sphi 0, %s13
    %p10 = scmp.ge.s32.totalorder %s9, 4
    %s19 = sphi 0, %s21
    %s22 = sphi 0, %s19
    %s23 = sphi 0, %s22
    %s39 = sphi 0, %s23
    %s43 = sphi 0, %s43
    %s45 = sphi 0, %s43
    %s46 = sphi 0, %s45
    %s60 = sphi 0, %s46
    %s66 = sphi 0, %s68
    %s69 = sphi 0, %s66
    %s70 = sphi 0, %s69
    %s86 = sphi 0, %s70
    %s92 = sphi 0, %s94
    %s95 = sphi 0, %s92
    %s96 = sphi 0, %s95
    %s112 = sphi 0, %s96
  $region4: #{conv_norm_block_forward.5} parent=0 // loop_header_branch
    %12 = sbr.rel (%p10) target = $region8
  $region5: #{conv_norm_block_forward.5} parent=0 // loop_body
    %s14 = ssub.s32 %s9, 1
    %s15 = ssub.s32 %s9, 2
    %s16 = sadd.s32 %s9, 1
    %s17 = ssub.s32 %s9, %s16
    %p18 = scmp.eq.s32.totalorder %s17, 0
    %s20 = sadd.s32 %s19, 1
    %s21 = scalar_select %p18, %s19, %s20
    %p24 = pneg %p18
    %p25 = scmp.eq.s32.totalorder %s9, 1
    %p26 = por %p24, %p25
    %p27 = scmp.ne.s32.totalorder %s19, %s22
    %p28 = scmp.eq.s32.totalorder %s9, 0
    %p29 = por %p27, %p28
    %p30 = scmp.ne.s32.totalorder %s19, %s22
    %p31 = scmp.eq.s32.totalorder %s14, 1
    %p32 = por %p30, %p31
    %p33 = scmp.ne.s32.totalorder %s22, %s23
    %p34 = scmp.eq.s32.totalorder %s14, 0
    %p35 = por %p33, %p34
    %p36 = scmp.ne.s32.totalorder %s22, %s23
    %p37 = scmp.eq.s32.totalorder %s15, 1
    %p38 = por %p36, %p37
    %p40 = scmp.ne.s32.totalorder %s23, %s39
    %p41 = scmp.eq.s32.totalorder %s15, 0
    %p42 = por %p40, %p41
    %s44 = sadd.s32 %s43, 1
    %p47 = scmp.eq.s32.totalorder %s9, 1
    %p48 = scmp.ne.s32.totalorder %s43, %s45
    %p49 = scmp.eq.s32.totalorder %s9, 0
    %p50 = por %p48, %p49
    %p51 = scmp.ne.s32.totalorder %s43, %s45
    %p52 = scmp.eq.s32.totalorder %s14, 1
    %p53 = por %p51, %p52
    %p54 = scmp.ne.s32.totalorder %s45, %s46
    %p55 = scmp.eq.s32.totalorder %s14, 0
    %p56 = por %p54, %p55
    %p57 = scmp.ne.s32.totalorder %s45, %s46
    %p58 = scmp.eq.s32.totalorder %s15, 1
    %p59 = por %p57, %p58
    %p61 = scmp.ne.s32.totalorder %s46, %s60
    %p62 = scmp.eq.s32.totalorder %s15, 0
    %p63 = por %p61, %p62
    %s64 = ssub.s32 %s9, %s16
    %p65 = scmp.eq.s32.totalorder %s64, 0
    %s67 = sadd.s32 %s66, 1
    %s68 = scalar_select %p65, %s66, %s67
    %p71 = pneg %p65
    %p72 = scmp.eq.s32.totalorder %s9, 1
    %p73 = por %p71, %p72
    %p74 = scmp.ne.s32.totalorder %s66, %s69
    %p75 = scmp.eq.s32.totalorder %s9, 0
    %p76 = por %p74, %p75
    %p77 = scmp.ne.s32.totalorder %s66, %s69
    %p78 = scmp.eq.s32.totalorder %s14, 1
    %p79 = por %p77, %p78
    %p80 = scmp.ne.s32.totalorder %s69, %s70
    %p81 = scmp.eq.s32.totalorder %s14, 0
    %p82 = por %p80, %p81
    %p83 = scmp.ne.s32.totalorder %s69, %s70
    %p84 = scmp.eq.s32.totalorder %s15, 1
    %p85 = por %p83, %p84
    %p87 = scmp.ne.s32.totalorder %s70, %s86
    %p88 = scmp.eq.s32.totalorder %s15, 0
    %p89 = por %p87, %p88
    %s90 = ssub.s32 %s9, %s16
    %p91 = scmp.eq.s32.totalorder %s90, 0
    %s93 = sadd.s32 %s92, 1
    %s94 = scalar_select %p91, %s92, %s93
    %p97 = pneg %p91
    %p98 = scmp.eq.s32.totalorder %s9, 1
    %p99 = por %p97, %p98
    %p100 = scmp.ne.s32.totalorder %s92, %s95
    %p101 = scmp.eq.s32.totalorder %s9, 0
    %p102 = por %p100, %p101
    %p103 = scmp.ne.s32.totalorder %s92, %s95
    %p104 = scmp.eq.s32.totalorder %s14, 1
    %p105 = por %p103, %p104
    %p106 = scmp.ne.s32.totalorder %s95, %s96
    %p107 = scmp.eq.s32.totalorder %s14, 0
    %p108 = por %p106, %p107
    %p109 = scmp.ne.s32.totalorder %s95, %s96
    %p110 = scmp.eq.s32.totalorder %s15, 1
    %p111 = por %p109, %p110
    %p113 = scmp.ne.s32.totalorder %s96, %s112
    %p114 = scmp.eq.s32.totalorder %s15, 0
    %p115 = por %p113, %p114
    %p116 = scmp.le.s32.totalorder 1, %s9
    %p117 = scmp.lt.s32.totalorder %s9, 3
    %p118 = pnand %p116, %p117
    %p119 = pneg %p118
    // Predicated region
    $region9: #{conv_norm_block_forward.5} parent=5 // pred_check
      _
    $region10: #{conv_norm_block_forward.5} parent=5 // pred_check_branch
      %121 = sbr.rel (%p118) target = $region12
    $region11: #{conv_norm_block_forward.5} parent=5 // pred_region
      %s122 = ssub.s32 %s9, 1
      // Predicated region
      $region13: #{conv_norm_block_forward.5} parent=11 // pred_check
        %p123 = pneg %p56
      $region14: #{conv_norm_block_forward.5} parent=11 // pred_check_branch
        %125 = sbr.rel (%p123) target = $region16
      $region15: #{conv_norm_block_forward.5} parent=11 // pred_region
        _
      $region16: #{conv_norm_block_forward.5} parent=11 // pred_fallthru
        _
    $region12: #{conv_norm_block_forward.5} parent=5 // pred_fallthru
      _
    %p126 = scmp.lt.s32.totalorder %s9, 2
    // Predicated region
    $region17: #{conv_norm_block_forward.5} parent=5 // pred_check
      %p127 = pneg %p126
    $region18: #{conv_norm_block_forward.5} parent=5 // pred_check_branch
      %129 = sbr.rel (%p127) target = $region20
    $region19: #{conv_norm_block_forward.5} parent=5 // pred_region
      // Predicated region
      $region21: #{conv_norm_block_forward.5} parent=19 // pred_check
        %p130 = pneg %p29
      $region22: #{conv_norm_block_forward.5} parent=19 // pred_check_branch
        %132 = sbr.rel (%p130) target = $region24
      $region23: #{conv_norm_block_forward.5} parent=19 // pred_region
        %s133 = smul.u32 14, %s9
        %p134 = scmp.lt.s32.totalorder %s133, 27
        %s135 = scalar_select %p134, %s133, 27
        %s136 = smul.addr %s135, 4
        %s137 = scalar_lea.vmem %s0, %s136
        %s138 = smul.u32 14, %s9
      $region24: #{conv_norm_block_forward.5} parent=19 // pred_fallthru
        _
      // Predicated region
      $region25: #{conv_norm_block_forward.5} parent=19 // pred_check
        %p139 = pneg %p76
      $region26: #{conv_norm_block_forward.5} parent=19 // pred_check_branch
        %141 = sbr.rel (%p139) target = $region28
      $region27: #{conv_norm_block_forward.5} parent=19 // pred_region
        %s142 = smul.u32 14, %s9
        %p143 = scmp.lt.s32.totalorder %s142, 27
        %s144 = scalar_select %p143, %s142, 27
        %s145 = smul.addr %s144, 8
        %s146 = scalar_lea.vmem %s2, %s145
        %s147 = smul.u32 14, %s9
      $region28: #{conv_norm_block_forward.5} parent=19 // pred_fallthru
        _
    $region20: #{conv_norm_block_forward.5} parent=5 // pred_fallthru
      _
    %p148 = scmp.le.s32.totalorder 1, %s9
    %p149 = scmp.lt.s32.totalorder %s9, 3
    %p150 = pnand %p148, %p149
    %p151 = pneg %p150
    // Predicated region
    $region29: #{conv_norm_block_forward.5} parent=5 // pred_check
      _
    $region30: #{conv_norm_block_forward.5} parent=5 // pred_check_branch
      %153 = sbr.rel (%p150) target = $region32
    $region31: #{conv_norm_block_forward.5} parent=5 // pred_region
      %s154 = ssub.s32 %s9, 1
      %s155 = smul.u32 14, %s14
      %p156 = scmp.lt.s32.totalorder %s155, 27
      %s157 = scalar_select %p156, %s155, 27
      %s158 = smul.addr %s157, 4
      %s159 = scalar_lea.vmem %s0, %s158
      %p160 = pneg %p35
      %p161 = pneg %p32
      %p162 = pneg %p56
      %p163 = pneg %p53
      %s164 = smul.u32 14, %s14
      %p165 = scmp.lt.s32.totalorder %s164, 27
      %s166 = scalar_select %p165, %s164, 27
      %s167 = smul.addr %s166, 8
      %s168 = scalar_lea.vmem %s2, %s167
      %p169 = pneg %p82
      %p170 = pneg %p79
      %p171 = pneg %p108
      %p172 = pneg %p105
      %s173 = smul.u32 14, %s14
      %p174 = scmp.lt.s32.totalorder %s173, 27
      %s175 = scalar_select %p174, %s173, 27
      %s176 = smul.addr %s175, 8
      %s177 = scalar_lea.vmem %s3, %s176
      %s178 = smul.u32 14, %s14
      %p179 = scmp.lt.s32.totalorder %s178, 27
      %s180 = scalar_select %p179, %s178, 27
      %s181 = smul.addr %s180, 4
      %s182 = scalar_lea.vmem %s0, %s181
      %s183 = smul.u32 14, %s14
      %s184 = smul.u32 14, %s14
      %p185 = scmp.lt.s32.totalorder %s184, 27
      %s186 = scalar_select %p185, %s184, 27
      %s187 = smul.addr %s186, 8
      %s188 = scalar_lea.vmem %s2, %s187
      %s189 = smul.u32 14, %s14
      %s190 = smul.u32 14, %s14
      %p191 = scmp.lt.s32.totalorder %s190, 27
      %s192 = scalar_select %p191, %s190, 27
      %s193 = smul.addr %s192, 8
      %s194 = scalar_lea.vmem %s3, %s193
      %s195 = smul.u32 14, %s14
      %v196 = vld [vmem:[%s1] sm:$0xff]
      %v197 = vld [vmem:[%s182] sm:$0xf]
      %v198 = vld [vmem:[%s182 + $0x4] sm:$0xf]
      %v199 = vld [vmem:[%s182 + $0x8] sm:$0xf]
      %v200 = vld [vmem:[%s182 + $0xc] sm:$0xf]
      %v201 = vld [vmem:[%s182 + $0x10] sm:$0xf]
      %v202 = vld [vmem:[%s182 + $0x14] sm:$0xf]
      %v203 = vld [vmem:[%s182 + $0x18] sm:$0xf]
      %v204 = vld [vmem:[%s182 + $0x1c] sm:$0xf]
      %v205 = vld [vmem:[%s182 + $0x20] sm:$0xf]
      %v206 = vld [vmem:[%s182 + $0x24] sm:$0xf]
      %v207 = vld [vmem:[%s182 + $0x28] sm:$0xf]
      %v208 = vld [vmem:[%s182 + $0x2c] sm:$0xf]
      %v209 = vld [vmem:[%s182 + $0x30] sm:$0xf]
      %v210 = vld [vmem:[%s182 + $0x34] sm:$0xf]
      %v211 = vunpack.c.l.bf16 %v197
      %v212 = vunpack.c.l.bf16 %v198
      %v213 = vunpack.c.l.bf16 %v199
      %v214 = vunpack.c.l.bf16 %v200
      %v215 = vunpack.c.l.bf16 %v201
      %v216 = vunpack.c.l.bf16 %v202
      %v217 = vunpack.c.l.bf16 %v203
      %v218 = vunpack.c.l.bf16 %v204
      %v219 = vunpack.c.l.bf16 %v205
      %v220 = vunpack.c.l.bf16 %v206
      %v221 = vunpack.c.l.bf16 %v207
      %v222 = vunpack.c.l.bf16 %v208
      %v223 = vunpack.c.l.bf16 %v209
      %v224 = vunpack.c.l.bf16 %v210
      %v225 = vperm.slane %v196, 0
      %v226 = vmul.f32 %v211, %v225
      %v227 = vmul.f32 %v212, %v225
      %v228 = vmul.f32 %v213, %v225
      %v229 = vmul.f32 %v214, %v225
      %v230 = vmul.f32 %v215, %v225
      %v231 = vmul.f32 %v216, %v225
      %v232 = vmul.f32 %v217, %v225
      %v233 = vmul.f32 %v218, %v225
      %v234 = vmul.f32 %v219, %v225
      %v235 = vmul.f32 %v220, %v225
      %v236 = vmul.f32 %v221, %v225
      %v237 = vmul.f32 %v222, %v225
      %v238 = vmul.f32 %v223, %v225
      %v239 = vmul.f32 %v224, %v225
      %v240 = vperm.slane %v196, 1
      %v241 = vadd.f32 %v226, %v240
      %v242 = vadd.f32 %v227, %v240
      %v243 = vadd.f32 %v228, %v240
      %v244 = vadd.f32 %v229, %v240
      %v245 = vadd.f32 %v230, %v240
      %v246 = vadd.f32 %v231, %v240
      %v247 = vadd.f32 %v232, %v240
      %v248 = vadd.f32 %v233, %v240
      %v249 = vadd.f32 %v234, %v240
      %v250 = vadd.f32 %v235, %v240
      %v251 = vadd.f32 %v236, %v240
      %v252 = vadd.f32 %v237, %v240
      %v253 = vadd.f32 %v238, %v240
      %v254 = vadd.f32 %v239, %v240
      %v255 = vmul.f32 %v241, 0.1
      %v256 = vmul.f32 %v242, 0.1
      %v257 = vmul.f32 %v243, 0.1
      %v258 = vmul.f32 %v244, 0.1
      %v259 = vmul.f32 %v245, 0.1
      %v260 = vmul.f32 %v246, 0.1
      %v261 = vmul.f32 %v247, 0.1
      %v262 = vmul.f32 %v248, 0.1
      %v263 = vmul.f32 %v249, 0.1
      %v264 = vmul.f32 %v250, 0.1
      %v265 = vmul.f32 %v251, 0.1
      %v266 = vmul.f32 %v252, 0.1
      %v267 = vmul.f32 %v253, 0.1
      %v268 = vmul.f32 %v254, 0.1
      %v269 = vld [vmem:[%s188] sm:$0xff]
      %v270 = vld [vmem:[%s188 + $0x8] sm:$0xff]
      %v271 = vld [vmem:[%s188 + $0x10] sm:$0xff]
      %v272 = vld [vmem:[%s188 + $0x18] sm:$0xff]
      %v273 = vld [vmem:[%s188 + $0x20] sm:$0xff]
      %v274 = vld [vmem:[%s188 + $0x28] sm:$0xff]
      %v275 = vld [vmem:[%s188 + $0x30] sm:$0xff]
      %v276 = vld [vmem:[%s188 + $0x38] sm:$0xff]
      %v277 = vld [vmem:[%s188 + $0x40] sm:$0xff]
      %v278 = vld [vmem:[%s188 + $0x48] sm:$0xff]
      %v279 = vld [vmem:[%s188 + $0x50] sm:$0xff]
      %v280 = vld [vmem:[%s188 + $0x58] sm:$0xff]
      %v281 = vld [vmem:[%s188 + $0x60] sm:$0xff]
      %v282 = vld [vmem:[%s188 + $0x68] sm:$0xff]
      %v283 = vadd.f32 %v255, %v269
      %v284 = vadd.f32 %v256, %v270
      %v285 = vadd.f32 %v257, %v271
      %v286 = vadd.f32 %v258, %v272
      %v287 = vadd.f32 %v259, %v273
      %v288 = vadd.f32 %v260, %v274
      %v289 = vadd.f32 %v261, %v275
      %v290 = vadd.f32 %v262, %v276
      %v291 = vadd.f32 %v263, %v277
      %v292 = vadd.f32 %v264, %v278
      %v293 = vadd.f32 %v265, %v279
      %v294 = vadd.f32 %v266, %v280
      %v295 = vadd.f32 %v267, %v281
      %v296 = vadd.f32 %v268, %v282
      %v297 = vmax.f32 %v283, 0.0
      %v298 = vmax.f32 %v284, 0.0
      %v299 = vmax.f32 %v285, 0.0
      %v300 = vmax.f32 %v286, 0.0
      %v301 = vmax.f32 %v287, 0.0
      %v302 = vmax.f32 %v288, 0.0
      %v303 = vmax.f32 %v289, 0.0
      %v304 = vmax.f32 %v290, 0.0
      %v305 = vmax.f32 %v291, 0.0
      %v306 = vmax.f32 %v292, 0.0
      %v307 = vmax.f32 %v293, 0.0
      %v308 = vmax.f32 %v294, 0.0
      %v309 = vmax.f32 %v295, 0.0
      %v310 = vmax.f32 %v296, 0.0
      %vm311 = vcmask 261120
      %312 = vst.msk [vmem:[%s194] sm:$0xff] %vm311, %v297
      %313 = vst.msk [vmem:[%s194 + $0x8] sm:$0xff] %vm311, %v298
      %314 = vst.msk [vmem:[%s194 + $0x10] sm:$0xff] %vm311, %v299
      %315 = vst.msk [vmem:[%s194 + $0x18] sm:$0xff] %vm311, %v300
      %316 = vst.msk [vmem:[%s194 + $0x20] sm:$0xff] %vm311, %v301
      %317 = vst.msk [vmem:[%s194 + $0x28] sm:$0xff] %vm311, %v302
      %318 = vst.msk [vmem:[%s194 + $0x30] sm:$0xff] %vm311, %v303
      %319 = vst.msk [vmem:[%s194 + $0x38] sm:$0xff] %vm311, %v304
      %320 = vst.msk [vmem:[%s194 + $0x40] sm:$0xff] %vm311, %v305
      %321 = vst.msk [vmem:[%s194 + $0x48] sm:$0xff] %vm311, %v306
      %322 = vst.msk [vmem:[%s194 + $0x50] sm:$0xff] %vm311, %v307
      %323 = vst.msk [vmem:[%s194 + $0x58] sm:$0xff] %vm311, %v308
      %324 = vst.msk [vmem:[%s194 + $0x60] sm:$0xff] %vm311, %v309
      %325 = vst.msk [vmem:[%s194 + $0x68] sm:$0xff] %vm311, %v310
      %s326 = smul.u32 14, %s14
      %p327 = scmp.lt.s32.totalorder %s326, 27
      %s328 = scalar_select %p327, %s326, 27
      %s329 = smul.addr %s328, 8
      %s330 = scalar_lea.vmem %s3, %s329
      // Predicated region
      $region33: #{conv_norm_block_forward.5} parent=31 // pred_check
        %p331 = pneg %p105
      $region34: #{conv_norm_block_forward.5} parent=31 // pred_check_branch
        %333 = sbr.rel (%p331) target = $region36
      $region35: #{conv_norm_block_forward.5} parent=31 // pred_region
        %s334 = smul.u32 14, %s14
      $region36: #{conv_norm_block_forward.5} parent=31 // pred_fallthru
        _
    $region32: #{conv_norm_block_forward.5} parent=5 // pred_fallthru
      _
    %p335 = scmp.le.s32.totalorder 2, %s9
    // Predicated region
    $region37: #{conv_norm_block_forward.5} parent=5 // pred_check
      %p336 = pneg %p335
    $region38: #{conv_norm_block_forward.5} parent=5 // pred_check_branch
      %338 = sbr.rel (%p336) target = $region40
    $region39: #{conv_norm_block_forward.5} parent=5 // pred_region
      %s339 = ssub.s32 %s9, 2
      // Predicated region
      $region41: #{conv_norm_block_forward.5} parent=39 // pred_check
        %p340 = pneg %p111
      $region42: #{conv_norm_block_forward.5} parent=39 // pred_check_branch
        %342 = sbr.rel (%p340) target = $region44
      $region43: #{conv_norm_block_forward.5} parent=39 // pred_region
        %s343 = smul.u32 14, %s15
        %p344 = scmp.lt.s32.totalorder %s343, 27
        %s345 = scalar_select %p344, %s343, 27
        %s346 = smul.addr %s345, 8
        %s347 = scalar_lea.vmem %s3, %s346
      $region44: #{conv_norm_block_forward.5} parent=39 // pred_fallthru
        _
    $region40: #{conv_norm_block_forward.5} parent=5 // pred_fallthru
      _
  $region6: #{conv_norm_block_forward.5} parent=0 // loop_footer
    %s13 = sadd.s32 1, %s9
  $region7: #{conv_norm_block_forward.5} parent=0 // loop_footer_branch
    %8 = sbr.rel target = $region3
  $region8: #{conv_norm_block_forward.5} parent=0 // loop_exit
    _

// kernel: conv_norm_block_forward.4
$region0: #{conv_norm_block_forward.4}
  #allocation0 [shape = 'u32[]', space=smem, size = 0x4, offset = 0x4, fixed_abs, tag = 'smem constant byte address 0x4 - core index']
  #allocation1 [shape = 'u32[72,128]{1,0:T(1,128)}', space=vmem, size = 0x9000, scoped, tag = 'internal scratch']
  %s0 = inlined_call_operand.vmem [shape: bf16[224,32], index: 0, kind: input, shape index: {}, may-alias: {0,1,2}]
  %s1 = inlined_call_operand.vmem [shape: bf16[224,32], index: 1, kind: input, shape index: {}, may-alias: {0,1,2}]
  %s2 = inlined_call_operand.vmem [shape: bf16[224,32], index: 2, kind: input, shape index: {}, may-alias: {0,1,2}]
  %s3 = inlined_call_operand.vmem [shape: f32[224,1], index: 3, kind: input, shape index: {}, may-alias: {3,4,5}]
  %s4 = inlined_call_operand.vmem [shape: f32[224,1], index: 4, kind: input, shape index: {}, may-alias: {3,4,5}]
  %s5 = inlined_call_operand.vmem [shape: f32[224,1], index: 5, kind: input, shape index: {}, may-alias: {3,4,5}]
  %s6 = inlined_call_operand.vmem [shape: f32[9,32,32], index: 6, kind: input, shape index: {}]
  %s7 = inlined_call_operand.vmem [shape: f32[8,32], index: 7, kind: input, shape index: {}]
  %s8 = inlined_call_operand.vmem [shape: bf16[224,32], index: 8, kind: output, shape index: {0}]
  %s9 = inlined_call_operand.vmem [shape: f32[2,8,32], index: 9, kind: output, shape index: {1}]
  %10 = xla_tuple %s8, %s9
  %s11 = sld [smem:[#allocation0]]
  $region73: #{conv_norm_block_forward.4} parent=0
    _
  %s13 = ssub.s32 1, %s11
  %s14 = scalar_select 0, %s13, %s11
  loop: start=0, step=1, limit=4
  $region2: #{conv_norm_block_forward.4} parent=0 // loop_pre_header
    _
  $region3: #{conv_norm_block_forward.4} parent=0 // loop_header
    %s16 = sphi 0, %s20
    %p17 = scmp.ge.s32.totalorder %s16, 4
    %s34 = sphi 0, %s36
    %s37 = sphi 0, %s34
    %s38 = sphi 0, %s37
    %s54 = sphi 0, %s38
    %s60 = sphi 0, %s62
    %s63 = sphi 0, %s60
    %s64 = sphi 0, %s63
    %s80 = sphi 0, %s64
    %s94 = sphi 0, %s96
    %s97 = sphi 0, %s94
    %s98 = sphi 0, %s97
    %s114 = sphi 0, %s98
    %s128 = sphi 0, %s130
    %s131 = sphi 0, %s128
    %s132 = sphi 0, %s131
    %s148 = sphi 0, %s132
    %s154 = sphi 0, %s156
    %s157 = sphi 0, %s154
    %s158 = sphi 0, %s157
    %s174 = sphi 0, %s158
    %s188 = sphi 0, %s190
    %s191 = sphi 0, %s188
    %s192 = sphi 0, %s191
    %s208 = sphi 0, %s192
    %s212 = sphi 0, %s212
    %s214 = sphi 0, %s212
    %s215 = sphi 0, %s214
    %s229 = sphi 0, %s215
    %s233 = sphi 0, %s233
    %s235 = sphi 0, %s233
    %s236 = sphi 0, %s235
    %s250 = sphi 0, %s236
    %s256 = sphi 0, %s258
    %s259 = sphi 0, %s256
    %s260 = sphi 0, %s259
    %s276 = sphi 0, %s260
    %s282 = sphi 0, %s284
    %s285 = sphi 0, %s282
    %s286 = sphi 0, %s285
    %s302 = sphi 0, %s286
  $region4: #{conv_norm_block_forward.4} parent=0 // loop_header_branch
    %19 = sbr.rel (%p17) target = $region8
  $region5: #{conv_norm_block_forward.4} parent=0 // loop_body
    %s21 = ssub.s32 %s16, 1
    %s22 = ssub.s32 %s16, 2
    %s23 = sadd.s32 %s16, 1
    %s24 = smul.u32 %s16, 7
    %s25 = ssub.s32 %s24, 1
    %p26 = scmp.gt.s32.totalorder %s25, 0
    %s27 = scalar_select %p26, %s25, 0
    %s28 = smul.u32 %s23, 7
    %s29 = ssub.s32 %s28, 1
    %p30 = scmp.gt.s32.totalorder %s29, 0
    %s31 = scalar_select %p30, %s29, 0
    %s32 = ssub.s32 %s27, %s31
    %p33 = scmp.eq.s32.totalorder %s32, 0
    %s35 = sadd.s32 %s34, 1
    %s36 = scalar_select %p33, %s34, %s35
    %p39 = pneg %p33
    %p40 = scmp.eq.s32.totalorder %s16, 1
    %p41 = por %p39, %p40
    %p42 = scmp.ne.s32.totalorder %s34, %s37
    %p43 = scmp.eq.s32.totalorder %s16, 0
    %p44 = por %p42, %p43
    %p45 = scmp.ne.s32.totalorder %s34, %s37
    %p46 = scmp.eq.s32.totalorder %s21, 1
    %p47 = por %p45, %p46
    %p48 = scmp.ne.s32.totalorder %s37, %s38
    %p49 = scmp.eq.s32.totalorder %s21, 0
    %p50 = por %p48, %p49
    %p51 = scmp.ne.s32.totalorder %s37, %s38
    %p52 = scmp.eq.s32.totalorder %s22, 1
    %p53 = por %p51, %p52
    %p55 = scmp.ne.s32.totalorder %s38, %s54
    %p56 = scmp.eq.s32.totalorder %s22, 0
    %p57 = por %p55, %p56
    %s58 = ssub.s32 %s16, %s23
    %p59 = scmp.eq.s32.totalorder %s58, 0
    %s61 = sadd.s32 %s60, 1
    %s62 = scalar_select %p59, %s60, %s61
    %p65 = pneg %p59
    %p66 = scmp.eq.s32.totalorder %s16, 1
    %p67 = por %p65, %p66
    %p68 = scmp.ne.s32.totalorder %s60, %s63
    %p69 = scmp.eq.s32.totalorder %s16, 0
    %p70 = por %p68, %p69
    %p71 = scmp.ne.s32.totalorder %s60, %s63
    %p72 = scmp.eq.s32.totalorder %s21, 1
    %p73 = por %p71, %p72
    %p74 = scmp.ne.s32.totalorder %s63, %s64
    %p75 = scmp.eq.s32.totalorder %s21, 0
    %p76 = por %p74, %p75
    %p77 = scmp.ne.s32.totalorder %s63, %s64
    %p78 = scmp.eq.s32.totalorder %s22, 1
    %p79 = por %p77, %p78
    %p81 = scmp.ne.s32.totalorder %s64, %s80
    %p82 = scmp.eq.s32.totalorder %s22, 0
    %p83 = por %p81, %p82
    %s84 = sadd.s32 %s16, 1
    %s85 = smul.u32 %s84, 7
    %p86 = scmp.lt.s32.totalorder %s85, 13
    %s87 = scalar_select %p86, %s85, 13
    %s88 = sadd.s32 %s23, 1
    %s89 = smul.u32 %s88, 7
    %p90 = scmp.lt.s32.totalorder %s89, 13
    %s91 = scalar_select %p90, %s89, 13
    %s92 = ssub.s32 %s87, %s91
    %p93 = scmp.eq.s32.totalorder %s92, 0
    %s95 = sadd.s32 %s94, 1
    %s96 = scalar_select %p93, %s94, %s95
    %p99 = pneg %p93
    %p100 = scmp.eq.s32.totalorder %s16, 1
    %p101 = por %p99, %p100
    %p102 = scmp.ne.s32.totalorder %s94, %s97
    %p103 = scmp.eq.s32.totalorder %s16, 0
    %p104 = por %p102, %p103
    %p105 = scmp.ne.s32.totalorder %s94, %s97
    %p106 = scmp.eq.s32.totalorder %s21, 1
    %p107 = por %p105, %p106
    %p108 = scmp.ne.s32.totalorder %s97, %s98
    %p109 = scmp.eq.s32.totalorder %s21, 0
    %p110 = por %p108, %p109
    %p111 = scmp.ne.s32.totalorder %s97, %s98
    %p112 = scmp.eq.s32.totalorder %s22, 1
    %p113 = por %p111, %p112
    %p115 = scmp.ne.s32.totalorder %s98, %s114
    %p116 = scmp.eq.s32.totalorder %s22, 0
    %p117 = por %p115, %p116
    %s118 = smul.u32 %s16, 7
    %s119 = ssub.s32 %s118, 1
    %p120 = scmp.gt.s32.totalorder %s119, 0
    %s121 = scalar_select %p120, %s119, 0
    %s122 = smul.u32 %s23, 7
    %s123 = ssub.s32 %s122, 1
    %p124 = scmp.gt.s32.totalorder %s123, 0
    %s125 = scalar_select %p124, %s123, 0
    %s126 = ssub.s32 %s121, %s125
    %p127 = scmp.eq.s32.totalorder %s126, 0
    %s129 = sadd.s32 %s128, 1
    %s130 = scalar_select %p127, %s128, %s129
    %p133 = pneg %p127
    %p134 = scmp.eq.s32.totalorder %s16, 1
    %p135 = por %p133, %p134
    %p136 = scmp.ne.s32.totalorder %s128, %s131
    %p137 = scmp.eq.s32.totalorder %s16, 0
    %p138 = por %p136, %p137
    %p139 = scmp.ne.s32.totalorder %s128, %s131
    %p140 = scmp.eq.s32.totalorder %s21, 1
    %p141 = por %p139, %p140
    %p142 = scmp.ne.s32.totalorder %s131, %s132
    %p143 = scmp.eq.s32.totalorder %s21, 0
    %p144 = por %p142, %p143
    %p145 = scmp.ne.s32.totalorder %s131, %s132
    %p146 = scmp.eq.s32.totalorder %s22, 1
    %p147 = por %p145, %p146
    %p149 = scmp.ne.s32.totalorder %s132, %s148
    %p150 = scmp.eq.s32.totalorder %s22, 0
    %p151 = por %p149, %p150
    %s152 = ssub.s32 %s16, %s23
    %p153 = scmp.eq.s32.totalorder %s152, 0
    %s155 = sadd.s32 %s154, 1
    %s156 = scalar_select %p153, %s154, %s155
    %p159 = pneg %p153
    %p160 = scmp.eq.s32.totalorder %s16, 1
    %p161 = por %p159, %p160
    %p162 = scmp.ne.s32.totalorder %s154, %s157
    %p163 = scmp.eq.s32.totalorder %s16, 0
    %p164 = por %p162, %p163
    %p165 = scmp.ne.s32.totalorder %s154, %s157
    %p166 = scmp.eq.s32.totalorder %s21, 1
    %p167 = por %p165, %p166
    %p168 = scmp.ne.s32.totalorder %s157, %s158
    %p169 = scmp.eq.s32.totalorder %s21, 0
    %p170 = por %p168, %p169
    %p171 = scmp.ne.s32.totalorder %s157, %s158
    %p172 = scmp.eq.s32.totalorder %s22, 1
    %p173 = por %p171, %p172
    %p175 = scmp.ne.s32.totalorder %s158, %s174
    %p176 = scmp.eq.s32.totalorder %s22, 0
    %p177 = por %p175, %p176
    %s178 = sadd.s32 %s16, 1
    %s179 = smul.u32 %s178, 7
    %p180 = scmp.lt.s32.totalorder %s179, 13
    %s181 = scalar_select %p180, %s179, 13
    %s182 = sadd.s32 %s23, 1
    %s183 = smul.u32 %s182, 7
    %p184 = scmp.lt.s32.totalorder %s183, 13
    %s185 = scalar_select %p184, %s183, 13
    %s186 = ssub.s32 %s181, %s185
    %p187 = scmp.eq.s32.totalorder %s186, 0
    %s189 = sadd.s32 %s188, 1
    %s190 = scalar_select %p187, %s188, %s189
    %p193 = pneg %p187
    %p194 = scmp.eq.s32.totalorder %s16, 1
    %p195 = por %p193, %p194
    %p196 = scmp.ne.s32.totalorder %s188, %s191
    %p197 = scmp.eq.s32.totalorder %s16, 0
    %p198 = por %p196, %p197
    %p199 = scmp.ne.s32.totalorder %s188, %s191
    %p200 = scmp.eq.s32.totalorder %s21, 1
    %p201 = por %p199, %p200
    %p202 = scmp.ne.s32.totalorder %s191, %s192
    %p203 = scmp.eq.s32.totalorder %s21, 0
    %p204 = por %p202, %p203
    %p205 = scmp.ne.s32.totalorder %s191, %s192
    %p206 = scmp.eq.s32.totalorder %s22, 1
    %p207 = por %p205, %p206
    %p209 = scmp.ne.s32.totalorder %s192, %s208
    %p210 = scmp.eq.s32.totalorder %s22, 0
    %p211 = por %p209, %p210
    %s213 = sadd.s32 %s212, 1
    %p216 = scmp.eq.s32.totalorder %s16, 1
    %p217 = scmp.ne.s32.totalorder %s212, %s214
    %p218 = scmp.eq.s32.totalorder %s16, 0
    %p219 = por %p217, %p218
    %p220 = scmp.ne.s32.totalorder %s212, %s214
    %p221 = scmp.eq.s32.totalorder %s21, 1
    %p222 = por %p220, %p221
    %p223 = scmp.ne.s32.totalorder %s214, %s215
    %p224 = scmp.eq.s32.totalorder %s21, 0
    %p225 = por %p223, %p224
    %p226 = scmp.ne.s32.totalorder %s214, %s215
    %p227 = scmp.eq.s32.totalorder %s22, 1
    %p228 = por %p226, %p227
    %p230 = scmp.ne.s32.totalorder %s215, %s229
    %p231 = scmp.eq.s32.totalorder %s22, 0
    %p232 = por %p230, %p231
    %s234 = sadd.s32 %s233, 1
    %p237 = scmp.eq.s32.totalorder %s16, 1
    %p238 = scmp.ne.s32.totalorder %s233, %s235
    %p239 = scmp.eq.s32.totalorder %s16, 0
    %p240 = por %p238, %p239
    %p241 = scmp.ne.s32.totalorder %s233, %s235
    %p242 = scmp.eq.s32.totalorder %s21, 1
    %p243 = por %p241, %p242
    %p244 = scmp.ne.s32.totalorder %s235, %s236
    %p245 = scmp.eq.s32.totalorder %s21, 0
    %p246 = por %p244, %p245
    %p247 = scmp.ne.s32.totalorder %s235, %s236
    %p248 = scmp.eq.s32.totalorder %s22, 1
    %p249 = por %p247, %p248
    %p251 = scmp.ne.s32.totalorder %s236, %s250
    %p252 = scmp.eq.s32.totalorder %s22, 0
    %p253 = por %p251, %p252
    %s254 = ssub.s32 %s16, %s23
    %p255 = scmp.eq.s32.totalorder %s254, 0
    %s257 = sadd.s32 %s256, 1
    %s258 = scalar_select %p255, %s256, %s257
    %p261 = pneg %p255
    %p262 = scmp.eq.s32.totalorder %s16, 1
    %p263 = por %p261, %p262
    %p264 = scmp.ne.s32.totalorder %s256, %s259
    %p265 = scmp.eq.s32.totalorder %s16, 0
    %p266 = por %p264, %p265
    %p267 = scmp.ne.s32.totalorder %s256, %s259
    %p268 = scmp.eq.s32.totalorder %s21, 1
    %p269 = por %p267, %p268
    %p270 = scmp.ne.s32.totalorder %s259, %s260
    %p271 = scmp.eq.s32.totalorder %s21, 0
    %p272 = por %p270, %p271
    %p273 = scmp.ne.s32.totalorder %s259, %s260
    %p274 = scmp.eq.s32.totalorder %s22, 1
    %p275 = por %p273, %p274
    %p277 = scmp.ne.s32.totalorder %s260, %s276
    %p278 = scmp.eq.s32.totalorder %s22, 0
    %p279 = por %p277, %p278
    %s280 = ssub.s32 %s16, %s23
    %p281 = scmp.eq.s32.totalorder %s280, 0
    %s283 = sadd.s32 %s282, 1
    %s284 = scalar_select %p281, %s282, %s283
    %p287 = pneg %p281
    %p288 = scmp.eq.s32.totalorder %s16, 1
    %p289 = por %p287, %p288
    %p290 = scmp.ne.s32.totalorder %s282, %s285
    %p291 = scmp.eq.s32.totalorder %s16, 0
    %p292 = por %p290, %p291
    %p293 = scmp.ne.s32.totalorder %s282, %s285
    %p294 = scmp.eq.s32.totalorder %s21, 1
    %p295 = por %p293, %p294
    %p296 = scmp.ne.s32.totalorder %s285, %s286
    %p297 = scmp.eq.s32.totalorder %s21, 0
    %p298 = por %p296, %p297
    %p299 = scmp.ne.s32.totalorder %s285, %s286
    %p300 = scmp.eq.s32.totalorder %s22, 1
    %p301 = por %p299, %p300
    %p303 = scmp.ne.s32.totalorder %s286, %s302
    %p304 = scmp.eq.s32.totalorder %s22, 0
    %p305 = por %p303, %p304
    %p306 = scmp.le.s32.totalorder 1, %s16
    %p307 = scmp.lt.s32.totalorder %s16, 3
    %p308 = pnand %p306, %p307
    %p309 = pneg %p308
    // Predicated region
    $region9: #{conv_norm_block_forward.4} parent=5 // pred_check
      _
    $region10: #{conv_norm_block_forward.4} parent=5 // pred_check_branch
      %311 = sbr.rel (%p308) target = $region12
    $region11: #{conv_norm_block_forward.4} parent=5 // pred_region
      %s312 = ssub.s32 %s16, 1
      // Predicated region
      $region13: #{conv_norm_block_forward.4} parent=11 // pred_check
        %p313 = pneg %p225
      $region14: #{conv_norm_block_forward.4} parent=11 // pred_check_branch
        %315 = sbr.rel (%p313) target = $region16
      $region15: #{conv_norm_block_forward.4} parent=11 // pred_region
        _
      $region16: #{conv_norm_block_forward.4} parent=11 // pred_fallthru
        _
      // Predicated region
      $region17: #{conv_norm_block_forward.4} parent=11 // pred_check
        %p316 = pneg %p246
      $region18: #{conv_norm_block_forward.4} parent=11 // pred_check_branch
        %318 = sbr.rel (%p316) target = $region20
      $region19: #{conv_norm_block_forward.4} parent=11 // pred_region
        _
      $region20: #{conv_norm_block_forward.4} parent=11 // pred_fallthru
        _
    $region12: #{conv_norm_block_forward.4} parent=5 // pred_fallthru
      _
    %p319 = scmp.lt.s32.totalorder %s16, 2
    // Predicated region
    $region21: #{conv_norm_block_forward.4} parent=5 // pred_check
      %p320 = pneg %p319
    $region22: #{conv_norm_block_forward.4} parent=5 // pred_check_branch
      %322 = sbr.rel (%p320) target = $region24
    $region23: #{conv_norm_block_forward.4} parent=5 // pred_region
      // Predicated region
      $region25: #{conv_norm_block_forward.4} parent=23 // pred_check
        %p323 = pneg %p44
      $region26: #{conv_norm_block_forward.4} parent=23 // pred_check_branch
        %325 = sbr.rel (%p323) target = $region28
      $region27: #{conv_norm_block_forward.4} parent=23 // pred_region
        %s326 = smul.u32 %s16, 7
        %s327 = ssub.s32 %s326, 1
        %p328 = scmp.gt.s32.totalorder %s327, 0
        %s329 = scalar_select %p328, %s327, 0
        %s330 = smul.u32 2, %s329
        %p331 = scmp.lt.s32.totalorder %s330, 27
        %s332 = scalar_select %p331, %s330, 27
        %s333 = smul.addr %s332, 4
        %s334 = scalar_lea.vmem %s0, %s333
        %s335 = smul.u32 %s16, 7
        %s336 = ssub.s32 %s335, 1
        %p337 = scmp.gt.s32.totalorder %s336, 0
        %s338 = scalar_select %p337, %s336, 0
        %s339 = smul.u32 2, %s338
      $region28: #{conv_norm_block_forward.4} parent=23 // pred_fallthru
        _
      // Predicated region
      $region29: #{conv_norm_block_forward.4} parent=23 // pred_check
        %p340 = pneg %p70
      $region30: #{conv_norm_block_forward.4} parent=23 // pred_check_branch
        %342 = sbr.rel (%p340) target = $region32
      $region31: #{conv_norm_block_forward.4} parent=23 // pred_region
        %s343 = smul.u32 14, %s16
        %p344 = scmp.lt.s32.totalorder %s343, 27
        %s345 = scalar_select %p344, %s343, 27
        %s346 = smul.addr %s345, 4
        %s347 = scalar_lea.vmem %s1, %s346
        %s348 = smul.u32 14, %s16
      $region32: #{conv_norm_block_forward.4} parent=23 // pred_fallthru
        _
      // Predicated region
      $region33: #{conv_norm_block_forward.4} parent=23 // pred_check
        %p349 = pneg %p104
      $region34: #{conv_norm_block_forward.4} parent=23 // pred_check_branch
        %351 = sbr.rel (%p349) target = $region36
      $region35: #{conv_norm_block_forward.4} parent=23 // pred_region
        %s352 = sadd.s32 %s16, 1
        %s353 = smul.u32 %s352, 7
        %p354 = scmp.lt.s32.totalorder %s353, 13
        %s355 = scalar_select %p354, %s353, 13
        %s356 = smul.u32 2, %s355
        %p357 = scmp.lt.s32.totalorder %s356, 27
        %s358 = scalar_select %p357, %s356, 27
        %s359 = smul.addr %s358, 4
        %s360 = scalar_lea.vmem %s2, %s359
        %s361 = sadd.s32 %s16, 1
        %s362 = smul.u32 %s361, 7
        %p363 = scmp.lt.s32.totalorder %s362, 13
        %s364 = scalar_select %p363, %s362, 13
        %s365 = smul.u32 2, %s364
      $region36: #{conv_norm_block_forward.4} parent=23 // pred_fallthru
        _
      // Predicated region
      $region37: #{conv_norm_block_forward.4} parent=23 // pred_check
        %p366 = pneg %p138
      $region38: #{conv_norm_block_forward.4} parent=23 // pred_check_branch
        %368 = sbr.rel (%p366) target = $region40
      $region39: #{conv_norm_block_forward.4} parent=23 // pred_region
        %s369 = smul.u32 %s16, 7
        %s370 = ssub.s32 %s369, 1
        %p371 = scmp.gt.s32.totalorder %s370, 0
        %s372 = scalar_select %p371, %s370, 0
        %s373 = smul.u32 2, %s372
        %p374 = scmp.lt.s32.totalorder %s373, 27
        %s375 = scalar_select %p374, %s373, 27
        %s376 = smul.addr %s375, 8
        %s377 = scalar_lea.vmem %s3, %s376
        %s378 = smul.u32 %s16, 7
        %s379 = ssub.s32 %s378, 1
        %p380 = scmp.gt.s32.totalorder %s379, 0
        %s381 = scalar_select %p380, %s379, 0
        %s382 = smul.u32 2, %s381
      $region40: #{conv_norm_block_forward.4} parent=23 // pred_fallthru
        _
      // Predicated region
      $region41: #{conv_norm_block_forward.4} parent=23 // pred_check
        %p383 = pneg %p164
      $region42: #{conv_norm_block_forward.4} parent=23 // pred_check_branch
        %385 = sbr.rel (%p383) target = $region44
      $region43: #{conv_norm_block_forward.4} parent=23 // pred_region
        %s386 = smul.u32 14, %s16
        %p387 = scmp.lt.s32.totalorder %s386, 27
        %s388 = scalar_select %p387, %s386, 27
        %s389 = smul.addr %s388, 8
        %s390 = scalar_lea.vmem %s4, %s389
        %s391 = smul.u32 14, %s16
      $region44: #{conv_norm_block_forward.4} parent=23 // pred_fallthru
        _
      // Predicated region
      $region45: #{conv_norm_block_forward.4} parent=23 // pred_check
        %p392 = pneg %p198
      $region46: #{conv_norm_block_forward.4} parent=23 // pred_check_branch
        %394 = sbr.rel (%p392) target = $region48
      $region47: #{conv_norm_block_forward.4} parent=23 // pred_region
        %s395 = sadd.s32 %s16, 1
        %s396 = smul.u32 %s395, 7
        %p397 = scmp.lt.s32.totalorder %s396, 13
        %s398 = scalar_select %p397, %s396, 13
        %s399 = smul.u32 2, %s398
        %p400 = scmp.lt.s32.totalorder %s399, 27
        %s401 = scalar_select %p400, %s399, 27
        %s402 = smul.addr %s401, 8
        %s403 = scalar_lea.vmem %s5, %s402
        %s404 = sadd.s32 %s16, 1
        %s405 = smul.u32 %s404, 7
        %p406 = scmp.lt.s32.totalorder %s405, 13
        %s407 = scalar_select %p406, %s405, 13
        %s408 = smul.u32 2, %s407
      $region48: #{conv_norm_block_forward.4} parent=23 // pred_fallthru
        _
    $region24: #{conv_norm_block_forward.4} parent=5 // pred_fallthru
      _
    %p409 = scmp.le.s32.totalorder 1, %s16
    %p410 = scmp.lt.s32.totalorder %s16, 3
    %p411 = pnand %p409, %p410
    %p412 = pneg %p411
    // Predicated region
    $region49: #{conv_norm_block_forward.4} parent=5 // pred_check
      _
    $region50: #{conv_norm_block_forward.4} parent=5 // pred_check_branch
      %414 = sbr.rel (%p411) target = $region52
    $region51: #{conv_norm_block_forward.4} parent=5 // pred_region
      %s415 = ssub.s32 %s16, 1
      %s416 = smul.u32 %s21, 7
      %s417 = ssub.s32 %s416, 1
      %p418 = scmp.gt.s32.totalorder %s417, 0
      %s419 = scalar_select %p418, %s417, 0
      %s420 = smul.u32 2, %s419
      %p421 = scmp.lt.s32.totalorder %s420, 27
      %s422 = scalar_select %p421, %s420, 27
      %s423 = smul.addr %s422, 4
      %s424 = scalar_lea.vmem %s0, %s423
      %p425 = pneg %p50
      %p426 = pneg %p47
      %s427 = smul.u32 14, %s21
      %p428 = scmp.lt.s32.totalorder %s427, 27
      %s429 = scalar_select %p428, %s427, 27
      %s430 = smul.addr %s429, 4
      %s431 = scalar_lea.vmem %s1, %s430
      %p432 = pneg %p76
      %p433 = pneg %p73
      %s434 = sadd.s32 %s21, 1
      %s435 = smul.u32 %s434, 7
      %p436 = scmp.lt.s32.totalorder %s435, 13
      %s437 = scalar_select %p436, %s435, 13
      %s438 = smul.u32 2, %s437
      %p439 = scmp.lt.s32.totalorder %s438, 27
      %s440 = scalar_select %p439, %s438, 27
      %s441 = smul.addr %s440, 4
      %s442 = scalar_lea.vmem %s2, %s441
      %p443 = pneg %p110
      %p444 = pneg %p107
      %s445 = smul.u32 %s21, 7
      %s446 = ssub.s32 %s445, 1
      %p447 = scmp.gt.s32.totalorder %s446, 0
      %s448 = scalar_select %p447, %s446, 0
      %s449 = smul.u32 2, %s448
      %p450 = scmp.lt.s32.totalorder %s449, 27
      %s451 = scalar_select %p450, %s449, 27
      %s452 = smul.addr %s451, 8
      %s453 = scalar_lea.vmem %s3, %s452
      %p454 = pneg %p144
      %p455 = pneg %p141
      %s456 = smul.u32 14, %s21
      %p457 = scmp.lt.s32.totalorder %s456, 27
      %s458 = scalar_select %p457, %s456, 27
      %s459 = smul.addr %s458, 8
      %s460 = scalar_lea.vmem %s4, %s459
      %p461 = pneg %p170
      %p462 = pneg %p167
      %s463 = sadd.s32 %s21, 1
      %s464 = smul.u32 %s463, 7
      %p465 = scmp.lt.s32.totalorder %s464, 13
      %s466 = scalar_select %p465, %s464, 13
      %s467 = smul.u32 2, %s466
      %p468 = scmp.lt.s32.totalorder %s467, 27
      %s469 = scalar_select %p468, %s467, 27
      %s470 = smul.addr %s469, 8
      %s471 = scalar_lea.vmem %s5, %s470
      %p472 = pneg %p204
      %p473 = pneg %p201
      %p474 = pneg %p225
      %p475 = pneg %p222
      %p476 = pneg %p246
      %p477 = pneg %p243
      %p478 = pneg %p272
      %p479 = pneg %p269
      %s480 = smul.u32 14, %s21
      %p481 = scmp.lt.s32.totalorder %s480, 27
      %s482 = scalar_select %p481, %s480, 27
      %s483 = smul.addr %s482, 4
      %s484 = scalar_lea.vmem %s8, %s483
      %p485 = pneg %p298
      %p486 = pneg %p295
      %p487 = scmp.lt.s32.totalorder %s21, 1
      %s488 = scalar_select %p487, %s21, 1
      %s489 = smul.addr %s488, 8
      %s490 = scalar_lea.vmem %s9, %s489
      %s491 = smul.u32 %s21, 7
      %s492 = ssub.s32 %s491, 1
      %p493 = scmp.gt.s32.totalorder %s492, 0
      %s494 = scalar_select %p493, %s492, 0
      %s495 = smul.u32 2, %s494
      %p496 = scmp.lt.s32.totalorder %s495, 27
      %s497 = scalar_select %p496, %s495, 27
      %s498 = smul.addr %s497, 4
      %s499 = scalar_lea.vmem %s0, %s498
      %s500 = smul.u32 %s21, 7
      %s501 = ssub.s32 %s500, 1
      %p502 = scmp.gt.s32.totalorder %s501, 0
      %s503 = scalar_select %p502, %s501, 0
      %s504 = smul.u32 2, %s503
      %s505 = smul.u32 14, %s21
      %p506 = scmp.lt.s32.totalorder %s505, 27
      %s507 = scalar_select %p506, %s505, 27
      %s508 = smul.addr %s507, 4
      %s509 = scalar_lea.vmem %s1, %s508
      %s510 = smul.u32 14, %s21
      %s511 = sadd.s32 %s21, 1
      %s512 = smul.u32 %s511, 7
      %p513 = scmp.lt.s32.totalorder %s512, 13
      %s514 = scalar_select %p513, %s512, 13
      %s515 = smul.u32 2, %s514
      %p516 = scmp.lt.s32.totalorder %s515, 27
      %s517 = scalar_select %p516, %s515, 27
      %s518 = smul.addr %s517, 4
      %s519 = scalar_lea.vmem %s2, %s518
      %s520 = sadd.s32 %s21, 1
      %s521 = smul.u32 %s520, 7
      %p522 = scmp.lt.s32.totalorder %s521, 13
      %s523 = scalar_select %p522, %s521, 13
      %s524 = smul.u32 2, %s523
      %s525 = smul.u32 %s21, 7
      %s526 = ssub.s32 %s525, 1
      %p527 = scmp.gt.s32.totalorder %s526, 0
      %s528 = scalar_select %p527, %s526, 0
      %s529 = smul.u32 2, %s528
      %p530 = scmp.lt.s32.totalorder %s529, 27
      %s531 = scalar_select %p530, %s529, 27
      %s532 = smul.addr %s531, 8
      %s533 = scalar_lea.vmem %s3, %s532
      %s534 = smul.u32 %s21, 7
      %s535 = ssub.s32 %s534, 1
      %p536 = scmp.gt.s32.totalorder %s535, 0
      %s537 = scalar_select %p536, %s535, 0
      %s538 = smul.u32 2, %s537
      %s539 = smul.u32 14, %s21
      %p540 = scmp.lt.s32.totalorder %s539, 27
      %s541 = scalar_select %p540, %s539, 27
      %s542 = smul.addr %s541, 8
      %s543 = scalar_lea.vmem %s4, %s542
      %s544 = smul.u32 14, %s21
      %s545 = sadd.s32 %s21, 1
      %s546 = smul.u32 %s545, 7
      %p547 = scmp.lt.s32.totalorder %s546, 13
      %s548 = scalar_select %p547, %s546, 13
      %s549 = smul.u32 2, %s548
      %p550 = scmp.lt.s32.totalorder %s549, 27
      %s551 = scalar_select %p550, %s549, 27
      %s552 = smul.addr %s551, 8
      %s553 = scalar_lea.vmem %s5, %s552
      %s554 = sadd.s32 %s21, 1
      %s555 = smul.u32 %s554, 7
      %p556 = scmp.lt.s32.totalorder %s555, 13
      %s557 = scalar_select %p556, %s555, 13
      %s558 = smul.u32 2, %s557
      %s559 = smul.u32 14, %s21
      %p560 = scmp.lt.s32.totalorder %s559, 27
      %s561 = scalar_select %p560, %s559, 27
      %s562 = smul.addr %s561, 4
      %s563 = scalar_lea.vmem %s8, %s562
      %s564 = smul.u32 14, %s21
      %p565 = scmp.lt.s32.totalorder %s21, 1
      %s566 = scalar_select %p565, %s21, 1
      %s567 = smul.addr %s566, 8
      %s568 = scalar_lea.vmem %s9, %s567
      %v569 = vld [vmem:[%s499] sm:$0xf]
      %v570 = vld [vmem:[%s499 + $0x4] sm:$0xf]
      %v571 = vld [vmem:[%s509] sm:$0xf]
      %v572 = vld [vmem:[%s509 + $0x4] sm:$0xf]
      %v573 = vld [vmem:[%s509 + $0x8] sm:$0xf]
      %v574 = vld [vmem:[%s509 + $0xc] sm:$0xf]
      %v575 = vld [vmem:[%s509 + $0x10] sm:$0xf]
      %v576 = vld [vmem:[%s509 + $0x14] sm:$0xf]
      %v577 = vld [vmem:[%s509 + $0x18] sm:$0xf]
      %v578 = vld [vmem:[%s509 + $0x1c] sm:$0xf]
      %v579 = vld [vmem:[%s509 + $0x20] sm:$0xf]
      %v580 = vld [vmem:[%s509 + $0x24] sm:$0xf]
      %v581 = vld [vmem:[%s509 + $0x28] sm:$0xf]
      %v582 = vld [vmem:[%s509 + $0x2c] sm:$0xf]
      %v583 = vld [vmem:[%s509 + $0x30] sm:$0xf]
      %v584 = vld [vmem:[%s509 + $0x34] sm:$0xf]
      %v585 = vld [vmem:[%s519] sm:$0xf]
      %v586 = vld [vmem:[%s519 + $0x4] sm:$0xf]
      %v589 = vunpack.c.l.b16 %v569
      %v590 = vunpack.c.l.b16 %v570
      %v591 = vpack.c.b16 %v590, %v589
      %v607 = vunpack.c.l.b16 %v571
      %v608 = vunpack.c.l.b16 %v572
      %v609 = vunpack.c.l.b16 %v573
      %v610 = vunpack.c.l.b16 %v574
      %v611 = vunpack.c.l.b16 %v575
      %v612 = vunpack.c.l.b16 %v576
      %v613 = vunpack.c.l.b16 %v577
      %v614 = vunpack.c.l.b16 %v578
      %v615 = vunpack.c.l.b16 %v579
      %v616 = vunpack.c.l.b16 %v580
      %v617 = vunpack.c.l.b16 %v581
      %v618 = vunpack.c.l.b16 %v582
      %v619 = vunpack.c.l.b16 %v583
      %v620 = vunpack.c.l.b16 %v584
      %v621 = vpack.c.b16 %v608, %v607
      %v622 = vpack.c.b16 %v610, %v609
      %v623 = vpack.c.b16 %v612, %v611
      %v624 = vpack.c.b16 %v614, %v613
      %v625 = vpack.c.b16 %v616, %v615
      %v626 = vpack.c.b16 %v618, %v617
      %v627 = vpack.c.b16 %v620, %v619
      %v637 = vunpack.c.l.b16 %v585
      %v638 = vunpack.c.l.b16 %v586
      %v639 = vpack.c.b16 %v638, %v637
      %v641 = vunpack.c.l.bf16 %v591
      %v642 = vunpack.c.h.bf16 %v591
      %v643 = vunpack.c.l.bf16 %v621
      %v644 = vunpack.c.h.bf16 %v621
      %v645 = vunpack.c.l.bf16 %v622
      %v646 = vunpack.c.h.bf16 %v622
      %v647 = vunpack.c.l.bf16 %v623
      %v648 = vunpack.c.h.bf16 %v623
      %v649 = vunpack.c.l.bf16 %v624
      %v650 = vunpack.c.h.bf16 %v624
      %v651 = vunpack.c.l.bf16 %v625
      %v652 = vunpack.c.h.bf16 %v625
      %v653 = vunpack.c.l.bf16 %v626
      %v654 = vunpack.c.h.bf16 %v626
      %v655 = vunpack.c.l.bf16 %v627
      %v656 = vunpack.c.h.bf16 %v627
      %v657 = vunpack.c.l.bf16 %v639
      %v658 = vunpack.c.h.bf16 %v639
      %v659 = vld [vmem:[%s533] sm:$0xff]
      %v660 = vld [vmem:[%s533 + $0x8] sm:$0xff]
      %v661 = vld [vmem:[%s543] sm:$0xff]
      %v662 = vld [vmem:[%s543 + $0x8] sm:$0xff]
      %v663 = vld [vmem:[%s543 + $0x10] sm:$0xff]
      %v664 = vld [vmem:[%s543 + $0x18] sm:$0xff]
      %v665 = vld [vmem:[%s543 + $0x20] sm:$0xff]
      %v666 = vld [vmem:[%s543 + $0x28] sm:$0xff]
      %v667 = vld [vmem:[%s543 + $0x30] sm:$0xff]
      %v668 = vld [vmem:[%s543 + $0x38] sm:$0xff]
      %v669 = vld [vmem:[%s543 + $0x40] sm:$0xff]
      %v670 = vld [vmem:[%s543 + $0x48] sm:$0xff]
      %v671 = vld [vmem:[%s543 + $0x50] sm:$0xff]
      %v672 = vld [vmem:[%s543 + $0x58] sm:$0xff]
      %v673 = vld [vmem:[%s543 + $0x60] sm:$0xff]
      %v674 = vld [vmem:[%s543 + $0x68] sm:$0xff]
      %v675 = vld [vmem:[%s553] sm:$0xff]
      %v676 = vld [vmem:[%s553 + $0x8] sm:$0xff]
      %v677 = vld [vmem:[%s7] sm:$0xff]
      %v678 = vperm.slane %v677, 0
      %v679 = vmul.f32 %v641, %v678
      %v680 = vmul.f32 %v642, %v678
      %v681 = vmul.f32 %v643, %v678
      %v682 = vmul.f32 %v644, %v678
      %v683 = vmul.f32 %v645, %v678
      %v684 = vmul.f32 %v646, %v678
      %v685 = vmul.f32 %v647, %v678
      %v686 = vmul.f32 %v648, %v678
      %v687 = vmul.f32 %v649, %v678
      %v688 = vmul.f32 %v650, %v678
      %v689 = vmul.f32 %v651, %v678
      %v690 = vmul.f32 %v652, %v678
      %v691 = vmul.f32 %v653, %v678
      %v692 = vmul.f32 %v654, %v678
      %v693 = vmul.f32 %v655, %v678
      %v694 = vmul.f32 %v656, %v678
      %v695 = vmul.f32 %v657, %v678
      %v696 = vmul.f32 %v658, %v678
      %v697 = vperm.slane %v677, 1
      %v698 = vadd.f32 %v679, %v697
      %v699 = vadd.f32 %v680, %v697
      %v700 = vadd.f32 %v681, %v697
      %v701 = vadd.f32 %v682, %v697
      %v702 = vadd.f32 %v683, %v697
      %v703 = vadd.f32 %v684, %v697
      %v704 = vadd.f32 %v685, %v697
      %v705 = vadd.f32 %v686, %v697
      %v706 = vadd.f32 %v687, %v697
      %v707 = vadd.f32 %v688, %v697
      %v708 = vadd.f32 %v689, %v697
      %v709 = vadd.f32 %v690, %v697
      %v710 = vadd.f32 %v691, %v697
      %v711 = vadd.f32 %v692, %v697
      %v712 = vadd.f32 %v693, %v697
      %v713 = vadd.f32 %v694, %v697
      %v714 = vadd.f32 %v695, %v697
      %v715 = vadd.f32 %v696, %v697
      %v716 = vmax.f32 %v698, 0.0
      %v717 = vmax.f32 %v699, 0.0
      %v718 = vmax.f32 %v700, 0.0
      %v719 = vmax.f32 %v701, 0.0
      %v720 = vmax.f32 %v702, 0.0
      %v721 = vmax.f32 %v703, 0.0
      %v722 = vmax.f32 %v704, 0.0
      %v723 = vmax.f32 %v705, 0.0
      %v724 = vmax.f32 %v706, 0.0
      %v725 = vmax.f32 %v707, 0.0
      %v726 = vmax.f32 %v708, 0.0
      %v727 = vmax.f32 %v709, 0.0
      %v728 = vmax.f32 %v710, 0.0
      %v729 = vmax.f32 %v711, 0.0
      %v730 = vmax.f32 %v712, 0.0
      %v731 = vmax.f32 %v713, 0.0
      %v732 = vmax.f32 %v714, 0.0
      %v733 = vmax.f32 %v715, 0.0
      %v734 = vmul.f32 %v716, 0.1
      %v735 = vmul.f32 %v717, 0.1
      %v736 = vmul.f32 %v718, 0.1
      %v737 = vmul.f32 %v719, 0.1
      %v738 = vmul.f32 %v720, 0.1
      %v739 = vmul.f32 %v721, 0.1
      %v740 = vmul.f32 %v722, 0.1
      %v741 = vmul.f32 %v723, 0.1
      %v742 = vmul.f32 %v724, 0.1
      %v743 = vmul.f32 %v725, 0.1
      %v744 = vmul.f32 %v726, 0.1
      %v745 = vmul.f32 %v727, 0.1
      %v746 = vmul.f32 %v728, 0.1
      %v747 = vmul.f32 %v729, 0.1
      %v748 = vmul.f32 %v730, 0.1
      %v749 = vmul.f32 %v731, 0.1
      %v750 = vmul.f32 %v732, 0.1
      %v751 = vmul.f32 %v733, 0.1
      %vm752 = vcmp.gt.f32.partialorder %v659, 0.0
      %vm753 = vcmp.gt.f32.partialorder %v660, 0.0
      %vm754 = vcmp.gt.f32.partialorder %v661, 0.0
      %vm755 = vcmp.gt.f32.partialorder %v662, 0.0
      %vm756 = vcmp.gt.f32.partialorder %v663, 0.0
      %vm757 = vcmp.gt.f32.partialorder %v664, 0.0
      %vm758 = vcmp.gt.f32.partialorder %v665, 0.0
      %vm759 = vcmp.gt.f32.partialorder %v666, 0.0
      %vm760 = vcmp.gt.f32.partialorder %v667, 0.0
      %vm761 = vcmp.gt.f32.partialorder %v668, 0.0
      %vm762 = vcmp.gt.f32.partialorder %v669, 0.0
      %vm763 = vcmp.gt.f32.partialorder %v670, 0.0
      %vm764 = vcmp.gt.f32.partialorder %v671, 0.0
      %vm765 = vcmp.gt.f32.partialorder %v672, 0.0
      %vm766 = vcmp.gt.f32.partialorder %v673, 0.0
      %vm767 = vcmp.gt.f32.partialorder %v674, 0.0
      %vm768 = vcmp.gt.f32.partialorder %v675, 0.0
      %vm769 = vcmp.gt.f32.partialorder %v676, 0.0
      %v770 = vsel %vm752, 1, 0
      %v771 = vsel %vm753, 1, 0
      %v772 = vsel %vm754, 1, 0
      %v773 = vsel %vm755, 1, 0
      %v774 = vsel %vm756, 1, 0
      %v775 = vsel %vm757, 1, 0
      %v776 = vsel %vm758, 1, 0
      %v777 = vsel %vm759, 1, 0
      %v778 = vsel %vm760, 1, 0
      %v779 = vsel %vm761, 1, 0
      %v780 = vsel %vm762, 1, 0
      %v781 = vsel %vm763, 1, 0
      %v782 = vsel %vm764, 1, 0
      %v783 = vsel %vm765, 1, 0
      %v784 = vsel %vm766, 1, 0
      %v785 = vsel %vm767, 1, 0
      %v786 = vsel %vm768, 1, 0
      %v787 = vsel %vm769, 1, 0
      %788 = vset.pattern.permute.xlu0 0
      %789 = vperm.xlu0 %788, %v770
      %v790 = vpop.permute.xlu0 %789
      %791 = vset.pattern.permute.xlu0 0
      %792 = vperm.xlu0 %791, %v771
      %v793 = vpop.permute.xlu0 %792
      %794 = vset.pattern.permute.xlu0 0
      %795 = vperm.xlu0 %794, %v772
      %v796 = vpop.permute.xlu0 %795
      %797 = vset.pattern.permute.xlu0 0
      %798 = vperm.xlu0 %797, %v773
      %v799 = vpop.permute.xlu0 %798
      %800 = vset.pattern.permute.xlu0 0
      %801 = vperm.xlu0 %800, %v774
      %v802 = vpop.permute.xlu0 %801
      %803 = vset.pattern.permute.xlu0 0
      %804 = vperm.xlu0 %803, %v775
      %v805 = vpop.permute.xlu0 %804
      %806 = vset.pattern.permute.xlu0 0
      %807 = vperm.xlu0 %806, %v776
      %v808 = vpop.permute.xlu0 %807
      %809 = vset.pattern.permute.xlu0 0
      %810 = vperm.xlu0 %809, %v777
      %v811 = vpop.permute.xlu0 %810
      %812 = vset.pattern.permute.xlu0 0
      %813 = vperm.xlu0 %812, %v778
      %v814 = vpop.permute.xlu0 %813
      %815 = vset.pattern.permute.xlu0 0
      %816 = vperm.xlu0 %815, %v779
      %v817 = vpop.permute.xlu0 %816
      %818 = vset.pattern.permute.xlu0 0
      %819 = vperm.xlu0 %818, %v780
      %v820 = vpop.permute.xlu0 %819
      %821 = vset.pattern.permute.xlu0 0
      %822 = vperm.xlu0 %821, %v781
      %v823 = vpop.permute.xlu0 %822
      %824 = vset.pattern.permute.xlu0 0
      %825 = vperm.xlu0 %824, %v782
      %v826 = vpop.permute.xlu0 %825
      %827 = vset.pattern.permute.xlu0 0
      %828 = vperm.xlu0 %827, %v783
      %v829 = vpop.permute.xlu0 %828
      %830 = vset.pattern.permute.xlu0 0
      %831 = vperm.xlu0 %830, %v784
      %v832 = vpop.permute.xlu0 %831
      %833 = vset.pattern.permute.xlu0 0
      %834 = vperm.xlu0 %833, %v785
      %v835 = vpop.permute.xlu0 %834
      %836 = vset.pattern.permute.xlu0 0
      %837 = vperm.xlu0 %836, %v786
      %v838 = vpop.permute.xlu0 %837
      %839 = vset.pattern.permute.xlu0 0
      %840 = vperm.xlu0 %839, %v787
      %v841 = vpop.permute.xlu0 %840
      %vm842 = vcmp.eq.s32.totalorder %v790, 1
      %vm843 = vcmp.eq.s32.totalorder %v793, 1
      %vm844 = vcmp.eq.s32.totalorder %v796, 1
      %vm845 = vcmp.eq.s32.totalorder %v799, 1
      %vm846 = vcmp.eq.s32.totalorder %v802, 1
      %vm847 = vcmp.eq.s32.totalorder %v805, 1
      %vm848 = vcmp.eq.s32.totalorder %v808, 1
      %vm849 = vcmp.eq.s32.totalorder %v811, 1
      %vm850 = vcmp.eq.s32.totalorder %v814, 1
      %vm851 = vcmp.eq.s32.totalorder %v817, 1
      %vm852 = vcmp.eq.s32.totalorder %v820, 1
      %vm853 = vcmp.eq.s32.totalorder %v823, 1
      %vm854 = vcmp.eq.s32.totalorder %v826, 1
      %vm855 = vcmp.eq.s32.totalorder %v829, 1
      %vm856 = vcmp.eq.s32.totalorder %v832, 1
      %vm857 = vcmp.eq.s32.totalorder %v835, 1
      %vm858 = vcmp.eq.s32.totalorder %v838, 1
      %vm859 = vcmp.eq.s32.totalorder %v841, 1
      %v860 = vsel %vm842, %v734, 0.0
      %v861 = vsel %vm843, %v735, 0.0
      %v862 = vsel %vm844, %v736, 0.0
      %v863 = vsel %vm845, %v737, 0.0
      %v864 = vsel %vm846, %v738, 0.0
      %v865 = vsel %vm847, %v739, 0.0
      %v866 = vsel %vm848, %v740, 0.0
      %v867 = vsel %vm849, %v741, 0.0
      %v868 = vsel %vm850, %v742, 0.0
      %v869 = vsel %vm851, %v743, 0.0
      %v870 = vsel %vm852, %v744, 0.0
      %v871 = vsel %vm853, %v745, 0.0
      %v872 = vsel %vm854, %v746, 0.0
      %v873 = vsel %vm855, %v747, 0.0
      %v874 = vsel %vm856, %v748, 0.0
      %v875 = vsel %vm857, %v749, 0.0
      %v876 = vsel %vm858, %v750, 0.0
      %v877 = vsel %vm859, %v751, 0.0
      %v878 = vld [vmem:[%s6] sm:$0xff]
      %v879 = vld [vmem:[%s6 + $0x8] sm:$0xff]
      %v880 = vld [vmem:[%s6 + $0x10] sm:$0xff]
      %v881 = vld [vmem:[%s6 + $0x18] sm:$0xff]
      %s882 = scalar_lea.vmem %s6, 32
      %v883 = vld [vmem:[%s882] sm:$0xff]
      %v884 = vld [vmem:[%s882 + $0x8] sm:$0xff]
      %v885 = vld [vmem:[%s882 + $0x10] sm:$0xff]
      %v886 = vld [vmem:[%s882 + $0x18] sm:$0xff]
      %vm902 = vcmask 1041408
      %v903 = vrot.slane %v860, 6
      %v904 = vrot.slane %v861, 6
      %v905 = vsel %vm902, %v903, %v904
      %v906 = vrot.slane %v862, 6
      %v907 = vsel %vm902, %v904, %v906
      %v908 = vrot.slane %v863, 6
      %v909 = vsel %vm902, %v906, %v908
      %v910 = vrot.slane %v864, 6
      %v911 = vsel %vm902, %v908, %v910
      %v912 = vrot.slane %v865, 6
      %v913 = vsel %vm902, %v910, %v912
      %v914 = vrot.slane %v866, 6
      %v915 = vsel %vm902, %v912, %v914
      %v916 = vrot.slane %v867, 6
      %v917 = vsel %vm902, %v914, %v916
      %v918 = vrot.slane %v868, 6
      %v919 = vsel %vm902, %v916, %v918
      %v920 = vrot.slane %v869, 6
      %v921 = vsel %vm902, %v918, %v920
      %v922 = vrot.slane %v870, 6
      %v923 = vsel %vm902, %v920, %v922
      %v924 = vrot.slane %v871, 6
      %v925 = vsel %vm902, %v922, %v924
      %v926 = vrot.slane %v872, 6
      %v927 = vsel %vm902, %v924, %v926
      %v928 = vrot.slane %v873, 6
      %v929 = vsel %vm902, %v926, %v928
      %v930 = vrot.slane %v874, 6
      %v931 = vsel %vm902, %v928, %v930
      %vm932 = vcmask 261120
      %v933 = vsel %vm932, %v905, 0
      %v935 = vsel %vm932, %v907, 0
      %v937 = vsel %vm932, %v909, 0
      %v939 = vsel %vm932, %v911, 0
      %v941 = vsel %vm932, %v913, 0
      %v943 = vsel %vm932, %v915, 0
      %v945 = vsel %vm932, %v917, 0
      %v947 = vsel %vm932, %v919, 0
      %v949 = vsel %vm932, %v921, 0
      %v951 = vsel %vm932, %v923, 0
      %v953 = vsel %vm932, %v925, 0
      %v955 = vsel %vm932, %v927, 0
      %v957 = vsel %vm932, %v929, 0
      %v959 = vsel %vm932, %v931, 0
      %961 = vmatpush.msra.mxu0 0.0
      %962 = vmatpush.msra.mxu0 0.0
      %963 = vmatpush.msra.mxu0 0.0
      %964 = vmatpush.msra.mxu0 0.0
      %965 = vmatpush.msra.mxu0 0.0
      %966 = vmatpush.msra.mxu0 0.0
      %967 = vmatpush.msra.mxu0 0.0
      %968 = vmatpush.msra.mxu0 0.0
      %969 = vmatpush.msra.mxu0 0.0
      %970 = vmatpush.msra.mxu0 0.0
      %971 = vmatpush.msra.mxu0 0.0
      %972 = vmatpush.msra.mxu0 0.0
      %973 = vmatpush.msra.mxu0 %v886
      %974 = vmatpush.msra.mxu0 %v885
      %975 = vmatpush.msra.mxu0 %v884
      %976 = vmatpush.msra.mxu0 %v883
      %977 = vmatmul.f32.gmra.mxu0 %v933
      %v978 = vpop.f32.mrf.mxu0
      %v979 = vadd.f32 0.0, %v978
      %980 = vmatmul.f32.gmra.mxu0 %v935
      %v981 = vpop.f32.mrf.mxu0
      %v982 = vadd.f32 0.0, %v981
      %983 = vmatmul.f32.gmra.mxu0 %v937
      %v984 = vpop.f32.mrf.mxu0
      %v985 = vadd.f32 0.0, %v984
      %986 = vmatmul.f32.gmra.mxu0 %v939
      %v987 = vpop.f32.mrf.mxu0
      %v988 = vadd.f32 0.0, %v987
      %989 = vmatmul.f32.gmra.mxu0 %v941
      %v990 = vpop.f32.mrf.mxu0
      %v991 = vadd.f32 0.0, %v990
      %992 = vmatmul.f32.gmra.mxu0 %v943
      %v993 = vpop.f32.mrf.mxu0
      %v994 = vadd.f32 0.0, %v993
      %995 = vmatmul.f32.gmra.mxu0 %v945
      %v996 = vpop.f32.mrf.mxu0
      %v997 = vadd.f32 0.0, %v996
      %998 = vmatmul.f32.gmra.mxu0 %v947
      %v999 = vpop.f32.mrf.mxu0
      %v1000 = vadd.f32 0.0, %v999
      %1001 = vmatmul.f32.gmra.mxu0 %v949
      %v1002 = vpop.f32.mrf.mxu0
      %v1003 = vadd.f32 0.0, %v1002
      %1004 = vmatmul.f32.gmra.mxu0 %v951
      %v1005 = vpop.f32.mrf.mxu0
      %v1006 = vadd.f32 0.0, %v1005
      %1007 = vmatmul.f32.gmra.mxu0 %v953
      %v1008 = vpop.f32.mrf.mxu0
      %v1009 = vadd.f32 0.0, %v1008
      %1010 = vmatmul.f32.gmra.mxu0 %v955
      %v1011 = vpop.f32.mrf.mxu0
      %v1012 = vadd.f32 0.0, %v1011
      %1013 = vmatmul.f32.gmra.mxu0 %v957
      %v1014 = vpop.f32.mrf.mxu0
      %v1015 = vadd.f32 0.0, %v1014
      %1016 = vmatmul.f32.gmra.mxu0 %v959
      %v1017 = vpop.f32.mrf.mxu0
      %v1018 = vadd.f32 0.0, %v1017
      %1019 = vdwg.mxu0
      %vm1020 = vcmask 1042432
      %v1021 = vrot.slane %v860, 5
      %v1022 = vrot.slane %v861, 5
      %v1023 = vsel %vm1020, %v1021, %v1022
      %v1024 = vrot.slane %v862, 5
      %v1025 = vsel %vm1020, %v1022, %v1024
      %v1026 = vrot.slane %v863, 5
      %v1027 = vsel %vm1020, %v1024, %v1026
      %v1028 = vrot.slane %v864, 5
      %v1029 = vsel %vm1020, %v1026, %v1028
      %v1030 = vrot.slane %v865, 5
      %v1031 = vsel %vm1020, %v1028, %v1030
      %v1032 = vrot.slane %v866, 5
      %v1033 = vsel %vm1020, %v1030, %v1032
      %v1034 = vrot.slane %v867, 5
      %v1035 = vsel %vm1020, %v1032, %v1034
      %v1036 = vrot.slane %v868, 5
      %v1037 = vsel %vm1020, %v1034, %v1036
      %v1038 = vrot.slane %v869, 5
      %v1039 = vsel %vm1020, %v1036, %v1038
      %v1040 = vrot.slane %v870, 5
      %v1041 = vsel %vm1020, %v1038, %v1040
      %v1042 = vrot.slane %v871, 5
      %v1043 = vsel %vm1020, %v1040, %v1042
      %v1044 = vrot.slane %v872, 5
      %v1045 = vsel %vm1020, %v1042, %v1044
      %v1046 = vrot.slane %v873, 5
      %v1047 = vsel %vm1020, %v1044, %v1046
      %v1048 = vrot.slane %v874, 5
      %v1049 = vsel %vm1020, %v1046, %v1048
      %v1050 = vsel %vm932, %v1023, 0
      %v1052 = vsel %vm932, %v1025, 0
      %v1054 = vsel %vm932, %v1027, 0
      %v1056 = vsel %vm932, %v1029, 0
      %v1058 = vsel %vm932, %v1031, 0
      %v1060 = vsel %vm932, %v1033, 0
      %v1062 = vsel %vm932, %v1035, 0
      %v1064 = vsel %vm932, %v1037, 0
      %v1066 = vsel %vm932, %v1039, 0
      %v1068 = vsel %vm932, %v1041, 0
      %v1070 = vsel %vm932, %v1043, 0
      %v1072 = vsel %vm932, %v1045, 0
      %v1074 = vsel %vm932, %v1047, 0
      %v1076 = vsel %vm932, %v1049, 0
      %1078 = vmatpush.msra.mxu0 0.0
      %1079 = vmatpush.msra.mxu0 0.0
      %1080 = vmatpush.msra.mxu0 0.0
      %1081 = vmatpush.msra.mxu0 0.0
      %1082 = vmatpush.msra.mxu0 0.0
      %1083 = vmatpush.msra.mxu0 0.0
      %1084 = vmatpush.msra.mxu0 0.0
      %1085 = vmatpush.msra.mxu0 0.0
      %1086 = vmatpush.msra.mxu0 0.0
      %1087 = vmatpush.msra.mxu0 0.0
      %1088 = vmatpush.msra.mxu0 0.0
      %1089 = vmatpush.msra.mxu0 0.0
      %1090 = vmatpush.msra.mxu0 %v881
      %1091 = vmatpush.msra.mxu0 %v880
      %1092 = vmatpush.msra.mxu0 %v879
      %1093 = vmatpush.msra.mxu0 %v878
      %1094 = vmatmul.f32.gmra.mxu0 %v1050
      %v1095 = vpop.f32.mrf.mxu0
      %v1096 = vadd.f32 %v979, %v1095
      %1097 = vmatmul.f32.gmra.mxu0 %v1052
      %v1098 = vpop.f32.mrf.mxu0
      %v1099 = vadd.f32 %v982, %v1098
      %1100 = vmatmul.f32.gmra.mxu0 %v1054
      %v1101 = vpop.f32.mrf.mxu0
      %v1102 = vadd.f32 %v985, %v1101
      %1103 = vmatmul.f32.gmra.mxu0 %v1056
      %v1104 = vpop.f32.mrf.mxu0
      %v1105 = vadd.f32 %v988, %v1104
      %1106 = vmatmul.f32.gmra.mxu0 %v1058
      %v1107 = vpop.f32.mrf.mxu0
      %v1108 = vadd.f32 %v991, %v1107
      %1109 = vmatmul.f32.gmra.mxu0 %v1060
      %v1110 = vpop.f32.mrf.mxu0
      %v1111 = vadd.f32 %v994, %v1110
      %1112 = vmatmul.f32.gmra.mxu0 %v1062
      %v1113 = vpop.f32.mrf.mxu0
      %v1114 = vadd.f32 %v997, %v1113
      %1115 = vmatmul.f32.gmra.mxu0 %v1064
      %v1116 = vpop.f32.mrf.mxu0
      %v1117 = vadd.f32 %v1000, %v1116
      %1118 = vmatmul.f32.gmra.mxu0 %v1066
      %v1119 = vpop.f32.mrf.mxu0
      %v1120 = vadd.f32 %v1003, %v1119
      %1121 = vmatmul.f32.gmra.mxu0 %v1068
      %v1122 = vpop.f32.mrf.mxu0
      %v1123 = vadd.f32 %v1006, %v1122
      %1124 = vmatmul.f32.gmra.mxu0 %v1070
      %v1125 = vpop.f32.mrf.mxu0
      %v1126 = vadd.f32 %v1009, %v1125
      %1127 = vmatmul.f32.gmra.mxu0 %v1072
      %v1128 = vpop.f32.mrf.mxu0
      %v1129 = vadd.f32 %v1012, %v1128
      %1130 = vmatmul.f32.gmra.mxu0 %v1074
      %v1131 = vpop.f32.mrf.mxu0
      %v1132 = vadd.f32 %v1015, %v1131
      %1133 = vmatmul.f32.gmra.mxu0 %v1076
      %v1134 = vpop.f32.mrf.mxu0
      %v1135 = vadd.f32 %v1018, %v1134
      %1136 = vdwg.mxu0
      %s1137 = scalar_lea.vmem %s6, 64
      %v1138 = vld [vmem:[%s1137] sm:$0xff]
      %v1139 = vld [vmem:[%s1137 + $0x8] sm:$0xff]
      %v1140 = vld [vmem:[%s1137 + $0x10] sm:$0xff]
      %v1141 = vld [vmem:[%s1137 + $0x18] sm:$0xff]
      %vm1142 = vcmask 1040384
      %v1143 = vrot.slane %v860, 7
      %v1144 = vrot.slane %v861, 7
      %v1145 = vsel %vm1142, %v1143, %v1144
      %v1146 = vrot.slane %v862, 7
      %v1147 = vsel %vm1142, %v1144, %v1146
      %v1148 = vrot.slane %v863, 7
      %v1149 = vsel %vm1142, %v1146, %v1148
      %v1150 = vrot.slane %v864, 7
      %v1151 = vsel %vm1142, %v1148, %v1150
      %v1152 = vrot.slane %v865, 7
      %v1153 = vsel %vm1142, %v1150, %v1152
      %v1154 = vrot.slane %v866, 7
      %v1155 = vsel %vm1142, %v1152, %v1154
      %v1156 = vrot.slane %v867, 7
      %v1157 = vsel %vm1142, %v1154, %v1156
      %v1158 = vrot.slane %v868, 7
      %v1159 = vsel %vm1142, %v1156, %v1158
      %v1160 = vrot.slane %v869, 7
      %v1161 = vsel %vm1142, %v1158, %v1160
      %v1162 = vrot.slane %v870, 7
      %v1163 = vsel %vm1142, %v1160, %v1162
      %v1164 = vrot.slane %v871, 7
      %v1165 = vsel %vm1142, %v1162, %v1164
      %v1166 = vrot.slane %v872, 7
      %v1167 = vsel %vm1142, %v1164, %v1166
      %v1168 = vrot.slane %v873, 7
      %v1169 = vsel %vm1142, %v1166, %v1168
      %v1170 = vrot.slane %v874, 7
      %v1171 = vsel %vm1142, %v1168, %v1170
      %v1172 = vsel %vm932, %v1145, 0
      %v1174 = vsel %vm932, %v1147, 0
      %v1176 = vsel %vm932, %v1149, 0
      %v1178 = vsel %vm932, %v1151, 0
      %v1180 = vsel %vm932, %v1153, 0
      %v1182 = vsel %vm932, %v1155, 0
      %v1184 = vsel %vm932, %v1157, 0
      %v1186 = vsel %vm932, %v1159, 0
      %v1188 = vsel %vm932, %v1161, 0
      %v1190 = vsel %vm932, %v1163, 0
      %v1192 = vsel %vm932, %v1165, 0
      %v1194 = vsel %vm932, %v1167, 0
      %v1196 = vsel %vm932, %v1169, 0
      %v1198 = vsel %vm932, %v1171, 0
      %1200 = vmatpush.msra.mxu0 0.0
      %1201 = vmatpush.msra.mxu0 0.0
      %1202 = vmatpush.msra.mxu0 0.0
      %1203 = vmatpush.msra.mxu0 0.0
      %1204 = vmatpush.msra.mxu0 0.0
      %1205 = vmatpush.msra.mxu0 0.0
      %1206 = vmatpush.msra.mxu0 0.0
      %1207 = vmatpush.msra.mxu0 0.0
      %1208 = vmatpush.msra.mxu0 0.0
      %1209 = vmatpush.msra.mxu0 0.0
      %1210 = vmatpush.msra.mxu0 0.0
      %1211 = vmatpush.msra.mxu0 0.0
      %1212 = vmatpush.msra.mxu0 %v1141
      %1213 = vmatpush.msra.mxu0 %v1140
      %1214 = vmatpush.msra.mxu0 %v1139
      %1215 = vmatpush.msra.mxu0 %v1138
      %1216 = vmatmul.f32.gmra.mxu0 %v1172
      %v1217 = vpop.f32.mrf.mxu0
      %v1218 = vadd.f32 0.0, %v1217
      %1219 = vmatmul.f32.gmra.mxu0 %v1174
      %v1220 = vpop.f32.mrf.mxu0
      %v1221 = vadd.f32 0.0, %v1220
      %1222 = vmatmul.f32.gmra.mxu0 %v1176
      %v1223 = vpop.f32.mrf.mxu0
      %v1224 = vadd.f32 0.0, %v1223
      %1225 = vmatmul.f32.gmra.mxu0 %v1178
      %v1226 = vpop.f32.mrf.mxu0
      %v1227 = vadd.f32 0.0, %v1226
      %1228 = vmatmul.f32.gmra.mxu0 %v1180
      %v1229 = vpop.f32.mrf.mxu0
      %v1230 = vadd.f32 0.0, %v1229
      %1231 = vmatmul.f32.gmra.mxu0 %v1182
      %v1232 = vpop.f32.mrf.mxu0
      %v1233 = vadd.f32 0.0, %v1232
      %1234 = vmatmul.f32.gmra.mxu0 %v1184
      %v1235 = vpop.f32.mrf.mxu0
      %v1236 = vadd.f32 0.0, %v1235
      %1237 = vmatmul.f32.gmra.mxu0 %v1186
      %v1238 = vpop.f32.mrf.mxu0
      %v1239 = vadd.f32 0.0, %v1238
      %1240 = vmatmul.f32.gmra.mxu0 %v1188
      %v1241 = vpop.f32.mrf.mxu0
      %v1242 = vadd.f32 0.0, %v1241
      %1243 = vmatmul.f32.gmra.mxu0 %v1190
      %v1244 = vpop.f32.mrf.mxu0
      %v1245 = vadd.f32 0.0, %v1244
      %1246 = vmatmul.f32.gmra.mxu0 %v1192
      %v1247 = vpop.f32.mrf.mxu0
      %v1248 = vadd.f32 0.0, %v1247
      %1249 = vmatmul.f32.gmra.mxu0 %v1194
      %v1250 = vpop.f32.mrf.mxu0
      %v1251 = vadd.f32 0.0, %v1250
      %1252 = vmatmul.f32.gmra.mxu0 %v1196
      %v1253 = vpop.f32.mrf.mxu0
      %v1254 = vadd.f32 0.0, %v1253
      %1255 = vmatmul.f32.gmra.mxu0 %v1198
      %v1256 = vpop.f32.mrf.mxu0
      %v1257 = vadd.f32 0.0, %v1256
      %1258 = vdwg.mxu0
      %v1259 = vadd.f32 %v1096, %v1218
      %v1260 = vadd.f32 %v1099, %v1221
      %v1261 = vadd.f32 %v1102, %v1224
      %v1262 = vadd.f32 %v1105, %v1227
      %v1263 = vadd.f32 %v1108, %v1230
      %v1264 = vadd.f32 %v1111, %v1233
      %v1265 = vadd.f32 %v1114, %v1236
      %v1266 = vadd.f32 %v1117, %v1239
      %v1267 = vadd.f32 %v1120, %v1242
      %v1268 = vadd.f32 %v1123, %v1245
      %v1269 = vadd.f32 %v1126, %v1248
      %v1270 = vadd.f32 %v1129, %v1251
      %v1271 = vadd.f32 %v1132, %v1254
      %v1272 = vadd.f32 %v1135, %v1257
      %s1273 = scalar_lea.vmem %s6, 96
      %v1274 = vld [vmem:[%s1273] sm:$0xff]
      %v1275 = vld [vmem:[%s1273 + $0x8] sm:$0xff]
      %v1276 = vld [vmem:[%s1273 + $0x10] sm:$0xff]
      %v1277 = vld [vmem:[%s1273 + $0x18] sm:$0xff]
      %v1279 = vrot.slane %v875, 7
      %v1280 = vsel %vm1142, %v1170, %v1279
      %v1281 = vsel %vm932, %v1280, 0
      %1283 = vmatpush.msra.mxu0 0.0
      %1284 = vmatpush.msra.mxu0 0.0
      %1285 = vmatpush.msra.mxu0 0.0
      %1286 = vmatpush.msra.mxu0 0.0
      %1287 = vmatpush.msra.mxu0 0.0
      %1288 = vmatpush.msra.mxu0 0.0
      %1289 = vmatpush.msra.mxu0 0.0
      %1290 = vmatpush.msra.mxu0 0.0
      %1291 = vmatpush.msra.mxu0 0.0
      %1292 = vmatpush.msra.mxu0 0.0
      %1293 = vmatpush.msra.mxu0 0.0
      %1294 = vmatpush.msra.mxu0 0.0
      %1295 = vmatpush.msra.mxu0 %v1277
      %1296 = vmatpush.msra.mxu0 %v1276
      %1297 = vmatpush.msra.mxu0 %v1275
      %1298 = vmatpush.msra.mxu0 %v1274
      %1299 = vmatmul.f32.gmra.mxu0 %v1174
      %v1300 = vpop.f32.mrf.mxu0
      %v1301 = vadd.f32 0.0, %v1300
      %1302 = vmatmul.f32.gmra.mxu0 %v1176
      %v1303 = vpop.f32.mrf.mxu0
      %v1304 = vadd.f32 0.0, %v1303
      %1305 = vmatmul.f32.gmra.mxu0 %v1178
      %v1306 = vpop.f32.mrf.mxu0
      %v1307 = vadd.f32 0.0, %v1306
      %1308 = vmatmul.f32.gmra.mxu0 %v1180
      %v1309 = vpop.f32.mrf.mxu0
      %v1310 = vadd.f32 0.0, %v1309
      %1311 = vmatmul.f32.gmra.mxu0 %v1182
      %v1312 = vpop.f32.mrf.mxu0
      %v1313 = vadd.f32 0.0, %v1312
      %1314 = vmatmul.f32.gmra.mxu0 %v1184
      %v1315 = vpop.f32.mrf.mxu0
      %v1316 = vadd.f32 0.0, %v1315
      %1317 = vmatmul.f32.gmra.mxu0 %v1186
      %v1318 = vpop.f32.mrf.mxu0
      %v1319 = vadd.f32 0.0, %v1318
      %1320 = vmatmul.f32.gmra.mxu0 %v1188
      %v1321 = vpop.f32.mrf.mxu0
      %v1322 = vadd.f32 0.0, %v1321
      %1323 = vmatmul.f32.gmra.mxu0 %v1190
      %v1324 = vpop.f32.mrf.mxu0
      %v1325 = vadd.f32 0.0, %v1324
      %1326 = vmatmul.f32.gmra.mxu0 %v1192
      %v1327 = vpop.f32.mrf.mxu0
      %v1328 = vadd.f32 0.0, %v1327
      %1329 = vmatmul.f32.gmra.mxu0 %v1194
      %v1330 = vpop.f32.mrf.mxu0
      %v1331 = vadd.f32 0.0, %v1330
      %1332 = vmatmul.f32.gmra.mxu0 %v1196
      %v1333 = vpop.f32.mrf.mxu0
      %v1334 = vadd.f32 0.0, %v1333
      %1335 = vmatmul.f32.gmra.mxu0 %v1198
      %v1336 = vpop.f32.mrf.mxu0
      %v1337 = vadd.f32 0.0, %v1336
      %1338 = vmatmul.f32.gmra.mxu0 %v1281
      %v1339 = vpop.f32.mrf.mxu0
      %v1340 = vadd.f32 0.0, %v1339
      %1341 = vdwg.mxu0
      %v1342 = vadd.f32 %v1259, %v1301
      %v1343 = vadd.f32 %v1260, %v1304
      %v1344 = vadd.f32 %v1261, %v1307
      %v1345 = vadd.f32 %v1262, %v1310
      %v1346 = vadd.f32 %v1263, %v1313
      %v1347 = vadd.f32 %v1264, %v1316
      %v1348 = vadd.f32 %v1265, %v1319
      %v1349 = vadd.f32 %v1266, %v1322
      %v1350 = vadd.f32 %v1267, %v1325
      %v1351 = vadd.f32 %v1268, %v1328
      %v1352 = vadd.f32 %v1269, %v1331
      %v1353 = vadd.f32 %v1270, %v1334
      %v1354 = vadd.f32 %v1271, %v1337
      %v1355 = vadd.f32 %v1272, %v1340
      %s1356 = scalar_lea.vmem %s6, 128
      %v1357 = vld [vmem:[%s1356] sm:$0xff]
      %v1358 = vld [vmem:[%s1356 + $0x8] sm:$0xff]
      %v1359 = vld [vmem:[%s1356 + $0x10] sm:$0xff]
      %v1360 = vld [vmem:[%s1356 + $0x18] sm:$0xff]
      %v1361 = vsel %vm932, %v862, 0
      %v1363 = vsel %vm932, %v863, 0
      %v1365 = vsel %vm932, %v864, 0
      %v1367 = vsel %vm932, %v865, 0
      %v1369 = vsel %vm932, %v866, 0
      %v1371 = vsel %vm932, %v867, 0
      %v1373 = vsel %vm932, %v868, 0
      %v1375 = vsel %vm932, %v869, 0
      %v1377 = vsel %vm932, %v870, 0
      %v1379 = vsel %vm932, %v871, 0
      %v1381 = vsel %vm932, %v872, 0
      %v1383 = vsel %vm932, %v873, 0
      %v1385 = vsel %vm932, %v874, 0
      %v1387 = vsel %vm932, %v875, 0
      %1389 = vmatpush.msra.mxu0 0.0
      %1390 = vmatpush.msra.mxu0 0.0
      %1391 = vmatpush.msra.mxu0 0.0
      %1392 = vmatpush.msra.mxu0 0.0
      %1393 = vmatpush.msra.mxu0 0.0
      %1394 = vmatpush.msra.mxu0 0.0
      %1395 = vmatpush.msra.mxu0 0.0
      %1396 = vmatpush.msra.mxu0 0.0
      %1397 = vmatpush.msra.mxu0 0.0
      %1398 = vmatpush.msra.mxu0 0.0
      %1399 = vmatpush.msra.mxu0 0.0
      %1400 = vmatpush.msra.mxu0 0.0
      %1401 = vmatpush.msra.mxu0 %v1360
      %1402 = vmatpush.msra.mxu0 %v1359
      %1403 = vmatpush.msra.mxu0 %v1358
      %1404 = vmatpush.msra.mxu0 %v1357
      %1405 = vmatmul.f32.gmra.mxu0 %v1361
      %v1406 = vpop.f32.mrf.mxu0
      %v1407 = vadd.f32 0.0, %v1406
      %1408 = vmatmul.f32.gmra.mxu0 %v1363
      %v1409 = vpop.f32.mrf.mxu0
      %v1410 = vadd.f32 0.0, %v1409
      %1411 = vmatmul.f32.gmra.mxu0 %v1365
      %v1412 = vpop.f32.mrf.mxu0
      %v1413 = vadd.f32 0.0, %v1412
      %1414 = vmatmul.f32.gmra.mxu0 %v1367
      %v1415 = vpop.f32.mrf.mxu0
      %v1416 = vadd.f32 0.0, %v1415
      %1417 = vmatmul.f32.gmra.mxu0 %v1369
      %v1418 = vpop.f32.mrf.mxu0
      %v1419 = vadd.f32 0.0, %v1418
      %1420 = vmatmul.f32.gmra.mxu0 %v1371
      %v1421 = vpop.f32.mrf.mxu0
      %v1422 = vadd.f32 0.0, %v1421
      %1423 = vmatmul.f32.gmra.mxu0 %v1373
      %v1424 = vpop.f32.mrf.mxu0
      %v1425 = vadd.f32 0.0, %v1424
      %1426 = vmatmul.f32.gmra.mxu0 %v1375
      %v1427 = vpop.f32.mrf.mxu0
      %v1428 = vadd.f32 0.0, %v1427
      %1429 = vmatmul.f32.gmra.mxu0 %v1377
      %v1430 = vpop.f32.mrf.mxu0
      %v1431 = vadd.f32 0.0, %v1430
      %1432 = vmatmul.f32.gmra.mxu0 %v1379
      %v1433 = vpop.f32.mrf.mxu0
      %v1434 = vadd.f32 0.0, %v1433
      %1435 = vmatmul.f32.gmra.mxu0 %v1381
      %v1436 = vpop.f32.mrf.mxu0
      %v1437 = vadd.f32 0.0, %v1436
      %1438 = vmatmul.f32.gmra.mxu0 %v1383
      %v1439 = vpop.f32.mrf.mxu0
      %v1440 = vadd.f32 0.0, %v1439
      %1441 = vmatmul.f32.gmra.mxu0 %v1385
      %v1442 = vpop.f32.mrf.mxu0
      %v1443 = vadd.f32 0.0, %v1442
      %1444 = vmatmul.f32.gmra.mxu0 %v1387
      %v1445 = vpop.f32.mrf.mxu0
      %v1446 = vadd.f32 0.0, %v1445
      %1447 = vdwg.mxu0
      %v1448 = vadd.f32 %v1342, %v1407
      %v1449 = vadd.f32 %v1343, %v1410
      %v1450 = vadd.f32 %v1344, %v1413
      %v1451 = vadd.f32 %v1345, %v1416
      %v1452 = vadd.f32 %v1346, %v1419
      %v1453 = vadd.f32 %v1347, %v1422
      %v1454 = vadd.f32 %v1348, %v1425
      %v1455 = vadd.f32 %v1349, %v1428
      %v1456 = vadd.f32 %v1350, %v1431
      %v1457 = vadd.f32 %v1351, %v1434
      %v1458 = vadd.f32 %v1352, %v1437
      %v1459 = vadd.f32 %v1353, %v1440
      %v1460 = vadd.f32 %v1354, %v1443
      %v1461 = vadd.f32 %v1355, %v1446
      %s1462 = scalar_lea.vmem %s6, 160
      %v1463 = vld [vmem:[%s1462] sm:$0xff]
      %v1464 = vld [vmem:[%s1462 + $0x8] sm:$0xff]
      %v1465 = vld [vmem:[%s1462 + $0x10] sm:$0xff]
      %v1466 = vld [vmem:[%s1462 + $0x18] sm:$0xff]
      %vm1468 = vcmask 1046528
      %v1469 = vrot.slane %v862, 1
      %v1470 = vrot.slane %v863, 1
      %v1471 = vsel %vm1468, %v1469, %v1470
      %v1472 = vrot.slane %v864, 1
      %v1473 = vsel %vm1468, %v1470, %v1472
      %v1474 = vrot.slane %v865, 1
      %v1475 = vsel %vm1468, %v1472, %v1474
      %v1476 = vrot.slane %v866, 1
      %v1477 = vsel %vm1468, %v1474, %v1476
      %v1478 = vrot.slane %v867, 1
      %v1479 = vsel %vm1468, %v1476, %v1478
      %v1480 = vrot.slane %v868, 1
      %v1481 = vsel %vm1468, %v1478, %v1480
      %v1482 = vrot.slane %v869, 1
      %v1483 = vsel %vm1468, %v1480, %v1482
      %v1484 = vrot.slane %v870, 1
      %v1485 = vsel %vm1468, %v1482, %v1484
      %v1486 = vrot.slane %v871, 1
      %v1487 = vsel %vm1468, %v1484, %v1486
      %v1488 = vrot.slane %v872, 1
      %v1489 = vsel %vm1468, %v1486, %v1488
      %v1490 = vrot.slane %v873, 1
      %v1491 = vsel %vm1468, %v1488, %v1490
      %v1492 = vrot.slane %v874, 1
      %v1493 = vsel %vm1468, %v1490, %v1492
      %v1494 = vrot.slane %v875, 1
      %v1495 = vsel %vm1468, %v1492, %v1494
      %v1496 = vrot.slane %v876, 1
      %v1497 = vsel %vm1468, %v1494, %v1496
      %v1498 = vsel %vm932, %v1471, 0
      %v1500 = vsel %vm932, %v1473, 0
      %v1502 = vsel %vm932, %v1475, 0
      %v1504 = vsel %vm932, %v1477, 0
      %v1506 = vsel %vm932, %v1479, 0
      %v1508 = vsel %vm932, %v1481, 0
      %v1510 = vsel %vm932, %v1483, 0
      %v1512 = vsel %vm932, %v1485, 0
      %v1514 = vsel %vm932, %v1487, 0
      %v1516 = vsel %vm932, %v1489, 0
      %v1518 = vsel %vm932, %v1491, 0
      %v1520 = vsel %vm932, %v1493, 0
      %v1522 = vsel %vm932, %v1495, 0
      %v1524 = vsel %vm932, %v1497, 0
      %1526 = vmatpush.msra.mxu0 0.0
      %1527 = vmatpush.msra.mxu0 0.0
      %1528 = vmatpush.msra.mxu0 0.0
      %1529 = vmatpush.msra.mxu0 0.0
      %1530 = vmatpush.msra.mxu0 0.0
      %1531 = vmatpush.msra.mxu0 0.0
      %1532 = vmatpush.msra.mxu0 0.0
      %1533 = vmatpush.msra.mxu0 0.0
      %1534 = vmatpush.msra.mxu0 0.0
      %1535 = vmatpush.msra.mxu0 0.0
      %1536 = vmatpush.msra.mxu0 0.0
      %1537 = vmatpush.msra.mxu0 0.0
      %1538 = vmatpush.msra.mxu0 %v1466
      %1539 = vmatpush.msra.mxu0 %v1465
      %1540 = vmatpush.msra.mxu0 %v1464
      %1541 = vmatpush.msra.mxu0 %v1463
      %1542 = vmatmul.f32.gmra.mxu0 %v1498
      %v1543 = vpop.f32.mrf.mxu0
      %v1544 = vadd.f32 0.0, %v1543
      %1545 = vmatmul.f32.gmra.mxu0 %v1500
      %v1546 = vpop.f32.mrf.mxu0
      %v1547 = vadd.f32 0.0, %v1546
      %1548 = vmatmul.f32.gmra.mxu0 %v1502
      %v1549 = vpop.f32.mrf.mxu0
      %v1550 = vadd.f32 0.0, %v1549
      %1551 = vmatmul.f32.gmra.mxu0 %v1504
      %v1552 = vpop.f32.mrf.mxu0
      %v1553 = vadd.f32 0.0, %v1552
      %1554 = vmatmul.f32.gmra.mxu0 %v1506
      %v1555 = vpop.f32.mrf.mxu0
      %v1556 = vadd.f32 0.0, %v1555
      %1557 = vmatmul.f32.gmra.mxu0 %v1508
      %v1558 = vpop.f32.mrf.mxu0
      %v1559 = vadd.f32 0.0, %v1558
      %1560 = vmatmul.f32.gmra.mxu0 %v1510
      %v1561 = vpop.f32.mrf.mxu0
      %v1562 = vadd.f32 0.0, %v1561
      %1563 = vmatmul.f32.gmra.mxu0 %v1512
      %v1564 = vpop.f32.mrf.mxu0
      %v1565 = vadd.f32 0.0, %v1564
      %1566 = vmatmul.f32.gmra.mxu0 %v1514
      %v1567 = vpop.f32.mrf.mxu0
      %v1568 = vadd.f32 0.0, %v1567
      %1569 = vmatmul.f32.gmra.mxu0 %v1516
      %v1570 = vpop.f32.mrf.mxu0
      %v1571 = vadd.f32 0.0, %v1570
      %1572 = vmatmul.f32.gmra.mxu0 %v1518
      %v1573 = vpop.f32.mrf.mxu0
      %v1574 = vadd.f32 0.0, %v1573
      %1575 = vmatmul.f32.gmra.mxu0 %v1520
      %v1576 = vpop.f32.mrf.mxu0
      %v1577 = vadd.f32 0.0, %v1576
      %1578 = vmatmul.f32.gmra.mxu0 %v1522
      %v1579 = vpop.f32.mrf.mxu0
      %v1580 = vadd.f32 0.0, %v1579
      %1581 = vmatmul.f32.gmra.mxu0 %v1524
      %v1582 = vpop.f32.mrf.mxu0
      %v1583 = vadd.f32 0.0, %v1582
      %1584 = vdwg.mxu0
      %v1585 = vadd.f32 %v1448, %v1544
      %v1586 = vadd.f32 %v1449, %v1547
      %v1587 = vadd.f32 %v1450, %v1550
      %v1588 = vadd.f32 %v1451, %v1553
      %v1589 = vadd.f32 %v1452, %v1556
      %v1590 = vadd.f32 %v1453, %v1559
      %v1591 = vadd.f32 %v1454, %v1562
      %v1592 = vadd.f32 %v1455, %v1565
      %v1593 = vadd.f32 %v1456, %v1568
      %v1594 = vadd.f32 %v1457, %v1571
      %v1595 = vadd.f32 %v1458, %v1574
      %v1596 = vadd.f32 %v1459, %v1577
      %v1597 = vadd.f32 %v1460, %v1580
      %v1598 = vadd.f32 %v1461, %v1583
      %s1599 = scalar_lea.vmem %s6, 192
      %v1600 = vld [vmem:[%s1599] sm:$0xff]
      %v1601 = vld [vmem:[%s1599 + $0x8] sm:$0xff]
      %v1602 = vld [vmem:[%s1599 + $0x10] sm:$0xff]
      %v1603 = vld [vmem:[%s1599 + $0x18] sm:$0xff]
      %v1605 = vrot.slane %v877, 1
      %v1606 = vsel %vm1468, %v1496, %v1605
      %v1607 = vsel %vm932, %v1606, 0
      %1609 = vmatpush.msra.mxu0 0.0
      %1610 = vmatpush.msra.mxu0 0.0
      %1611 = vmatpush.msra.mxu0 0.0
      %1612 = vmatpush.msra.mxu0 0.0
      %1613 = vmatpush.msra.mxu0 0.0
      %1614 = vmatpush.msra.mxu0 0.0
      %1615 = vmatpush.msra.mxu0 0.0
      %1616 = vmatpush.msra.mxu0 0.0
      %1617 = vmatpush.msra.mxu0 0.0
      %1618 = vmatpush.msra.mxu0 0.0
      %1619 = vmatpush.msra.mxu0 0.0
      %1620 = vmatpush.msra.mxu0 0.0
      %1621 = vmatpush.msra.mxu0 %v1603
      %1622 = vmatpush.msra.mxu0 %v1602
      %1623 = vmatpush.msra.mxu0 %v1601
      %1624 = vmatpush.msra.mxu0 %v1600
      %1625 = vmatmul.f32.gmra.mxu0 %v1500
      %v1626 = vpop.f32.mrf.mxu0
      %v1627 = vadd.f32 0.0, %v1626
      %1628 = vmatmul.f32.gmra.mxu0 %v1502
      %v1629 = vpop.f32.mrf.mxu0
      %v1630 = vadd.f32 0.0, %v1629
      %1631 = vmatmul.f32.gmra.mxu0 %v1504
      %v1632 = vpop.f32.mrf.mxu0
      %v1633 = vadd.f32 0.0, %v1632
      %1634 = vmatmul.f32.gmra.mxu0 %v1506
      %v1635 = vpop.f32.mrf.mxu0
      %v1636 = vadd.f32 0.0, %v1635
      %1637 = vmatmul.f32.gmra.mxu0 %v1508
      %v1638 = vpop.f32.mrf.mxu0
      %v1639 = vadd.f32 0.0, %v1638
      %1640 = vmatmul.f32.gmra.mxu0 %v1510
      %v1641 = vpop.f32.mrf.mxu0
      %v1642 = vadd.f32 0.0, %v1641
      %1643 = vmatmul.f32.gmra.mxu0 %v1512
      %v1644 = vpop.f32.mrf.mxu0
      %v1645 = vadd.f32 0.0, %v1644
      %1646 = vmatmul.f32.gmra.mxu0 %v1514
      %v1647 = vpop.f32.mrf.mxu0
      %v1648 = vadd.f32 0.0, %v1647
      %1649 = vmatmul.f32.gmra.mxu0 %v1516
      %v1650 = vpop.f32.mrf.mxu0
      %v1651 = vadd.f32 0.0, %v1650
      %1652 = vmatmul.f32.gmra.mxu0 %v1518
      %v1653 = vpop.f32.mrf.mxu0
      %v1654 = vadd.f32 0.0, %v1653
      %1655 = vmatmul.f32.gmra.mxu0 %v1520
      %v1656 = vpop.f32.mrf.mxu0
      %v1657 = vadd.f32 0.0, %v1656
      %1658 = vmatmul.f32.gmra.mxu0 %v1522
      %v1659 = vpop.f32.mrf.mxu0
      %v1660 = vadd.f32 0.0, %v1659
      %1661 = vmatmul.f32.gmra.mxu0 %v1524
      %v1662 = vpop.f32.mrf.mxu0
      %v1663 = vadd.f32 0.0, %v1662
      %1664 = vmatmul.f32.gmra.mxu0 %v1607
      %v1665 = vpop.f32.mrf.mxu0
      %v1666 = vadd.f32 0.0, %v1665
      %1667 = vdwg.mxu0
      %v1668 = vadd.f32 %v1585, %v1627
      %v1669 = vadd.f32 %v1586, %v1630
      %v1670 = vadd.f32 %v1587, %v1633
      %v1671 = vadd.f32 %v1588, %v1636
      %v1672 = vadd.f32 %v1589, %v1639
      %v1673 = vadd.f32 %v1590, %v1642
      %v1674 = vadd.f32 %v1591, %v1645
      %v1675 = vadd.f32 %v1592, %v1648
      %v1676 = vadd.f32 %v1593, %v1651
      %v1677 = vadd.f32 %v1594, %v1654
      %v1678 = vadd.f32 %v1595, %v1657
      %v1679 = vadd.f32 %v1596, %v1660
      %v1680 = vadd.f32 %v1597, %v1663
      %v1681 = vadd.f32 %v1598, %v1666
      %s1682 = scalar_lea.vmem %s6, 224
      %v1683 = vld [vmem:[%s1682] sm:$0xff]
      %v1684 = vld [vmem:[%s1682 + $0x8] sm:$0xff]
      %v1685 = vld [vmem:[%s1682 + $0x10] sm:$0xff]
      %v1686 = vld [vmem:[%s1682 + $0x18] sm:$0xff]
      %vm1687 = vcmask 1045504
      %v1688 = vrot.slane %v863, 2
      %v1689 = vrot.slane %v864, 2
      %v1690 = vsel %vm1687, %v1688, %v1689
      %v1691 = vrot.slane %v865, 2
      %v1692 = vsel %vm1687, %v1689, %v1691
      %v1693 = vrot.slane %v866, 2
      %v1694 = vsel %vm1687, %v1691, %v1693
      %v1695 = vrot.slane %v867, 2
      %v1696 = vsel %vm1687, %v1693, %v1695
      %v1697 = vrot.slane %v868, 2
      %v1698 = vsel %vm1687, %v1695, %v1697
      %v1699 = vrot.slane %v869, 2
      %v1700 = vsel %vm1687, %v1697, %v1699
      %v1701 = vrot.slane %v870, 2
      %v1702 = vsel %vm1687, %v1699, %v1701
      %v1703 = vrot.slane %v871, 2
      %v1704 = vsel %vm1687, %v1701, %v1703
      %v1705 = vrot.slane %v872, 2
      %v1706 = vsel %vm1687, %v1703, %v1705
      %v1707 = vrot.slane %v873, 2
      %v1708 = vsel %vm1687, %v1705, %v1707
      %v1709 = vrot.slane %v874, 2
      %v1710 = vsel %vm1687, %v1707, %v1709
      %v1711 = vrot.slane %v875, 2
      %v1712 = vsel %vm1687, %v1709, %v1711
      %v1713 = vrot.slane %v876, 2
      %v1714 = vsel %vm1687, %v1711, %v1713
      %v1715 = vrot.slane %v877, 2
      %v1716 = vsel %vm1687, %v1713, %v1715
      %v1717 = vsel %vm932, %v1690, 0
      %v1719 = vsel %vm932, %v1692, 0
      %v1721 = vsel %vm932, %v1694, 0
      %v1723 = vsel %vm932, %v1696, 0
      %v1725 = vsel %vm932, %v1698, 0
      %v1727 = vsel %vm932, %v1700, 0
      %v1729 = vsel %vm932, %v1702, 0
      %v1731 = vsel %vm932, %v1704, 0
      %v1733 = vsel %vm932, %v1706, 0
      %v1735 = vsel %vm932, %v1708, 0
      %v1737 = vsel %vm932, %v1710, 0
      %v1739 = vsel %vm932, %v1712, 0
      %v1741 = vsel %vm932, %v1714, 0
      %v1743 = vsel %vm932, %v1716, 0
      %1745 = vmatpush.msra.mxu0 0.0
      %1746 = vmatpush.msra.mxu0 0.0
      %1747 = vmatpush.msra.mxu0 0.0
      %1748 = vmatpush.msra.mxu0 0.0
      %1749 = vmatpush.msra.mxu0 0.0
      %1750 = vmatpush.msra.mxu0 0.0
      %1751 = vmatpush.msra.mxu0 0.0
      %1752 = vmatpush.msra.mxu0 0.0
      %1753 = vmatpush.msra.mxu0 0.0
      %1754 = vmatpush.msra.mxu0 0.0
      %1755 = vmatpush.msra.mxu0 0.0
      %1756 = vmatpush.msra.mxu0 0.0
      %1757 = vmatpush.msra.mxu0 %v1686
      %1758 = vmatpush.msra.mxu0 %v1685
      %1759 = vmatpush.msra.mxu0 %v1684
      %1760 = vmatpush.msra.mxu0 %v1683
      %1761 = vmatmul.f32.gmra.mxu0 %v1717
      %v1762 = vpop.f32.mrf.mxu0
      %v1763 = vadd.f32 0.0, %v1762
      %1764 = vmatmul.f32.gmra.mxu0 %v1719
      %v1765 = vpop.f32.mrf.mxu0
      %v1766 = vadd.f32 0.0, %v1765
      %1767 = vmatmul.f32.gmra.mxu0 %v1721
      %v1768 = vpop.f32.mrf.mxu0
      %v1769 = vadd.f32 0.0, %v1768
      %1770 = vmatmul.f32.gmra.mxu0 %v1723
      %v1771 = vpop.f32.mrf.mxu0
      %v1772 = vadd.f32 0.0, %v1771
      %1773 = vmatmul.f32.gmra.mxu0 %v1725
      %v1774 = vpop.f32.mrf.mxu0
      %v1775 = vadd.f32 0.0, %v1774
      %1776 = vmatmul.f32.gmra.mxu0 %v1727
      %v1777 = vpop.f32.mrf.mxu0
      %v1778 = vadd.f32 0.0, %v1777
      %1779 = vmatmul.f32.gmra.mxu0 %v1729
      %v1780 = vpop.f32.mrf.mxu0
      %v1781 = vadd.f32 0.0, %v1780
      %1782 = vmatmul.f32.gmra.mxu0 %v1731
      %v1783 = vpop.f32.mrf.mxu0
      %v1784 = vadd.f32 0.0, %v1783
      %1785 = vmatmul.f32.gmra.mxu0 %v1733
      %v1786 = vpop.f32.mrf.mxu0
      %v1787 = vadd.f32 0.0, %v1786
      %1788 = vmatmul.f32.gmra.mxu0 %v1735
      %v1789 = vpop.f32.mrf.mxu0
      %v1790 = vadd.f32 0.0, %v1789
      %1791 = vmatmul.f32.gmra.mxu0 %v1737
      %v1792 = vpop.f32.mrf.mxu0
      %v1793 = vadd.f32 0.0, %v1792
      %1794 = vmatmul.f32.gmra.mxu0 %v1739
      %v1795 = vpop.f32.mrf.mxu0
      %v1796 = vadd.f32 0.0, %v1795
      %1797 = vmatmul.f32.gmra.mxu0 %v1741
      %v1798 = vpop.f32.mrf.mxu0
      %v1799 = vadd.f32 0.0, %v1798
      %1800 = vmatmul.f32.gmra.mxu0 %v1743
      %v1801 = vpop.f32.mrf.mxu0
      %v1802 = vadd.f32 0.0, %v1801
      %1803 = vdwg.mxu0
      %v1804 = vadd.f32 %v1668, %v1763
      %v1805 = vadd.f32 %v1669, %v1766
      %v1806 = vadd.f32 %v1670, %v1769
      %v1807 = vadd.f32 %v1671, %v1772
      %v1808 = vadd.f32 %v1672, %v1775
      %v1809 = vadd.f32 %v1673, %v1778
      %v1810 = vadd.f32 %v1674, %v1781
      %v1811 = vadd.f32 %v1675, %v1784
      %v1812 = vadd.f32 %v1676, %v1787
      %v1813 = vadd.f32 %v1677, %v1790
      %v1814 = vadd.f32 %v1678, %v1793
      %v1815 = vadd.f32 %v1679, %v1796
      %v1816 = vadd.f32 %v1680, %v1799
      %v1817 = vadd.f32 %v1681, %v1802
      %s1818 = scalar_lea.vmem %s6, 256
      %v1819 = vld [vmem:[%s1818] sm:$0xff]
      %v1820 = vld [vmem:[%s1818 + $0x8] sm:$0xff]
      %v1821 = vld [vmem:[%s1818 + $0x10] sm:$0xff]
      %v1822 = vld [vmem:[%s1818 + $0x18] sm:$0xff]
      %vm1823 = vcmask 1044480
      %v1824 = vrot.slane %v863, 3
      %v1825 = vrot.slane %v864, 3
      %v1826 = vsel %vm1823, %v1824, %v1825
      %v1827 = vrot.slane %v865, 3
      %v1828 = vsel %vm1823, %v1825, %v1827
      %v1829 = vrot.slane %v866, 3
      %v1830 = vsel %vm1823, %v1827, %v1829
      %v1831 = vrot.slane %v867, 3
      %v1832 = vsel %vm1823, %v1829, %v1831
      %v1833 = vrot.slane %v868, 3
      %v1834 = vsel %vm1823, %v1831, %v1833
      %v1835 = vrot.slane %v869, 3
      %v1836 = vsel %vm1823, %v1833, %v1835
      %v1837 = vrot.slane %v870, 3
      %v1838 = vsel %vm1823, %v1835, %v1837
      %v1839 = vrot.slane %v871, 3
      %v1840 = vsel %vm1823, %v1837, %v1839
      %v1841 = vrot.slane %v872, 3
      %v1842 = vsel %vm1823, %v1839, %v1841
      %v1843 = vrot.slane %v873, 3
      %v1844 = vsel %vm1823, %v1841, %v1843
      %v1845 = vrot.slane %v874, 3
      %v1846 = vsel %vm1823, %v1843, %v1845
      %v1847 = vrot.slane %v875, 3
      %v1848 = vsel %vm1823, %v1845, %v1847
      %v1849 = vrot.slane %v876, 3
      %v1850 = vsel %vm1823, %v1847, %v1849
      %v1851 = vrot.slane %v877, 3
      %v1852 = vsel %vm1823, %v1849, %v1851
      %v1853 = vsel %vm932, %v1826, 0
      %v1855 = vsel %vm932, %v1828, 0
      %v1857 = vsel %vm932, %v1830, 0
      %v1859 = vsel %vm932, %v1832, 0
      %v1861 = vsel %vm932, %v1834, 0
      %v1863 = vsel %vm932, %v1836, 0
      %v1865 = vsel %vm932, %v1838, 0
      %v1867 = vsel %vm932, %v1840, 0
      %v1869 = vsel %vm932, %v1842, 0
      %v1871 = vsel %vm932, %v1844, 0
      %v1873 = vsel %vm932, %v1846, 0
      %v1875 = vsel %vm932, %v1848, 0
      %v1877 = vsel %vm932, %v1850, 0
      %v1879 = vsel %vm932, %v1852, 0
      %1881 = vmatpush.msra.mxu0 0.0
      %1882 = vmatpush.msra.mxu0 0.0
      %1883 = vmatpush.msra.mxu0 0.0
      %1884 = vmatpush.msra.mxu0 0.0
      %1885 = vmatpush.msra.mxu0 0.0
      %1886 = vmatpush.msra.mxu0 0.0
      %1887 = vmatpush.msra.mxu0 0.0
      %1888 = vmatpush.msra.mxu0 0.0
      %1889 = vmatpush.msra.mxu0 0.0
      %1890 = vmatpush.msra.mxu0 0.0
      %1891 = vmatpush.msra.mxu0 0.0
      %1892 = vmatpush.msra.mxu0 0.0
      %1893 = vmatpush.msra.mxu0 %v1822
      %1894 = vmatpush.msra.mxu0 %v1821
      %1895 = vmatpush.msra.mxu0 %v1820
      %1896 = vmatpush.msra.mxu0 %v1819
      %1897 = vmatmul.f32.gmra.mxu0 %v1853
      %v1898 = vpop.f32.mrf.mxu0
      %v1899 = vadd.f32 0.0, %v1898
      %1900 = vmatmul.f32.gmra.mxu0 %v1855
      %v1901 = vpop.f32.mrf.mxu0
      %v1902 = vadd.f32 0.0, %v1901
      %1903 = vmatmul.f32.gmra.mxu0 %v1857
      %v1904 = vpop.f32.mrf.mxu0
      %v1905 = vadd.f32 0.0, %v1904
      %1906 = vmatmul.f32.gmra.mxu0 %v1859
      %v1907 = vpop.f32.mrf.mxu0
      %v1908 = vadd.f32 0.0, %v1907
      %1909 = vmatmul.f32.gmra.mxu0 %v1861
      %v1910 = vpop.f32.mrf.mxu0
      %v1911 = vadd.f32 0.0, %v1910
      %1912 = vmatmul.f32.gmra.mxu0 %v1863
      %v1913 = vpop.f32.mrf.mxu0
      %v1914 = vadd.f32 0.0, %v1913
      %1915 = vmatmul.f32.gmra.mxu0 %v1865
      %v1916 = vpop.f32.mrf.mxu0
      %v1917 = vadd.f32 0.0, %v1916
      %1918 = vmatmul.f32.gmra.mxu0 %v1867
      %v1919 = vpop.f32.mrf.mxu0
      %v1920 = vadd.f32 0.0, %v1919
      %1921 = vmatmul.f32.gmra.mxu0 %v1869
      %v1922 = vpop.f32.mrf.mxu0
      %v1923 = vadd.f32 0.0, %v1922
      %1924 = vmatmul.f32.gmra.mxu0 %v1871
      %v1925 = vpop.f32.mrf.mxu0
      %v1926 = vadd.f32 0.0, %v1925
      %1927 = vmatmul.f32.gmra.mxu0 %v1873
      %v1928 = vpop.f32.mrf.mxu0
      %v1929 = vadd.f32 0.0, %v1928
      %1930 = vmatmul.f32.gmra.mxu0 %v1875
      %v1931 = vpop.f32.mrf.mxu0
      %v1932 = vadd.f32 0.0, %v1931
      %1933 = vmatmul.f32.gmra.mxu0 %v1877
      %v1934 = vpop.f32.mrf.mxu0
      %v1935 = vadd.f32 0.0, %v1934
      %1936 = vmatmul.f32.gmra.mxu0 %v1879
      %v1937 = vpop.f32.mrf.mxu0
      %v1938 = vadd.f32 0.0, %v1937
      %1939 = vdwg.mxu0
      %v1940 = vadd.f32 %v1804, %v1899
      %v1941 = vadd.f32 %v1805, %v1902
      %v1942 = vadd.f32 %v1806, %v1905
      %v1943 = vadd.f32 %v1807, %v1908
      %v1944 = vadd.f32 %v1808, %v1911
      %v1945 = vadd.f32 %v1809, %v1914
      %v1946 = vadd.f32 %v1810, %v1917
      %v1947 = vadd.f32 %v1811, %v1920
      %v1948 = vadd.f32 %v1812, %v1923
      %v1949 = vadd.f32 %v1813, %v1926
      %v1950 = vadd.f32 %v1814, %v1929
      %v1951 = vadd.f32 %v1815, %v1932
      %v1952 = vadd.f32 %v1816, %v1935
      %v1953 = vadd.f32 %v1817, %v1938
      %v1954 = vpack.c.bf16 %v1940, %v1940
      %v1955 = vpack.c.bf16 %v1941, %v1941
      %v1956 = vpack.c.bf16 %v1942, %v1942
      %v1957 = vpack.c.bf16 %v1943, %v1943
      %v1958 = vpack.c.bf16 %v1944, %v1944
      %v1959 = vpack.c.bf16 %v1945, %v1945
      %v1960 = vpack.c.bf16 %v1946, %v1946
      %v1961 = vpack.c.bf16 %v1947, %v1947
      %v1962 = vpack.c.bf16 %v1948, %v1948
      %v1963 = vpack.c.bf16 %v1949, %v1949
      %v1964 = vpack.c.bf16 %v1950, %v1950
      %v1965 = vpack.c.bf16 %v1951, %v1951
      %v1966 = vpack.c.bf16 %v1952, %v1952
      %v1967 = vpack.c.bf16 %v1953, %v1953
      %vm1968 = vcmask 257024
      %1969 = vst.msk [vmem:[%s563] sm:$0xf] %vm1968, %v1954
      %1970 = vst.msk [vmem:[%s563 + $0x4] sm:$0xf] %vm1968, %v1955
      %1971 = vst.msk [vmem:[%s563 + $0x8] sm:$0xf] %vm1968, %v1956
      %1972 = vst.msk [vmem:[%s563 + $0xc] sm:$0xf] %vm1968, %v1957
      %1973 = vst.msk [vmem:[%s563 + $0x10] sm:$0xf] %vm1968, %v1958
      %1974 = vst.msk [vmem:[%s563 + $0x14] sm:$0xf] %vm1968, %v1959
      %1975 = vst.msk [vmem:[%s563 + $0x18] sm:$0xf] %vm1968, %v1960
      %1976 = vst.msk [vmem:[%s563 + $0x1c] sm:$0xf] %vm1968, %v1961
      %1977 = vst.msk [vmem:[%s563 + $0x20] sm:$0xf] %vm1968, %v1962
      %1978 = vst.msk [vmem:[%s563 + $0x24] sm:$0xf] %vm1968, %v1963
      %1979 = vst.msk [vmem:[%s563 + $0x28] sm:$0xf] %vm1968, %v1964
      %1980 = vst.msk [vmem:[%s563 + $0x2c] sm:$0xf] %vm1968, %v1965
      %1981 = vst.msk [vmem:[%s563 + $0x30] sm:$0xf] %vm1968, %v1966
      %1982 = vst.msk [vmem:[%s563 + $0x34] sm:$0xf] %vm1968, %v1967
      %1984 = vset.pattern.permute.xlu0 0
      %1985 = vperm.xlu0 %1984, %v661
      %v1986 = vpop.permute.xlu0 %1985
      %1989 = vset.pattern.permute.xlu0 0
      %1990 = vperm.xlu0 %1989, %v662
      %v1991 = vpop.permute.xlu0 %1990
      %1994 = vset.pattern.permute.xlu0 0
      %1995 = vperm.xlu0 %1994, %v663
      %v1996 = vpop.permute.xlu0 %1995
      %1999 = vset.pattern.permute.xlu0 0
      %2000 = vperm.xlu0 %1999, %v664
      %v2001 = vpop.permute.xlu0 %2000
      %2004 = vset.pattern.permute.xlu0 0
      %2005 = vperm.xlu0 %2004, %v665
      %v2006 = vpop.permute.xlu0 %2005
      %2009 = vset.pattern.permute.xlu0 0
      %2010 = vperm.xlu0 %2009, %v666
      %v2011 = vpop.permute.xlu0 %2010
      %2014 = vset.pattern.permute.xlu0 0
      %2015 = vperm.xlu0 %2014, %v667
      %v2016 = vpop.permute.xlu0 %2015
      %2019 = vset.pattern.permute.xlu0 0
      %2020 = vperm.xlu0 %2019, %v668
      %v2021 = vpop.permute.xlu0 %2020
      %2024 = vset.pattern.permute.xlu0 0
      %2025 = vperm.xlu0 %2024, %v669
      %v2026 = vpop.permute.xlu0 %2025
      %2029 = vset.pattern.permute.xlu0 0
      %2030 = vperm.xlu0 %2029, %v670
      %v2031 = vpop.permute.xlu0 %2030
      %2034 = vset.pattern.permute.xlu0 0
      %2035 = vperm.xlu0 %2034, %v671
      %v2036 = vpop.permute.xlu0 %2035
      %2039 = vset.pattern.permute.xlu0 0
      %2040 = vperm.xlu0 %2039, %v672
      %v2041 = vpop.permute.xlu0 %2040
      %2044 = vset.pattern.permute.xlu0 0
      %2045 = vperm.xlu0 %2044, %v673
      %v2046 = vpop.permute.xlu0 %2045
      %2049 = vset.pattern.permute.xlu0 0
      %2050 = vperm.xlu0 %2049, %v674
      %v2051 = vpop.permute.xlu0 %2050
      %v2053 = vmul.f32 %v1940, %v1986
      %v2054 = vmul.f32 %v1941, %v1991
      %v2055 = vmul.f32 %v1942, %v1996
      %v2056 = vmul.f32 %v1943, %v2001
      %v2057 = vmul.f32 %v1944, %v2006
      %v2058 = vmul.f32 %v1945, %v2011
      %v2059 = vmul.f32 %v1946, %v2016
      %v2060 = vmul.f32 %v1947, %v2021
      %v2061 = vmul.f32 %v1948, %v2026
      %v2062 = vmul.f32 %v1949, %v2031
      %v2063 = vmul.f32 %v1950, %v2036
      %v2064 = vmul.f32 %v1951, %v2041
      %v2065 = vmul.f32 %v1952, %v2046
      %v2066 = vmul.f32 %v1953, %v2051
      %v2067 = vsel %vm932, %v2053, 0.0
      %v2068 = vsel %vm932, %v2054, 0.0
      %v2069 = vadd.f32 %v2067, %v2068
      %v2070 = vsel %vm932, %v2055, 0.0
      %v2071 = vadd.f32 %v2069, %v2070
      %v2072 = vsel %vm932, %v2056, 0.0
      %v2073 = vadd.f32 %v2071, %v2072
      %v2074 = vsel %vm932, %v2057, 0.0
      %v2075 = vadd.f32 %v2073, %v2074
      %v2076 = vsel %vm932, %v2058, 0.0
      %v2077 = vadd.f32 %v2075, %v2076
      %v2078 = vsel %vm932, %v2059, 0.0
      %v2079 = vadd.f32 %v2077, %v2078
      %v2080 = vsel %vm932, %v2060, 0.0
      %v2081 = vadd.f32 %v2079, %v2080
      %v2082 = vsel %vm932, %v2061, 0.0
      %v2083 = vadd.f32 %v2081, %v2082
      %v2084 = vsel %vm932, %v2062, 0.0
      %v2085 = vadd.f32 %v2083, %v2084
      %v2086 = vsel %vm932, %v2063, 0.0
      %v2087 = vadd.f32 %v2085, %v2086
      %v2088 = vsel %vm932, %v2064, 0.0
      %v2089 = vadd.f32 %v2087, %v2088
      %v2090 = vsel %vm932, %v2065, 0.0
      %v2091 = vadd.f32 %v2089, %v2090
      %v2092 = vsel %vm932, %v2066, 0.0
      %v2093 = vadd.f32 %v2091, %v2092
      %v2094 = vrot.slane %v2093, 4
      %v2095 = vadd.f32 %v2093, %v2094
      %v2096 = vrot.slane %v2095, 2
      %v2097 = vadd.f32 %v2095, %v2096
      %v2098 = vrot.slane %v2097, 1
      %v2099 = vadd.f32 %v2097, %v2098
      %v2100 = vmul.f32 %v2053, %v1940
      %v2101 = vmul.f32 %v2054, %v1941
      %v2102 = vmul.f32 %v2055, %v1942
      %v2103 = vmul.f32 %v2056, %v1943
      %v2104 = vmul.f32 %v2057, %v1944
      %v2105 = vmul.f32 %v2058, %v1945
      %v2106 = vmul.f32 %v2059, %v1946
      %v2107 = vmul.f32 %v2060, %v1947
      %v2108 = vmul.f32 %v2061, %v1948
      %v2109 = vmul.f32 %v2062, %v1949
      %v2110 = vmul.f32 %v2063, %v1950
      %v2111 = vmul.f32 %v2064, %v1951
      %v2112 = vmul.f32 %v2065, %v1952
      %v2113 = vmul.f32 %v2066, %v1953
      %v2114 = vsel %vm932, %v2100, 0.0
      %v2115 = vsel %vm932, %v2101, 0.0
      %v2116 = vadd.f32 %v2114, %v2115
      %v2117 = vsel %vm932, %v2102, 0.0
      %v2118 = vadd.f32 %v2116, %v2117
      %v2119 = vsel %vm932, %v2103, 0.0
      %v2120 = vadd.f32 %v2118, %v2119
      %v2121 = vsel %vm932, %v2104, 0.0
      %v2122 = vadd.f32 %v2120, %v2121
      %v2123 = vsel %vm932, %v2105, 0.0
      %v2124 = vadd.f32 %v2122, %v2123
      %v2125 = vsel %vm932, %v2106, 0.0
      %v2126 = vadd.f32 %v2124, %v2125
      %v2127 = vsel %vm932, %v2107, 0.0
      %v2128 = vadd.f32 %v2126, %v2127
      %v2129 = vsel %vm932, %v2108, 0.0
      %v2130 = vadd.f32 %v2128, %v2129
      %v2131 = vsel %vm932, %v2109, 0.0
      %v2132 = vadd.f32 %v2130, %v2131
      %v2133 = vsel %vm932, %v2110, 0.0
      %v2134 = vadd.f32 %v2132, %v2133
      %v2135 = vsel %vm932, %v2111, 0.0
      %v2136 = vadd.f32 %v2134, %v2135
      %v2137 = vsel %vm932, %v2112, 0.0
      %v2138 = vadd.f32 %v2136, %v2137
      %v2139 = vsel %vm932, %v2113, 0.0
      %v2140 = vadd.f32 %v2138, %v2139
      %v2141 = vrot.slane %v2140, 4
      %v2142 = vadd.f32 %v2140, %v2141
      %v2143 = vrot.slane %v2142, 2
      %v2144 = vadd.f32 %v2142, %v2143
      %v2145 = vrot.slane %v2144, 1
      %v2146 = vadd.f32 %v2144, %v2145
      %v2147 = vsel %vm1142, %v2099, %v2146
      %v2148 = vsel %vm902, %v2147, 0.0
      %2149 = vst.msk [vmem:[%s568] sm:$0xff] %vm932, %v2148
      %s2150 = smul.u32 14, %s21
      %p2151 = scmp.lt.s32.totalorder %s2150, 27
      %s2152 = scalar_select %p2151, %s2150, 27
      %s2153 = smul.addr %s2152, 4
      %s2154 = scalar_lea.vmem %s8, %s2153
      %p2155 = scmp.lt.s32.totalorder %s21, 1
      %s2156 = scalar_select %p2155, %s21, 1
      %s2157 = smul.addr %s2156, 8
      %s2158 = scalar_lea.vmem %s9, %s2157
      // Predicated region
      $region53: #{conv_norm_block_forward.4} parent=51 // pred_check
        %p2159 = pneg %p269
      $region54: #{conv_norm_block_forward.4} parent=51 // pred_check_branch
        %2161 = sbr.rel (%p2159) target = $region56
      $region55: #{conv_norm_block_forward.4} parent=51 // pred_region
        %s2162 = smul.u32 14, %s21
      $region56: #{conv_norm_block_forward.4} parent=51 // pred_fallthru
        _
      // Predicated region
      $region57: #{conv_norm_block_forward.4} parent=51 // pred_check
        %p2163 = pneg %p295
      $region58: #{conv_norm_block_forward.4} parent=51 // pred_check_branch
        %2165 = sbr.rel (%p2163) target = $region60
      $region59: #{conv_norm_block_forward.4} parent=51 // pred_region
        _
      $region60: #{conv_norm_block_forward.4} parent=51 // pred_fallthru
        _
    $region52: #{conv_norm_block_forward.4} parent=5 // pred_fallthru
      _
    %p2166 = scmp.le.s32.totalorder 2, %s16
    // Predicated region
    $region61: #{conv_norm_block_forward.4} parent=5 // pred_check
      %p2167 = pneg %p2166
    $region62: #{conv_norm_block_forward.4} parent=5 // pred_check_branch
      %2169 = sbr.rel (%p2167) target = $region64
    $region63: #{conv_norm_block_forward.4} parent=5 // pred_region
      %s2170 = ssub.s32 %s16, 2
      // Predicated region
      $region65: #{conv_norm_block_forward.4} parent=63 // pred_check
        %p2171 = pneg %p275
      $region66: #{conv_norm_block_forward.4} parent=63 // pred_check_branch
        %2173 = sbr.rel (%p2171) target = $region68
      $region67: #{conv_norm_block_forward.4} parent=63 // pred_region
        %s2174 = smul.u32 14, %s22
        %p2175 = scmp.lt.s32.totalorder %s2174, 27
        %s2176 = scalar_select %p2175, %s2174, 27
        %s2177 = smul.addr %s2176, 4
        %s2178 = scalar_lea.vmem %s8, %s2177
      $region68: #{conv_norm_block_forward.4} parent=63 // pred_fallthru
        _
      // Predicated region
      $region69: #{conv_norm_block_forward.4} parent=63 // pred_check
        %p2179 = pneg %p301
      $region70: #{conv_norm_block_forward.4} parent=63 // pred_check_branch
        %2181 = sbr.rel (%p2179) target = $region72
      $region71: #{conv_norm_block_forward.4} parent=63 // pred_region
        %p2182 = scmp.lt.s32.totalorder %s22, 1
        %s2183 = scalar_select %p2182, %s22, 1
        %s2184 = smul.addr %s2183, 8
        %s2185 = scalar_lea.vmem %s9, %s2184
      $region72: #{conv_norm_block_forward.4} parent=63 // pred_fallthru
        _
    $region64: #{conv_norm_block_forward.4} parent=5 // pred_fallthru
      _
  $region6: #{conv_norm_block_forward.4} parent=0 // loop_footer
    %s20 = sadd.s32 1, %s16
  $region7: #{conv_norm_block_forward.4} parent=0 // loop_footer_branch
    %15 = sbr.rel target = $region3
  $region8: #{conv_norm_block_forward.4} parent=0 // loop_exit
    _

</llo_original>
